<compile_context>
chip_gen: v7x
topology: tpu7x:2x2x1
jax: 0.10.0
libtpu: 0.0.40
codegen_flags: <defaults>
</compile_context>

<pallas_src>
import numpy as np
import jax
import jax.numpy as jnp
from jax.experimental import pallas as pl
from jax.experimental.pallas import tpu as pltpu

# ----------------------------- configuration --------------------------------
N, H, W = 2, 8, 8
C_IN, C_OUT = 3, 3
C_STAGE, C_MID = 8, 16          # ConvNeXtBlock(in_channels=8, mid_channels=16)
NUM_STAGES = 2
assert C_STAGE == W, "PyTorch gamma broadcast binds gamma to the width axis"

P = N * H * W                   # pixels (w fastest, then h, then n) -> lane axis
assert P == 128, "this toy config packs all pixels into one 128-wide lane row"
C_IN_PAD = 8                    # pad input channels to a full sublane tile
_EPS = 1e-5
_PREC = jax.lax.Precision.HIGHEST   # reference only

# packed per-channel parameter slab layout (row offsets; all multiples of 8)
CP_STEM_B = 0
CP_STEM_LNW = CP_STEM_B + C_STAGE
CP_STEM_LNB = CP_STEM_LNW + C_STAGE
CP_STAGE0 = CP_STEM_LNB + C_STAGE
CPS_BN_SCALE = 0
CPS_BN_SHIFT = CPS_BN_SCALE + C_STAGE
CPS_PW1_B = CPS_BN_SHIFT + C_STAGE
CPS_PW2_B = CPS_PW1_B + C_MID
CPS_GAMMA = CPS_PW2_B + C_STAGE
CPS_LN_W = CPS_GAMMA + C_STAGE
CPS_LN_B = CPS_LN_W + C_STAGE
CP_STAGE_ROWS = CPS_LN_B + C_STAGE                    # 64
CP_ROWS = CP_STAGE0 + NUM_STAGES * CP_STAGE_ROWS      # 152


def _make_tap_mask(ksize):
    """'same'-padding validity per tap: (ksize*ksize, P) {0,1} rows."""
    r = ksize // 2
    idx = np.arange(P)
    h = (idx // W) % H
    w = idx % W
    rows = []
    for dy in range(-r, r + 1):
        for dx in range(-r, r + 1):
            rows.append(((h + dy >= 0) & (h + dy < H) &
                         (w + dx >= 0) & (w + dx < W)).astype(np.float32))
    return np.stack(rows, axis=0)


MASK3 = _make_tap_mask(3)       # (9,  P) constants, folded into weights on host
MASK7 = _make_tap_mask(7)       # (49, P)


# ------------------------- in-kernel math helpers ----------------------------
def _gelu(x):
    # EUP-friendly tanh GELU; |err| vs exact erf GELU ~1e-3 << the 1e-2 check.
    return 0.5 * x * (1.0 + jnp.tanh(0.7978845608028654 * (x + 0.044715 * x * x * x)))


def _layernorm_ch(v, w, b):
    # LayerNorm2D == nn.LayerNorm over channels == the sublane axis in (C, P).
    mu = jnp.mean(v, axis=0, keepdims=True)
    d = v - mu
    var = jnp.mean(d * d, axis=0, keepdims=True)
    return d * jax.lax.rsqrt(var + _EPS) * w + b


def _shift_pixels(v, off):
    # v[:, p + off] for every in-range tap; lane-wrapped positions are zeroed
    # by the tap masks folded into the weights (bit-identical to zero padding,
    # since a valid tap never crosses a batch block of H*W = 64 pixels).
    if off == 0:
        return v
    return pltpu.roll(v, (-off) % P, axis=1)


def _pointwise(wb_ref, v, c_in, n_acc=2):
    # (c_out, P) = W @ v as c_in unrolled broadcast-FMAs on the VPU (exact f32).
    # wb_ref[k] holds column k of W pre-broadcast along the lane axis.
    accs = [None] * n_acc
    for k in range(c_in):
        term = wb_ref[k] * v[k:k + 1, :]
        g = k % n_acc
        accs[g] = term if accs[g] is None else accs[g] + term
    out = accs[0]
    for a in accs[1:]:
        out = out + a
    return out


# --------------------------------- kernel ------------------------------------
def chromanet_kernel(*refs):
    x_ref, stem_wm_ref, cp_ref = refs[:3]
    stage_refs = refs[3:3 + 4 * NUM_STAGES]
    o_ref = refs[3 + 4 * NUM_STAGES]

    def cp(off, rows):
        return cp_ref[off:off + rows, :]          # static, 8-aligned slab reads

    x0 = x_ref[...]                               # (C_IN_PAD, P), pixels on lanes

    # ---- stem: Conv2d(C_IN -> C_STAGE, 3x3, 'same') + LayerNorm2D ----
    acc = [None, None, None]
    for k in range(9):
        dy, dx = k // 3 - 1, k % 3 - 1
        xs = _shift_pixels(x0, dy * W + dx)
        g = k % 3                                 # 3 accumulators -> short chain
        for ci in range(C_IN):
            term = stem_wm_ref[k, ci] * xs[ci:ci + 1, :]   # weight*mask pre-folded
            acc[g] = term if acc[g] is None else acc[g] + term
    y = (acc[0] + acc[1]) + acc[2] + cp(CP_STEM_B, C_STAGE)
    y = _layernorm_ch(y, cp(CP_STEM_LNW, C_STAGE), cp(CP_STEM_LNB, C_STAGE))

    # ---- body: [ConvNeXtBlock, LayerNorm2D, Conv2d(1x1, bias=False)] x stages ----
    for s in range(NUM_STAGES):
        dwm_ref, pw1_wb_ref, pw2_wb_ref, proj_wb_ref = stage_refs[4 * s:4 * s + 4]
        base = CP_STAGE0 + s * CP_STAGE_ROWS

        z = y
        # depthwise 7x7 'same' conv: masked rolls + per-tap FMA, 4 accumulators
        dacc = [None, None, None, None]
        for k in range(49):
            dy, dx = k // 7 - 3, k % 7 - 3
            zs = _shift_pixels(z, dy * W + dx)
            term = dwm_ref[k] * zs                # dw weight * pad mask pre-folded
            g = k % 4
            dacc[g] = term if dacc[g] is None else dacc[g] + term
        t = (dacc[0] + dacc[1]) + (dacc[2] + dacc[3])

        # ConvNeXtBlock norm (norm='layer' -> nn.BatchNorm2d), eval semantics,
        # with the dwconv bias folded into the shift on the host.
        # TODO(synk): training-mode batch statistics / running-stat updates of
        # BatchNorm2d are not reproduced; eval-mode (running stats) only.
        t = t * cp(base + CPS_BN_SCALE, C_STAGE) + cp(base + CPS_BN_SHIFT, C_STAGE)

        # pwconv1 (1x1) + GELU
        t = _pointwise(pw1_wb_ref, t, C_STAGE) + cp(base + CPS_PW1_B, C_MID)
        t = _gelu(t)

        # gamma * pwconv2(y): PyTorch broadcasts gamma (C,) against the *width*
        # axis of NCHW -> a per-pixel factor here (pre-broadcast to (C_STAGE, P)).
        t = _pointwise(pw2_wb_ref, t, C_MID) + cp(base + CPS_PW2_B, C_STAGE)
        y = cp(base + CPS_GAMMA, C_STAGE) * t + z          # ConvNeXt residual

        # ChromaNet body glue: LayerNorm2D + Conv2d(in_c, out_c, 1, bias=False)
        y = _layernorm_ch(y, cp(base + CPS_LN_W, C_STAGE), cp(base + CPS_LN_B, C_STAGE))
        y = _pointwise(proj_wb_ref, y, C_STAGE)

    # final skip connection; output_transform == nn.Identity()
    o_ref[...] = x0[:C_OUT, :] + y


# --------------------------------- wrapper ------------------------------------
def chromanet_forward(x_nchw, params):
    f32 = jnp.float32

    def bc(v):                                    # (C,) -> (C, P) lane-broadcast
        v = jnp.asarray(v, f32)
        return jnp.broadcast_to(v[:, None], (v.shape[0], P))

    # activations: NCHW -> (C, P), channels padded to a full sublane tile
    x2d = jnp.transpose(x_nchw, (1, 0, 2, 3)).reshape(C_IN, P).astype(f32)
    x2d = jnp.pad(x2d, ((0, C_IN_PAD - C_IN), (0, 0)))

    # stem weights folded with the 3x3 'same' tap masks: (9, C_IN, C_STAGE, P)
    sw = jnp.transpose(params['stem_w'], (2, 3, 1, 0)).reshape(9, C_IN, C_STAGE)
    stem_wm = sw[:, :, :, None].astype(f32) * MASK3[:, None, None, :]

    cp_blocks = [bc(params['stem_b']), bc(params['stem_ln_w']), bc(params['stem_ln_b'])]
    stage_args = []
    for st in params['stages']:
        # fold BatchNorm (eval) affine + dwconv bias into one scale/shift
        bn_scale = st['bn_w'] / jnp.sqrt(st['bn_v'] + _EPS)
        bn_shift = st['bn_b'] + (st['dw_b'] - st['bn_m']) * bn_scale
        gamma_px = jnp.broadcast_to(
            jnp.tile(st['gamma'], N * H)[None, :].astype(f32), (C_STAGE, P))
        cp_blocks += [bc(bn_scale), bc(bn_shift), bc(st['pw1_b']), bc(st['pw2_b']),
                      gamma_px, bc(st['ln_w']), bc(st['ln_b'])]

        # depthwise 7x7 weights folded with the 'same' tap masks: (49, C_STAGE, P)
        dwk = jnp.transpose(st['dw_w'][:, 0], (1, 2, 0)).reshape(49, C_STAGE)
        dwm = dwk[:, :, None].astype(f32) * MASK7[:, None, :]

        # 1x1-conv weights, column-major and lane-pre-broadcast: wb[k] = W[:, k]
        w1 = st['pw1_w'][:, :, 0, 0].astype(f32)               # (C_MID, C_STAGE)
        w2 = st['pw2_w'][:, :, 0, 0].astype(f32)               # (C_STAGE, C_MID)
        wp = st['proj_w'][:, :, 0, 0].astype(f32)              # (out_c, C_STAGE)
        pw1_wb = jnp.broadcast_to(w1.T[:, :, None], (C_STAGE, C_MID, P))
        pw2_wb = jnp.broadcast_to(w2.T[:, :, None], (C_MID, C_STAGE, P))
        proj_wb = jnp.broadcast_to(wp.T[:, :, None], (C_STAGE, wp.shape[0], P))

        stage_args += [dwm, pw1_wb, pw2_wb, proj_wb]

    cp_slab = jnp.concatenate(cp_blocks, axis=0)
    assert cp_slab.shape == (CP_ROWS, P)

    args = [x2d, stem_wm, cp_slab] + stage_args

    out2d = pl.pallas_call(
        chromanet_kernel,
        out_shape=jax.ShapeDtypeStruct((C_OUT, P), jnp.float32),
        in_specs=[pl.BlockSpec(memory_space=pltpu.MemorySpace.VMEM)] * len(args),
        out_specs=pl.BlockSpec(memory_space=pltpu.MemorySpace.VMEM),
    )(*args)

    return jnp.transpose(out2d.reshape(C_OUT, N, H, W), (1, 0, 2, 3))


# --------------------------- pure-JAX reference -------------------------------
def _conv_ref(x, w, b, pad, groups=1):
    y = jax.lax.conv_general_dilated(
        x, w, (1, 1), [(pad, pad), (pad, pad)],
        dimension_numbers=('NCHW', 'OIHW', 'NCHW'),
        feature_group_count=groups, precision=_PREC)
    if b is not None:
        y = y + b[None, :, None, None]
    return y


def _layernorm2d_ref(x, w, b):
    xt = jnp.transpose(x, (0, 2, 3, 1))
    mu = xt.mean(-1, keepdims=True)
    var = ((xt - mu) ** 2).mean(-1, keepdims=True)
    return jnp.transpose((xt - mu) / jnp.sqrt(var + _EPS) * w + b, (0, 3, 1, 2))


def chromanet_reference(x, p):
    y = _conv_ref(x, p['stem_w'], p['stem_b'], pad=1)
    y = _layernorm2d_ref(y, p['stem_ln_w'], p['stem_ln_b'])
    for st in p['stages']:
        z = y
        t = _conv_ref(z, st['dw_w'], st['dw_b'], pad=3, groups=z.shape[1])
        t = (t - st['bn_m'][None, :, None, None]) \
            / jnp.sqrt(st['bn_v'][None, :, None, None] + _EPS) \
            * st['bn_w'][None, :, None, None] + st['bn_b'][None, :, None, None]
        t = _conv_ref(t, st['pw1_w'], st['pw1_b'], pad=0)
        t = jax.nn.gelu(t, approximate=False)
        t = _conv_ref(t, st['pw2_w'], st['pw2_b'], pad=0)
        t = st['gamma'] * t                    # broadcasts along W, exactly like torch
        y = t + z
        y = _layernorm2d_ref(y, st['ln_w'], st['ln_b'])
        y = _conv_ref(y, st['proj_w'], None, pad=0)
    return x + y                               # output_transform == Identity


# ----------------------------- parameter init ---------------------------------
def init_params(key):
    keys = iter(jax.random.split(key, 64))
    nrm = lambda shape, s=0.2: s * jax.random.normal(next(keys), shape, jnp.float32)
    uni = lambda shape, lo, hi: jax.random.uniform(next(keys), shape, jnp.float32, lo, hi)
    p = {
        'stem_w': nrm((C_STAGE, C_IN, 3, 3)),
        'stem_b': nrm((C_STAGE,), 0.1),
        'stem_ln_w': uni((C_STAGE,), 0.8, 1.2),
        'stem_ln_b': nrm((C_STAGE,), 0.1),
        'stages': [],
    }
    for i in range(NUM_STAGES):
        out_c = C_OUT if i == NUM_STAGES - 1 else C_STAGE
        p['stages'].append({
            'dw_w': nrm((C_STAGE, 1, 7, 7)),
            'dw_b': nrm((C_STAGE,), 0.1),
            'bn_w': uni((C_STAGE,), 0.8, 1.2),
            'bn_b': nrm((C_STAGE,), 0.1),
            'bn_m': nrm((C_STAGE,), 0.1),
            'bn_v': uni((C_STAGE,), 0.5, 1.5),
            'pw1_w': nrm((C_MID, C_STAGE, 1, 1)),
            'pw1_b': nrm((C_MID,), 0.1),
            'pw2_w': nrm((C_STAGE, C_MID, 1, 1)),
            'pw2_b': nrm((C_STAGE,), 0.1),
            'gamma': 1.0 + nrm((C_STAGE,), 0.2),     # layer_scale_init_value*ones (+ jitter)
            'ln_w': uni((C_STAGE,), 0.8, 1.2),
            'ln_b': nrm((C_STAGE,), 0.1),
            'proj_w': nrm((out_c, C_STAGE, 1, 1)),
        })
    return p


# ------------------------------------ main -------------------------------------
if __name__ == "__main__":
    key = jax.random.PRNGKey(0)
    kx, kp = jax.random.split(key)
    x = jax.random.normal(kx, (N, C_IN, H, W), jnp.float32)   # NCHW, like PyTorch
    params = init_params(kp)

    out = jax.jit(chromanet_forward)(x, params)
    out = jax.block_until_ready(out)

    ref = chromanet_reference(x, params)
    np.testing.assert_allclose(np.asarray(out), np.asarray(ref), rtol=1e-2, atol=1e-2)
    print("KERNEL_OK")
</pallas_src>

<mosaic_0001>
module attributes {stable_mosaic.version = 11 : i64} {
  func.func @chromanet_kernel(%arg0: memref<8x128xf32, #tpu.memory_space<vmem>>, %arg1: memref<9x3x8x128xf32, #tpu.memory_space<vmem>>, %arg2: memref<152x128xf32, #tpu.memory_space<vmem>>, %arg3: memref<49x8x128xf32, #tpu.memory_space<vmem>>, %arg4: memref<8x16x128xf32, #tpu.memory_space<vmem>>, %arg5: memref<16x8x128xf32, #tpu.memory_space<vmem>>, %arg6: memref<8x8x128xf32, #tpu.memory_space<vmem>>, %arg7: memref<49x8x128xf32, #tpu.memory_space<vmem>>, %arg8: memref<8x16x128xf32, #tpu.memory_space<vmem>>, %arg9: memref<16x8x128xf32, #tpu.memory_space<vmem>>, %arg10: memref<8x3x128xf32, #tpu.memory_space<vmem>>, %arg11: memref<3x128xf32, #tpu.memory_space<vmem>>) attributes {dimension_semantics = [], scalar_prefetch = 0 : i64, scratch_operands = 0 : i64, tpu.core_type = #tpu.core_type<tc>} {
    %c0 = arith.constant 0 : index
    %c0_0 = arith.constant 0 : index
    %0 = vector.load %arg0[%c0, %c0_0] : memref<8x128xf32, #tpu.memory_space<vmem>>, vector<8x128xf32>
    %c9_i32 = arith.constant 9 : i32
    %1 = tpu.dynamic_rotate %0 by %c9_i32 dim 1 : vector<8x128xf32>, i32 -> vector<8x128xf32>
    %c0_1 = arith.constant 0 : index
    %c0_2 = arith.constant 0 : index
    %c0_3 = arith.constant 0 : index
    %c0_4 = arith.constant 0 : index
    %2 = vector.load %arg1[%c0_1, %c0_2, %c0_3, %c0_4] : memref<9x3x8x128xf32, #tpu.memory_space<vmem>>, vector<1x1x8x128xf32>
    %3 = vector.shape_cast %2 : vector<1x1x8x128xf32> to vector<8x128xf32>
    %4 = vector.extract_strided_slice %1 {offsets = [0, 0], sizes = [1, 128], strides = [1, 1]} : vector<8x128xf32> to vector<1x128xf32>
    %5 = vector.broadcast %4 : vector<1x128xf32> to vector<8x128xf32>
    %6 = arith.mulf %3, %5 : vector<8x128xf32>
    %c0_5 = arith.constant 0 : index
    %c1 = arith.constant 1 : index
    %c0_6 = arith.constant 0 : index
    %c0_7 = arith.constant 0 : index
    %7 = vector.load %arg1[%c0_5, %c1, %c0_6, %c0_7] : memref<9x3x8x128xf32, #tpu.memory_space<vmem>>, vector<1x1x8x128xf32>
    %8 = vector.shape_cast %7 : vector<1x1x8x128xf32> to vector<8x128xf32>
    %9 = vector.extract_strided_slice %1 {offsets = [1, 0], sizes = [1, 128], strides = [1, 1]} : vector<8x128xf32> to vector<1x128xf32>
    %10 = vector.broadcast %9 : vector<1x128xf32> to vector<8x128xf32>
    %11 = arith.mulf %8, %10 : vector<8x128xf32>
    %12 = arith.addf %6, %11 : vector<8x128xf32>
    %c0_8 = arith.constant 0 : index
    %c2 = arith.constant 2 : index
    %c0_9 = arith.constant 0 : index
    %c0_10 = arith.constant 0 : index
    %13 = vector.load %arg1[%c0_8, %c2, %c0_9, %c0_10] : memref<9x3x8x128xf32, #tpu.memory_space<vmem>>, vector<1x1x8x128xf32>
    %14 = vector.shape_cast %13 : vector<1x1x8x128xf32> to vector<8x128xf32>
    %15 = vector.extract_strided_slice %1 {offsets = [2, 0], sizes = [1, 128], strides = [1, 1]} : vector<8x128xf32> to vector<1x128xf32>
    %16 = vector.broadcast %15 : vector<1x128xf32> to vector<8x128xf32>
    %17 = arith.mulf %14, %16 : vector<8x128xf32>
    %18 = arith.addf %12, %17 : vector<8x128xf32>
    %c8_i32 = arith.constant 8 : i32
    %19 = tpu.dynamic_rotate %0 by %c8_i32 dim 1 : vector<8x128xf32>, i32 -> vector<8x128xf32>
    %c1_11 = arith.constant 1 : index
    %c0_12 = arith.constant 0 : index
    %c0_13 = arith.constant 0 : index
    %c0_14 = arith.constant 0 : index
    %20 = vector.load %arg1[%c1_11, %c0_12, %c0_13, %c0_14] : memref<9x3x8x128xf32, #tpu.memory_space<vmem>>, vector<1x1x8x128xf32>
    %21 = vector.shape_cast %20 : vector<1x1x8x128xf32> to vector<8x128xf32>
    %22 = vector.extract_strided_slice %19 {offsets = [0, 0], sizes = [1, 128], strides = [1, 1]} : vector<8x128xf32> to vector<1x128xf32>
    %23 = vector.broadcast %22 : vector<1x128xf32> to vector<8x128xf32>
    %24 = arith.mulf %21, %23 : vector<8x128xf32>
    %c1_15 = arith.constant 1 : index
    %c1_16 = arith.constant 1 : index
    %c0_17 = arith.constant 0 : index
    %c0_18 = arith.constant 0 : index
    %25 = vector.load %arg1[%c1_15, %c1_16, %c0_17, %c0_18] : memref<9x3x8x128xf32, #tpu.memory_space<vmem>>, vector<1x1x8x128xf32>
    %26 = vector.shape_cast %25 : vector<1x1x8x128xf32> to vector<8x128xf32>
    %27 = vector.extract_strided_slice %19 {offsets = [1, 0], sizes = [1, 128], strides = [1, 1]} : vector<8x128xf32> to vector<1x128xf32>
    %28 = vector.broadcast %27 : vector<1x128xf32> to vector<8x128xf32>
    %29 = arith.mulf %26, %28 : vector<8x128xf32>
    %30 = arith.addf %24, %29 : vector<8x128xf32>
    %c1_19 = arith.constant 1 : index
    %c2_20 = arith.constant 2 : index
    %c0_21 = arith.constant 0 : index
    %c0_22 = arith.constant 0 : index
    %31 = vector.load %arg1[%c1_19, %c2_20, %c0_21, %c0_22] : memref<9x3x8x128xf32, #tpu.memory_space<vmem>>, vector<1x1x8x128xf32>
    %32 = vector.shape_cast %31 : vector<1x1x8x128xf32> to vector<8x128xf32>
    %33 = vector.extract_strided_slice %19 {offsets = [2, 0], sizes = [1, 128], strides = [1, 1]} : vector<8x128xf32> to vector<1x128xf32>
    %34 = vector.broadcast %33 : vector<1x128xf32> to vector<8x128xf32>
    %35 = arith.mulf %32, %34 : vector<8x128xf32>
    %36 = arith.addf %30, %35 : vector<8x128xf32>
    %c7_i32 = arith.constant 7 : i32
    %37 = tpu.dynamic_rotate %0 by %c7_i32 dim 1 : vector<8x128xf32>, i32 -> vector<8x128xf32>
    %c2_23 = arith.constant 2 : index
    %c0_24 = arith.constant 0 : index
    %c0_25 = arith.constant 0 : index
    %c0_26 = arith.constant 0 : index
    %38 = vector.load %arg1[%c2_23, %c0_24, %c0_25, %c0_26] : memref<9x3x8x128xf32, #tpu.memory_space<vmem>>, vector<1x1x8x128xf32>
    %39 = vector.shape_cast %38 : vector<1x1x8x128xf32> to vector<8x128xf32>
    %40 = vector.extract_strided_slice %37 {offsets = [0, 0], sizes = [1, 128], strides = [1, 1]} : vector<8x128xf32> to vector<1x128xf32>
    %41 = vector.broadcast %40 : vector<1x128xf32> to vector<8x128xf32>
    %42 = arith.mulf %39, %41 : vector<8x128xf32>
    %c2_27 = arith.constant 2 : index
    %c1_28 = arith.constant 1 : index
    %c0_29 = arith.constant 0 : index
    %c0_30 = arith.constant 0 : index
    %43 = vector.load %arg1[%c2_27, %c1_28, %c0_29, %c0_30] : memref<9x3x8x128xf32, #tpu.memory_space<vmem>>, vector<1x1x8x128xf32>
    %44 = vector.shape_cast %43 : vector<1x1x8x128xf32> to vector<8x128xf32>
    %45 = vector.extract_strided_slice %37 {offsets = [1, 0], sizes = [1, 128], strides = [1, 1]} : vector<8x128xf32> to vector<1x128xf32>
    %46 = vector.broadcast %45 : vector<1x128xf32> to vector<8x128xf32>
    %47 = arith.mulf %44, %46 : vector<8x128xf32>
    %48 = arith.addf %42, %47 : vector<8x128xf32>
    %c2_31 = arith.constant 2 : index
    %c2_32 = arith.constant 2 : index
    %c0_33 = arith.constant 0 : index
    %c0_34 = arith.constant 0 : index
    %49 = vector.load %arg1[%c2_31, %c2_32, %c0_33, %c0_34] : memref<9x3x8x128xf32, #tpu.memory_space<vmem>>, vector<1x1x8x128xf32>
    %50 = vector.shape_cast %49 : vector<1x1x8x128xf32> to vector<8x128xf32>
    %51 = vector.extract_strided_slice %37 {offsets = [2, 0], sizes = [1, 128], strides = [1, 1]} : vector<8x128xf32> to vector<1x128xf32>
    %52 = vector.broadcast %51 : vector<1x128xf32> to vector<8x128xf32>
    %53 = arith.mulf %50, %52 : vector<8x128xf32>
    %54 = arith.addf %48, %53 : vector<8x128xf32>
    %c1_i32 = arith.constant 1 : i32
    %55 = tpu.dynamic_rotate %0 by %c1_i32 dim 1 : vector<8x128xf32>, i32 -> vector<8x128xf32>
    %c3 = arith.constant 3 : index
    %c0_35 = arith.constant 0 : index
    %c0_36 = arith.constant 0 : index
    %c0_37 = arith.constant 0 : index
    %56 = vector.load %arg1[%c3, %c0_35, %c0_36, %c0_37] : memref<9x3x8x128xf32, #tpu.memory_space<vmem>>, vector<1x1x8x128xf32>
    %57 = vector.shape_cast %56 : vector<1x1x8x128xf32> to vector<8x128xf32>
    %58 = vector.extract_strided_slice %55 {offsets = [0, 0], sizes = [1, 128], strides = [1, 1]} : vector<8x128xf32> to vector<1x128xf32>
    %59 = vector.broadcast %58 : vector<1x128xf32> to vector<8x128xf32>
    %60 = arith.mulf %57, %59 : vector<8x128xf32>
    %61 = arith.addf %18, %60 : vector<8x128xf32>
    %c3_38 = arith.constant 3 : index
    %c1_39 = arith.constant 1 : index
    %c0_40 = arith.constant 0 : index
    %c0_41 = arith.constant 0 : index
    %62 = vector.load %arg1[%c3_38, %c1_39, %c0_40, %c0_41] : memref<9x3x8x128xf32, #tpu.memory_space<vmem>>, vector<1x1x8x128xf32>
    %63 = vector.shape_cast %62 : vector<1x1x8x128xf32> to vector<8x128xf32>
    %64 = vector.extract_strided_slice %55 {offsets = [1, 0], sizes = [1, 128], strides = [1, 1]} : vector<8x128xf32> to vector<1x128xf32>
    %65 = vector.broadcast %64 : vector<1x128xf32> to vector<8x128xf32>
    %66 = arith.mulf %63, %65 : vector<8x128xf32>
    %67 = arith.addf %61, %66 : vector<8x128xf32>
    %c3_42 = arith.constant 3 : index
    %c2_43 = arith.constant 2 : index
    %c0_44 = arith.constant 0 : index
    %c0_45 = arith.constant 0 : index
    %68 = vector.load %arg1[%c3_42, %c2_43, %c0_44, %c0_45] : memref<9x3x8x128xf32, #tpu.memory_space<vmem>>, vector<1x1x8x128xf32>
    %69 = vector.shape_cast %68 : vector<1x1x8x128xf32> to vector<8x128xf32>
    %70 = vector.extract_strided_slice %55 {offsets = [2, 0], sizes = [1, 128], strides = [1, 1]} : vector<8x128xf32> to vector<1x128xf32>
    %71 = vector.broadcast %70 : vector<1x128xf32> to vector<8x128xf32>
    %72 = arith.mulf %69, %71 : vector<8x128xf32>
    %73 = arith.addf %67, %72 : vector<8x128xf32>
    %c4 = arith.constant 4 : index
    %c0_46 = arith.constant 0 : index
    %c0_47 = arith.constant 0 : index
    %c0_48 = arith.constant 0 : index
    %74 = vector.load %arg1[%c4, %c0_46, %c0_47, %c0_48] : memref<9x3x8x128xf32, #tpu.memory_space<vmem>>, vector<1x1x8x128xf32>
    %75 = vector.shape_cast %74 : vector<1x1x8x128xf32> to vector<8x128xf32>
    %76 = vector.extract_strided_slice %0 {offsets = [0, 0], sizes = [1, 128], strides = [1, 1]} : vector<8x128xf32> to vector<1x128xf32>
    %77 = vector.broadcast %76 : vector<1x128xf32> to vector<8x128xf32>
    %78 = arith.mulf %75, %77 : vector<8x128xf32>
    %79 = arith.addf %36, %78 : vector<8x128xf32>
    %c4_49 = arith.constant 4 : index
    %c1_50 = arith.constant 1 : index
    %c0_51 = arith.constant 0 : index
    %c0_52 = arith.constant 0 : index
    %80 = vector.load %arg1[%c4_49, %c1_50, %c0_51, %c0_52] : memref<9x3x8x128xf32, #tpu.memory_space<vmem>>, vector<1x1x8x128xf32>
    %81 = vector.shape_cast %80 : vector<1x1x8x128xf32> to vector<8x128xf32>
    %82 = vector.extract_strided_slice %0 {offsets = [1, 0], sizes = [1, 128], strides = [1, 1]} : vector<8x128xf32> to vector<1x128xf32>
    %83 = vector.broadcast %82 : vector<1x128xf32> to vector<8x128xf32>
    %84 = arith.mulf %81, %83 : vector<8x128xf32>
    %85 = arith.addf %79, %84 : vector<8x128xf32>
    %c4_53 = arith.constant 4 : index
    %c2_54 = arith.constant 2 : index
    %c0_55 = arith.constant 0 : index
    %c0_56 = arith.constant 0 : index
    %86 = vector.load %arg1[%c4_53, %c2_54, %c0_55, %c0_56] : memref<9x3x8x128xf32, #tpu.memory_space<vmem>>, vector<1x1x8x128xf32>
    %87 = vector.shape_cast %86 : vector<1x1x8x128xf32> to vector<8x128xf32>
    %88 = vector.extract_strided_slice %0 {offsets = [2, 0], sizes = [1, 128], strides = [1, 1]} : vector<8x128xf32> to vector<1x128xf32>
    %89 = vector.broadcast %88 : vector<1x128xf32> to vector<8x128xf32>
    %90 = arith.mulf %87, %89 : vector<8x128xf32>
    %91 = arith.addf %85, %90 : vector<8x128xf32>
    %c127_i32 = arith.constant 127 : i32
    %92 = tpu.dynamic_rotate %0 by %c127_i32 dim 1 : vector<8x128xf32>, i32 -> vector<8x128xf32>
    %c5 = arith.constant 5 : index
    %c0_57 = arith.constant 0 : index
    %c0_58 = arith.constant 0 : index
    %c0_59 = arith.constant 0 : index
    %93 = vector.load %arg1[%c5, %c0_57, %c0_58, %c0_59] : memref<9x3x8x128xf32, #tpu.memory_space<vmem>>, vector<1x1x8x128xf32>
    %94 = vector.shape_cast %93 : vector<1x1x8x128xf32> to vector<8x128xf32>
    %95 = vector.extract_strided_slice %92 {offsets = [0, 0], sizes = [1, 128], strides = [1, 1]} : vector<8x128xf32> to vector<1x128xf32>
    %96 = vector.broadcast %95 : vector<1x128xf32> to vector<8x128xf32>
    %97 = arith.mulf %94, %96 : vector<8x128xf32>
    %98 = arith.addf %54, %97 : vector<8x128xf32>
    %c5_60 = arith.constant 5 : index
    %c1_61 = arith.constant 1 : index
    %c0_62 = arith.constant 0 : index
    %c0_63 = arith.constant 0 : index
    %99 = vector.load %arg1[%c5_60, %c1_61, %c0_62, %c0_63] : memref<9x3x8x128xf32, #tpu.memory_space<vmem>>, vector<1x1x8x128xf32>
    %100 = vector.shape_cast %99 : vector<1x1x8x128xf32> to vector<8x128xf32>
    %101 = vector.extract_strided_slice %92 {offsets = [1, 0], sizes = [1, 128], strides = [1, 1]} : vector<8x128xf32> to vector<1x128xf32>
    %102 = vector.broadcast %101 : vector<1x128xf32> to vector<8x128xf32>
    %103 = arith.mulf %100, %102 : vector<8x128xf32>
    %104 = arith.addf %98, %103 : vector<8x128xf32>
    %c5_64 = arith.constant 5 : index
    %c2_65 = arith.constant 2 : index
    %c0_66 = arith.constant 0 : index
    %c0_67 = arith.constant 0 : index
    %105 = vector.load %arg1[%c5_64, %c2_65, %c0_66, %c0_67] : memref<9x3x8x128xf32, #tpu.memory_space<vmem>>, vector<1x1x8x128xf32>
    %106 = vector.shape_cast %105 : vector<1x1x8x128xf32> to vector<8x128xf32>
    %107 = vector.extract_strided_slice %92 {offsets = [2, 0], sizes = [1, 128], strides = [1, 1]} : vector<8x128xf32> to vector<1x128xf32>
    %108 = vector.broadcast %107 : vector<1x128xf32> to vector<8x128xf32>
    %109 = arith.mulf %106, %108 : vector<8x128xf32>
    %110 = arith.addf %104, %109 : vector<8x128xf32>
    %c121_i32 = arith.constant 121 : i32
    %111 = tpu.dynamic_rotate %0 by %c121_i32 dim 1 : vector<8x128xf32>, i32 -> vector<8x128xf32>
    %c6 = arith.constant 6 : index
    %c0_68 = arith.constant 0 : index
    %c0_69 = arith.constant 0 : index
    %c0_70 = arith.constant 0 : index
    %112 = vector.load %arg1[%c6, %c0_68, %c0_69, %c0_70] : memref<9x3x8x128xf32, #tpu.memory_space<vmem>>, vector<1x1x8x128xf32>
    %113 = vector.shape_cast %112 : vector<1x1x8x128xf32> to vector<8x128xf32>
    %114 = vector.extract_strided_slice %111 {offsets = [0, 0], sizes = [1, 128], strides = [1, 1]} : vector<8x128xf32> to vector<1x128xf32>
    %115 = vector.broadcast %114 : vector<1x128xf32> to vector<8x128xf32>
    %116 = arith.mulf %113, %115 : vector<8x128xf32>
    %117 = arith.addf %73, %116 : vector<8x128xf32>
    %c6_71 = arith.constant 6 : index
    %c1_72 = arith.constant 1 : index
    %c0_73 = arith.constant 0 : index
    %c0_74 = arith.constant 0 : index
    %118 = vector.load %arg1[%c6_71, %c1_72, %c0_73, %c0_74] : memref<9x3x8x128xf32, #tpu.memory_space<vmem>>, vector<1x1x8x128xf32>
    %119 = vector.shape_cast %118 : vector<1x1x8x128xf32> to vector<8x128xf32>
    %120 = vector.extract_strided_slice %111 {offsets = [1, 0], sizes = [1, 128], strides = [1, 1]} : vector<8x128xf32> to vector<1x128xf32>
    %121 = vector.broadcast %120 : vector<1x128xf32> to vector<8x128xf32>
    %122 = arith.mulf %119, %121 : vector<8x128xf32>
    %123 = arith.addf %117, %122 : vector<8x128xf32>
    %c6_75 = arith.constant 6 : index
    %c2_76 = arith.constant 2 : index
    %c0_77 = arith.constant 0 : index
    %c0_78 = arith.constant 0 : index
    %124 = vector.load %arg1[%c6_75, %c2_76, %c0_77, %c0_78] : memref<9x3x8x128xf32, #tpu.memory_space<vmem>>, vector<1x1x8x128xf32>
    %125 = vector.shape_cast %124 : vector<1x1x8x128xf32> to vector<8x128xf32>
    %126 = vector.extract_strided_slice %111 {offsets = [2, 0], sizes = [1, 128], strides = [1, 1]} : vector<8x128xf32> to vector<1x128xf32>
    %127 = vector.broadcast %126 : vector<1x128xf32> to vector<8x128xf32>
    %128 = arith.mulf %125, %127 : vector<8x128xf32>
    %129 = arith.addf %123, %128 : vector<8x128xf32>
    %c120_i32 = arith.constant 120 : i32
    %130 = tpu.dynamic_rotate %0 by %c120_i32 dim 1 : vector<8x128xf32>, i32 -> vector<8x128xf32>
    %c7 = arith.constant 7 : index
    %c0_79 = arith.constant 0 : index
    %c0_80 = arith.constant 0 : index
    %c0_81 = arith.constant 0 : index
    %131 = vector.load %arg1[%c7, %c0_79, %c0_80, %c0_81] : memref<9x3x8x128xf32, #tpu.memory_space<vmem>>, vector<1x1x8x128xf32>
    %132 = vector.shape_cast %131 : vector<1x1x8x128xf32> to vector<8x128xf32>
    %133 = vector.extract_strided_slice %130 {offsets = [0, 0], sizes = [1, 128], strides = [1, 1]} : vector<8x128xf32> to vector<1x128xf32>
    %134 = vector.broadcast %133 : vector<1x128xf32> to vector<8x128xf32>
    %135 = arith.mulf %132, %134 : vector<8x128xf32>
    %136 = arith.addf %91, %135 : vector<8x128xf32>
    %c7_82 = arith.constant 7 : index
    %c1_83 = arith.constant 1 : index
    %c0_84 = arith.constant 0 : index
    %c0_85 = arith.constant 0 : index
    %137 = vector.load %arg1[%c7_82, %c1_83, %c0_84, %c0_85] : memref<9x3x8x128xf32, #tpu.memory_space<vmem>>, vector<1x1x8x128xf32>
    %138 = vector.shape_cast %137 : vector<1x1x8x128xf32> to vector<8x128xf32>
    %139 = vector.extract_strided_slice %130 {offsets = [1, 0], sizes = [1, 128], strides = [1, 1]} : vector<8x128xf32> to vector<1x128xf32>
    %140 = vector.broadcast %139 : vector<1x128xf32> to vector<8x128xf32>
    %141 = arith.mulf %138, %140 : vector<8x128xf32>
    %142 = arith.addf %136, %141 : vector<8x128xf32>
    %c7_86 = arith.constant 7 : index
    %c2_87 = arith.constant 2 : index
    %c0_88 = arith.constant 0 : index
    %c0_89 = arith.constant 0 : index
    %143 = vector.load %arg1[%c7_86, %c2_87, %c0_88, %c0_89] : memref<9x3x8x128xf32, #tpu.memory_space<vmem>>, vector<1x1x8x128xf32>
    %144 = vector.shape_cast %143 : vector<1x1x8x128xf32> to vector<8x128xf32>
    %145 = vector.extract_strided_slice %130 {offsets = [2, 0], sizes = [1, 128], strides = [1, 1]} : vector<8x128xf32> to vector<1x128xf32>
    %146 = vector.broadcast %145 : vector<1x128xf32> to vector<8x128xf32>
    %147 = arith.mulf %144, %146 : vector<8x128xf32>
    %148 = arith.addf %142, %147 : vector<8x128xf32>
    %c119_i32 = arith.constant 119 : i32
    %149 = tpu.dynamic_rotate %0 by %c119_i32 dim 1 : vector<8x128xf32>, i32 -> vector<8x128xf32>
    %c8 = arith.constant 8 : index
    %c0_90 = arith.constant 0 : index
    %c0_91 = arith.constant 0 : index
    %c0_92 = arith.constant 0 : index
    %150 = vector.load %arg1[%c8, %c0_90, %c0_91, %c0_92] : memref<9x3x8x128xf32, #tpu.memory_space<vmem>>, vector<1x1x8x128xf32>
    %151 = vector.shape_cast %150 : vector<1x1x8x128xf32> to vector<8x128xf32>
    %152 = vector.extract_strided_slice %149 {offsets = [0, 0], sizes = [1, 128], strides = [1, 1]} : vector<8x128xf32> to vector<1x128xf32>
    %153 = vector.broadcast %152 : vector<1x128xf32> to vector<8x128xf32>
    %154 = arith.mulf %151, %153 : vector<8x128xf32>
    %155 = arith.addf %110, %154 : vector<8x128xf32>
    %c8_93 = arith.constant 8 : index
    %c1_94 = arith.constant 1 : index
    %c0_95 = arith.constant 0 : index
    %c0_96 = arith.constant 0 : index
    %156 = vector.load %arg1[%c8_93, %c1_94, %c0_95, %c0_96] : memref<9x3x8x128xf32, #tpu.memory_space<vmem>>, vector<1x1x8x128xf32>
    %157 = vector.shape_cast %156 : vector<1x1x8x128xf32> to vector<8x128xf32>
    %158 = vector.extract_strided_slice %149 {offsets = [1, 0], sizes = [1, 128], strides = [1, 1]} : vector<8x128xf32> to vector<1x128xf32>
    %159 = vector.broadcast %158 : vector<1x128xf32> to vector<8x128xf32>
    %160 = arith.mulf %157, %159 : vector<8x128xf32>
    %161 = arith.addf %155, %160 : vector<8x128xf32>
    %c8_97 = arith.constant 8 : index
    %c2_98 = arith.constant 2 : index
    %c0_99 = arith.constant 0 : index
    %c0_100 = arith.constant 0 : index
    %162 = vector.load %arg1[%c8_97, %c2_98, %c0_99, %c0_100] : memref<9x3x8x128xf32, #tpu.memory_space<vmem>>, vector<1x1x8x128xf32>
    %163 = vector.shape_cast %162 : vector<1x1x8x128xf32> to vector<8x128xf32>
    %164 = vector.extract_strided_slice %149 {offsets = [2, 0], sizes = [1, 128], strides = [1, 1]} : vector<8x128xf32> to vector<1x128xf32>
    %165 = vector.broadcast %164 : vector<1x128xf32> to vector<8x128xf32>
    %166 = arith.mulf %163, %165 : vector<8x128xf32>
    %167 = arith.addf %161, %166 : vector<8x128xf32>
    %168 = arith.addf %129, %148 : vector<8x128xf32>
    %169 = arith.addf %168, %167 : vector<8x128xf32>
    %c0_101 = arith.constant 0 : index
    %c0_102 = arith.constant 0 : index
    %170 = vector.load %arg2[%c0_101, %c0_102] : memref<152x128xf32, #tpu.memory_space<vmem>>, vector<8x128xf32>
    %171 = arith.addf %169, %170 : vector<8x128xf32>
    %c8_103 = arith.constant 8 : index
    %c0_104 = arith.constant 0 : index
    %172 = vector.load %arg2[%c8_103, %c0_104] : memref<152x128xf32, #tpu.memory_space<vmem>>, vector<8x128xf32>
    %c16 = arith.constant 16 : index
    %c0_105 = arith.constant 0 : index
    %173 = vector.load %arg2[%c16, %c0_105] : memref<152x128xf32, #tpu.memory_space<vmem>>, vector<8x128xf32>
    %cst = arith.constant dense<0.000000e+00> : vector<128xf32>
    %174 = vector.multi_reduction <add>, %171, %cst [0] : vector<8x128xf32> to vector<128xf32>
    %175 = vector.shape_cast %174 : vector<128xf32> to vector<1x128xf32>
    %cst_106 = arith.constant 8.000000e+00 : f32
    %176 = vector.broadcast %cst_106 : f32 to vector<1x128xf32>
    %177 = arith.divf %175, %176 : vector<1x128xf32>
    %178 = vector.broadcast %177 : vector<1x128xf32> to vector<8x128xf32>
    %179 = arith.subf %171, %178 : vector<8x128xf32>
    %180 = arith.mulf %179, %179 : vector<8x128xf32>
    %cst_107 = arith.constant dense<0.000000e+00> : vector<128xf32>
    %181 = vector.multi_reduction <add>, %180, %cst_107 [0] : vector<8x128xf32> to vector<128xf32>
    %182 = vector.shape_cast %181 : vector<128xf32> to vector<1x128xf32>
    %cst_108 = arith.constant 8.000000e+00 : f32
    %183 = vector.broadcast %cst_108 : f32 to vector<1x128xf32>
    %184 = arith.divf %182, %183 : vector<1x128xf32>
    %cst_109 = arith.constant 9.99999974E-6 : f32
    %185 = vector.broadcast %cst_109 : f32 to vector<1x128xf32>
    %186 = arith.addf %184, %185 : vector<1x128xf32>
    %187 = math.rsqrt %186 : vector<1x128xf32>
    %188 = vector.broadcast %187 : vector<1x128xf32> to vector<8x128xf32>
    %189 = arith.mulf %179, %188 : vector<8x128xf32>
    %190 = arith.mulf %189, %172 : vector<8x128xf32>
    %191 = arith.addf %190, %173 : vector<8x128xf32>
    %c27_i32 = arith.constant 27 : i32
    %192 = tpu.dynamic_rotate %191 by %c27_i32 dim 1 : vector<8x128xf32>, i32 -> vector<8x128xf32>
    %c0_110 = arith.constant 0 : index
    %c0_111 = arith.constant 0 : index
    %c0_112 = arith.constant 0 : index
    %193 = vector.load %arg3[%c0_110, %c0_111, %c0_112] : memref<49x8x128xf32, #tpu.memory_space<vmem>>, vector<1x8x128xf32>
    %194 = vector.shape_cast %193 : vector<1x8x128xf32> to vector<8x128xf32>
    %195 = arith.mulf %194, %192 : vector<8x128xf32>
    %c26_i32 = arith.constant 26 : i32
    %196 = tpu.dynamic_rotate %191 by %c26_i32 dim 1 : vector<8x128xf32>, i32 -> vector<8x128xf32>
    %c1_113 = arith.constant 1 : index
    %c0_114 = arith.constant 0 : index
    %c0_115 = arith.constant 0 : index
    %197 = vector.load %arg3[%c1_113, %c0_114, %c0_115] : memref<49x8x128xf32, #tpu.memory_space<vmem>>, vector<1x8x128xf32>
    %198 = vector.shape_cast %197 : vector<1x8x128xf32> to vector<8x128xf32>
    %199 = arith.mulf %198, %196 : vector<8x128xf32>
    %c25_i32 = arith.constant 25 : i32
    %200 = tpu.dynamic_rotate %191 by %c25_i32 dim 1 : vector<8x128xf32>, i32 -> vector<8x128xf32>
    %c2_116 = arith.constant 2 : index
    %c0_117 = arith.constant 0 : index
    %c0_118 = arith.constant 0 : index
    %201 = vector.load %arg3[%c2_116, %c0_117, %c0_118] : memref<49x8x128xf32, #tpu.memory_space<vmem>>, vector<1x8x128xf32>
    %202 = vector.shape_cast %201 : vector<1x8x128xf32> to vector<8x128xf32>
    %203 = arith.mulf %202, %200 : vector<8x128xf32>
    %c24_i32 = arith.constant 24 : i32
    %204 = tpu.dynamic_rotate %191 by %c24_i32 dim 1 : vector<8x128xf32>, i32 -> vector<8x128xf32>
    %c3_119 = arith.constant 3 : index
    %c0_120 = arith.constant 0 : index
    %c0_121 = arith.constant 0 : index
    %205 = vector.load %arg3[%c3_119, %c0_120, %c0_121] : memref<49x8x128xf32, #tpu.memory_space<vmem>>, vector<1x8x128xf32>
    %206 = vector.shape_cast %205 : vector<1x8x128xf32> to vector<8x128xf32>
    %207 = arith.mulf %206, %204 : vector<8x128xf32>
    %c23_i32 = arith.constant 23 : i32
    %208 = tpu.dynamic_rotate %191 by %c23_i32 dim 1 : vector<8x128xf32>, i32 -> vector<8x128xf32>
    %c4_122 = arith.constant 4 : index
    %c0_123 = arith.constant 0 : index
    %c0_124 = arith.constant 0 : index
    %209 = vector.load %arg3[%c4_122, %c0_123, %c0_124] : memref<49x8x128xf32, #tpu.memory_space<vmem>>, vector<1x8x128xf32>
    %210 = vector.shape_cast %209 : vector<1x8x128xf32> to vector<8x128xf32>
    %211 = arith.mulf %210, %208 : vector<8x128xf32>
    %212 = arith.addf %195, %211 : vector<8x128xf32>
    %c22_i32 = arith.constant 22 : i32
    %213 = tpu.dynamic_rotate %191 by %c22_i32 dim 1 : vector<8x128xf32>, i32 -> vector<8x128xf32>
    %c5_125 = arith.constant 5 : index
    %c0_126 = arith.constant 0 : index
    %c0_127 = arith.constant 0 : index
    %214 = vector.load %arg3[%c5_125, %c0_126, %c0_127] : memref<49x8x128xf32, #tpu.memory_space<vmem>>, vector<1x8x128xf32>
    %215 = vector.shape_cast %214 : vector<1x8x128xf32> to vector<8x128xf32>
    %216 = arith.mulf %215, %213 : vector<8x128xf32>
    %217 = arith.addf %199, %216 : vector<8x128xf32>
    %c21_i32 = arith.constant 21 : i32
    %218 = tpu.dynamic_rotate %191 by %c21_i32 dim 1 : vector<8x128xf32>, i32 -> vector<8x128xf32>
    %c6_128 = arith.constant 6 : index
    %c0_129 = arith.constant 0 : index
    %c0_130 = arith.constant 0 : index
    %219 = vector.load %arg3[%c6_128, %c0_129, %c0_130] : memref<49x8x128xf32, #tpu.memory_space<vmem>>, vector<1x8x128xf32>
    %220 = vector.shape_cast %219 : vector<1x8x128xf32> to vector<8x128xf32>
    %221 = arith.mulf %220, %218 : vector<8x128xf32>
    %222 = arith.addf %203, %221 : vector<8x128xf32>
    %c19_i32 = arith.constant 19 : i32
    %223 = tpu.dynamic_rotate %191 by %c19_i32 dim 1 : vector<8x128xf32>, i32 -> vector<8x128xf32>
    %c7_131 = arith.constant 7 : index
    %c0_132 = arith.constant 0 : index
    %c0_133 = arith.constant 0 : index
    %224 = vector.load %arg3[%c7_131, %c0_132, %c0_133] : memref<49x8x128xf32, #tpu.memory_space<vmem>>, vector<1x8x128xf32>
    %225 = vector.shape_cast %224 : vector<1x8x128xf32> to vector<8x128xf32>
    %226 = arith.mulf %225, %223 : vector<8x128xf32>
    %227 = arith.addf %207, %226 : vector<8x128xf32>
    %c18_i32 = arith.constant 18 : i32
    %228 = tpu.dynamic_rotate %191 by %c18_i32 dim 1 : vector<8x128xf32>, i32 -> vector<8x128xf32>
    %c8_134 = arith.constant 8 : index
    %c0_135 = arith.constant 0 : index
    %c0_136 = arith.constant 0 : index
    %229 = vector.load %arg3[%c8_134, %c0_135, %c0_136] : memref<49x8x128xf32, #tpu.memory_space<vmem>>, vector<1x8x128xf32>
    %230 = vector.shape_cast %229 : vector<1x8x128xf32> to vector<8x128xf32>
    %231 = arith.mulf %230, %228 : vector<8x128xf32>
    %232 = arith.addf %212, %231 : vector<8x128xf32>
    %c17_i32 = arith.constant 17 : i32
    %233 = tpu.dynamic_rotate %191 by %c17_i32 dim 1 : vector<8x128xf32>, i32 -> vector<8x128xf32>
    %c9 = arith.constant 9 : index
    %c0_137 = arith.constant 0 : index
    %c0_138 = arith.constant 0 : index
    %234 = vector.load %arg3[%c9, %c0_137, %c0_138] : memref<49x8x128xf32, #tpu.memory_space<vmem>>, vector<1x8x128xf32>
    %235 = vector.shape_cast %234 : vector<1x8x128xf32> to vector<8x128xf32>
    %236 = arith.mulf %235, %233 : vector<8x128xf32>
    %237 = arith.addf %217, %236 : vector<8x128xf32>
    %c16_i32 = arith.constant 16 : i32
    %238 = tpu.dynamic_rotate %191 by %c16_i32 dim 1 : vector<8x128xf32>, i32 -> vector<8x128xf32>
    %c10 = arith.constant 10 : index
    %c0_139 = arith.constant 0 : index
    %c0_140 = arith.constant 0 : index
    %239 = vector.load %arg3[%c10, %c0_139, %c0_140] : memref<49x8x128xf32, #tpu.memory_space<vmem>>, vector<1x8x128xf32>
    %240 = vector.shape_cast %239 : vector<1x8x128xf32> to vector<8x128xf32>
    %241 = arith.mulf %240, %238 : vector<8x128xf32>
    %242 = arith.addf %222, %241 : vector<8x128xf32>
    %c15_i32 = arith.constant 15 : i32
    %243 = tpu.dynamic_rotate %191 by %c15_i32 dim 1 : vector<8x128xf32>, i32 -> vector<8x128xf32>
    %c11 = arith.constant 11 : index
    %c0_141 = arith.constant 0 : index
    %c0_142 = arith.constant 0 : index
    %244 = vector.load %arg3[%c11, %c0_141, %c0_142] : memref<49x8x128xf32, #tpu.memory_space<vmem>>, vector<1x8x128xf32>
    %245 = vector.shape_cast %244 : vector<1x8x128xf32> to vector<8x128xf32>
    %246 = arith.mulf %245, %243 : vector<8x128xf32>
    %247 = arith.addf %227, %246 : vector<8x128xf32>
    %c14_i32 = arith.constant 14 : i32
    %248 = tpu.dynamic_rotate %191 by %c14_i32 dim 1 : vector<8x128xf32>, i32 -> vector<8x128xf32>
    %c12 = arith.constant 12 : index
    %c0_143 = arith.constant 0 : index
    %c0_144 = arith.constant 0 : index
    %249 = vector.load %arg3[%c12, %c0_143, %c0_144] : memref<49x8x128xf32, #tpu.memory_space<vmem>>, vector<1x8x128xf32>
    %250 = vector.shape_cast %249 : vector<1x8x128xf32> to vector<8x128xf32>
    %251 = arith.mulf %250, %248 : vector<8x128xf32>
    %252 = arith.addf %232, %251 : vector<8x128xf32>
    %c13_i32 = arith.constant 13 : i32
    %253 = tpu.dynamic_rotate %191 by %c13_i32 dim 1 : vector<8x128xf32>, i32 -> vector<8x128xf32>
    %c13 = arith.constant 13 : index
    %c0_145 = arith.constant 0 : index
    %c0_146 = arith.constant 0 : index
    %254 = vector.load %arg3[%c13, %c0_145, %c0_146] : memref<49x8x128xf32, #tpu.memory_space<vmem>>, vector<1x8x128xf32>
    %255 = vector.shape_cast %254 : vector<1x8x128xf32> to vector<8x128xf32>
    %256 = arith.mulf %255, %253 : vector<8x128xf32>
    %257 = arith.addf %237, %256 : vector<8x128xf32>
    %c11_i32 = arith.constant 11 : i32
    %258 = tpu.dynamic_rotate %191 by %c11_i32 dim 1 : vector<8x128xf32>, i32 -> vector<8x128xf32>
    %c14 = arith.constant 14 : index
    %c0_147 = arith.constant 0 : index
    %c0_148 = arith.constant 0 : index
    %259 = vector.load %arg3[%c14, %c0_147, %c0_148] : memref<49x8x128xf32, #tpu.memory_space<vmem>>, vector<1x8x128xf32>
    %260 = vector.shape_cast %259 : vector<1x8x128xf32> to vector<8x128xf32>
    %261 = arith.mulf %260, %258 : vector<8x128xf32>
    %262 = arith.addf %242, %261 : vector<8x128xf32>
    %c10_i32 = arith.constant 10 : i32
    %263 = tpu.dynamic_rotate %191 by %c10_i32 dim 1 : vector<8x128xf32>, i32 -> vector<8x128xf32>
    %c15 = arith.constant 15 : index
    %c0_149 = arith.constant 0 : index
    %c0_150 = arith.constant 0 : index
    %264 = vector.load %arg3[%c15, %c0_149, %c0_150] : memref<49x8x128xf32, #tpu.memory_space<vmem>>, vector<1x8x128xf32>
    %265 = vector.shape_cast %264 : vector<1x8x128xf32> to vector<8x128xf32>
    %266 = arith.mulf %265, %263 : vector<8x128xf32>
    %267 = arith.addf %247, %266 : vector<8x128xf32>
    %c9_i32_151 = arith.constant 9 : i32
    %268 = tpu.dynamic_rotate %191 by %c9_i32_151 dim 1 : vector<8x128xf32>, i32 -> vector<8x128xf32>
    %c16_152 = arith.constant 16 : index
    %c0_153 = arith.constant 0 : index
    %c0_154 = arith.constant 0 : index
    %269 = vector.load %arg3[%c16_152, %c0_153, %c0_154] : memref<49x8x128xf32, #tpu.memory_space<vmem>>, vector<1x8x128xf32>
    %270 = vector.shape_cast %269 : vector<1x8x128xf32> to vector<8x128xf32>
    %271 = arith.mulf %270, %268 : vector<8x128xf32>
    %272 = arith.addf %252, %271 : vector<8x128xf32>
    %c8_i32_155 = arith.constant 8 : i32
    %273 = tpu.dynamic_rotate %191 by %c8_i32_155 dim 1 : vector<8x128xf32>, i32 -> vector<8x128xf32>
    %c17 = arith.constant 17 : index
    %c0_156 = arith.constant 0 : index
    %c0_157 = arith.constant 0 : index
    %274 = vector.load %arg3[%c17, %c0_156, %c0_157] : memref<49x8x128xf32, #tpu.memory_space<vmem>>, vector<1x8x128xf32>
    %275 = vector.shape_cast %274 : vector<1x8x128xf32> to vector<8x128xf32>
    %276 = arith.mulf %275, %273 : vector<8x128xf32>
    %277 = arith.addf %257, %276 : vector<8x128xf32>
    %c7_i32_158 = arith.constant 7 : i32
    %278 = tpu.dynamic_rotate %191 by %c7_i32_158 dim 1 : vector<8x128xf32>, i32 -> vector<8x128xf32>
    %c18 = arith.constant 18 : index
    %c0_159 = arith.constant 0 : index
    %c0_160 = arith.constant 0 : index
    %279 = vector.load %arg3[%c18, %c0_159, %c0_160] : memref<49x8x128xf32, #tpu.memory_space<vmem>>, vector<1x8x128xf32>
    %280 = vector.shape_cast %279 : vector<1x8x128xf32> to vector<8x128xf32>
    %281 = arith.mulf %280, %278 : vector<8x128xf32>
    %282 = arith.addf %262, %281 : vector<8x128xf32>
    %c6_i32 = arith.constant 6 : i32
    %283 = tpu.dynamic_rotate %191 by %c6_i32 dim 1 : vector<8x128xf32>, i32 -> vector<8x128xf32>
    %c19 = arith.constant 19 : index
    %c0_161 = arith.constant 0 : index
    %c0_162 = arith.constant 0 : index
    %284 = vector.load %arg3[%c19, %c0_161, %c0_162] : memref<49x8x128xf32, #tpu.memory_space<vmem>>, vector<1x8x128xf32>
    %285 = vector.shape_cast %284 : vector<1x8x128xf32> to vector<8x128xf32>
    %286 = arith.mulf %285, %283 : vector<8x128xf32>
    %287 = arith.addf %267, %286 : vector<8x128xf32>
    %c5_i32 = arith.constant 5 : i32
    %288 = tpu.dynamic_rotate %191 by %c5_i32 dim 1 : vector<8x128xf32>, i32 -> vector<8x128xf32>
    %c20 = arith.constant 20 : index
    %c0_163 = arith.constant 0 : index
    %c0_164 = arith.constant 0 : index
    %289 = vector.load %arg3[%c20, %c0_163, %c0_164] : memref<49x8x128xf32, #tpu.memory_space<vmem>>, vector<1x8x128xf32>
    %290 = vector.shape_cast %289 : vector<1x8x128xf32> to vector<8x128xf32>
    %291 = arith.mulf %290, %288 : vector<8x128xf32>
    %292 = arith.addf %272, %291 : vector<8x128xf32>
    %c3_i32 = arith.constant 3 : i32
    %293 = tpu.dynamic_rotate %191 by %c3_i32 dim 1 : vector<8x128xf32>, i32 -> vector<8x128xf32>
    %c21 = arith.constant 21 : index
    %c0_165 = arith.constant 0 : index
    %c0_166 = arith.constant 0 : index
    %294 = vector.load %arg3[%c21, %c0_165, %c0_166] : memref<49x8x128xf32, #tpu.memory_space<vmem>>, vector<1x8x128xf32>
    %295 = vector.shape_cast %294 : vector<1x8x128xf32> to vector<8x128xf32>
    %296 = arith.mulf %295, %293 : vector<8x128xf32>
    %297 = arith.addf %277, %296 : vector<8x128xf32>
    %c2_i32 = arith.constant 2 : i32
    %298 = tpu.dynamic_rotate %191 by %c2_i32 dim 1 : vector<8x128xf32>, i32 -> vector<8x128xf32>
    %c22 = arith.constant 22 : index
    %c0_167 = arith.constant 0 : index
    %c0_168 = arith.constant 0 : index
    %299 = vector.load %arg3[%c22, %c0_167, %c0_168] : memref<49x8x128xf32, #tpu.memory_space<vmem>>, vector<1x8x128xf32>
    %300 = vector.shape_cast %299 : vector<1x8x128xf32> to vector<8x128xf32>
    %301 = arith.mulf %300, %298 : vector<8x128xf32>
    %302 = arith.addf %282, %301 : vector<8x128xf32>
    %c1_i32_169 = arith.constant 1 : i32
    %303 = tpu.dynamic_rotate %191 by %c1_i32_169 dim 1 : vector<8x128xf32>, i32 -> vector<8x128xf32>
    %c23 = arith.constant 23 : index
    %c0_170 = arith.constant 0 : index
    %c0_171 = arith.constant 0 : index
    %304 = vector.load %arg3[%c23, %c0_170, %c0_171] : memref<49x8x128xf32, #tpu.memory_space<vmem>>, vector<1x8x128xf32>
    %305 = vector.shape_cast %304 : vector<1x8x128xf32> to vector<8x128xf32>
    %306 = arith.mulf %305, %303 : vector<8x128xf32>
    %307 = arith.addf %287, %306 : vector<8x128xf32>
    %c24 = arith.constant 24 : index
    %c0_172 = arith.constant 0 : index
    %c0_173 = arith.constant 0 : index
    %308 = vector.load %arg3[%c24, %c0_172, %c0_173] : memref<49x8x128xf32, #tpu.memory_space<vmem>>, vector<1x8x128xf32>
    %309 = vector.shape_cast %308 : vector<1x8x128xf32> to vector<8x128xf32>
    %310 = arith.mulf %309, %191 : vector<8x128xf32>
    %311 = arith.addf %292, %310 : vector<8x128xf32>
    %c127_i32_174 = arith.constant 127 : i32
    %312 = tpu.dynamic_rotate %191 by %c127_i32_174 dim 1 : vector<8x128xf32>, i32 -> vector<8x128xf32>
    %c25 = arith.constant 25 : index
    %c0_175 = arith.constant 0 : index
    %c0_176 = arith.constant 0 : index
    %313 = vector.load %arg3[%c25, %c0_175, %c0_176] : memref<49x8x128xf32, #tpu.memory_space<vmem>>, vector<1x8x128xf32>
    %314 = vector.shape_cast %313 : vector<1x8x128xf32> to vector<8x128xf32>
    %315 = arith.mulf %314, %312 : vector<8x128xf32>
    %316 = arith.addf %297, %315 : vector<8x128xf32>
    %c126_i32 = arith.constant 126 : i32
    %317 = tpu.dynamic_rotate %191 by %c126_i32 dim 1 : vector<8x128xf32>, i32 -> vector<8x128xf32>
    %c26 = arith.constant 26 : index
    %c0_177 = arith.constant 0 : index
    %c0_178 = arith.constant 0 : index
    %318 = vector.load %arg3[%c26, %c0_177, %c0_178] : memref<49x8x128xf32, #tpu.memory_space<vmem>>, vector<1x8x128xf32>
    %319 = vector.shape_cast %318 : vector<1x8x128xf32> to vector<8x128xf32>
    %320 = arith.mulf %319, %317 : vector<8x128xf32>
    %321 = arith.addf %302, %320 : vector<8x128xf32>
    %c125_i32 = arith.constant 125 : i32
    %322 = tpu.dynamic_rotate %191 by %c125_i32 dim 1 : vector<8x128xf32>, i32 -> vector<8x128xf32>
    %c27 = arith.constant 27 : index
    %c0_179 = arith.constant 0 : index
    %c0_180 = arith.constant 0 : index
    %323 = vector.load %arg3[%c27, %c0_179, %c0_180] : memref<49x8x128xf32, #tpu.memory_space<vmem>>, vector<1x8x128xf32>
    %324 = vector.shape_cast %323 : vector<1x8x128xf32> to vector<8x128xf32>
    %325 = arith.mulf %324, %322 : vector<8x128xf32>
    %326 = arith.addf %307, %325 : vector<8x128xf32>
    %c123_i32 = arith.constant 123 : i32
    %327 = tpu.dynamic_rotate %191 by %c123_i32 dim 1 : vector<8x128xf32>, i32 -> vector<8x128xf32>
    %c28 = arith.constant 28 : index
    %c0_181 = arith.constant 0 : index
    %c0_182 = arith.constant 0 : index
    %328 = vector.load %arg3[%c28, %c0_181, %c0_182] : memref<49x8x128xf32, #tpu.memory_space<vmem>>, vector<1x8x128xf32>
    %329 = vector.shape_cast %328 : vector<1x8x128xf32> to vector<8x128xf32>
    %330 = arith.mulf %329, %327 : vector<8x128xf32>
    %331 = arith.addf %311, %330 : vector<8x128xf32>
    %c122_i32 = arith.constant 122 : i32
    %332 = tpu.dynamic_rotate %191 by %c122_i32 dim 1 : vector<8x128xf32>, i32 -> vector<8x128xf32>
    %c29 = arith.constant 29 : index
    %c0_183 = arith.constant 0 : index
    %c0_184 = arith.constant 0 : index
    %333 = vector.load %arg3[%c29, %c0_183, %c0_184] : memref<49x8x128xf32, #tpu.memory_space<vmem>>, vector<1x8x128xf32>
    %334 = vector.shape_cast %333 : vector<1x8x128xf32> to vector<8x128xf32>
    %335 = arith.mulf %334, %332 : vector<8x128xf32>
    %336 = arith.addf %316, %335 : vector<8x128xf32>
    %c121_i32_185 = arith.constant 121 : i32
    %337 = tpu.dynamic_rotate %191 by %c121_i32_185 dim 1 : vector<8x128xf32>, i32 -> vector<8x128xf32>
    %c30 = arith.constant 30 : index
    %c0_186 = arith.constant 0 : index
    %c0_187 = arith.constant 0 : index
    %338 = vector.load %arg3[%c30, %c0_186, %c0_187] : memref<49x8x128xf32, #tpu.memory_space<vmem>>, vector<1x8x128xf32>
    %339 = vector.shape_cast %338 : vector<1x8x128xf32> to vector<8x128xf32>
    %340 = arith.mulf %339, %337 : vector<8x128xf32>
    %341 = arith.addf %321, %340 : vector<8x128xf32>
    %c120_i32_188 = arith.constant 120 : i32
    %342 = tpu.dynamic_rotate %191 by %c120_i32_188 dim 1 : vector<8x128xf32>, i32 -> vector<8x128xf32>
    %c31 = arith.constant 31 : index
    %c0_189 = arith.constant 0 : index
    %c0_190 = arith.constant 0 : index
    %343 = vector.load %arg3[%c31, %c0_189, %c0_190] : memref<49x8x128xf32, #tpu.memory_space<vmem>>, vector<1x8x128xf32>
    %344 = vector.shape_cast %343 : vector<1x8x128xf32> to vector<8x128xf32>
    %345 = arith.mulf %344, %342 : vector<8x128xf32>
    %346 = arith.addf %326, %345 : vector<8x128xf32>
    %c119_i32_191 = arith.constant 119 : i32
    %347 = tpu.dynamic_rotate %191 by %c119_i32_191 dim 1 : vector<8x128xf32>, i32 -> vector<8x128xf32>
    %c32 = arith.constant 32 : index
    %c0_192 = arith.constant 0 : index
    %c0_193 = arith.constant 0 : index
    %348 = vector.load %arg3[%c32, %c0_192, %c0_193] : memref<49x8x128xf32, #tpu.memory_space<vmem>>, vector<1x8x128xf32>
    %349 = vector.shape_cast %348 : vector<1x8x128xf32> to vector<8x128xf32>
    %350 = arith.mulf %349, %347 : vector<8x128xf32>
    %351 = arith.addf %331, %350 : vector<8x128xf32>
    %c118_i32 = arith.constant 118 : i32
    %352 = tpu.dynamic_rotate %191 by %c118_i32 dim 1 : vector<8x128xf32>, i32 -> vector<8x128xf32>
    %c33 = arith.constant 33 : index
    %c0_194 = arith.constant 0 : index
    %c0_195 = arith.constant 0 : index
    %353 = vector.load %arg3[%c33, %c0_194, %c0_195] : memref<49x8x128xf32, #tpu.memory_space<vmem>>, vector<1x8x128xf32>
    %354 = vector.shape_cast %353 : vector<1x8x128xf32> to vector<8x128xf32>
    %355 = arith.mulf %354, %352 : vector<8x128xf32>
    %356 = arith.addf %336, %355 : vector<8x128xf32>
    %c117_i32 = arith.constant 117 : i32
    %357 = tpu.dynamic_rotate %191 by %c117_i32 dim 1 : vector<8x128xf32>, i32 -> vector<8x128xf32>
    %c34 = arith.constant 34 : index
    %c0_196 = arith.constant 0 : index
    %c0_197 = arith.constant 0 : index
    %358 = vector.load %arg3[%c34, %c0_196, %c0_197] : memref<49x8x128xf32, #tpu.memory_space<vmem>>, vector<1x8x128xf32>
    %359 = vector.shape_cast %358 : vector<1x8x128xf32> to vector<8x128xf32>
    %360 = arith.mulf %359, %357 : vector<8x128xf32>
    %361 = arith.addf %341, %360 : vector<8x128xf32>
    %c115_i32 = arith.constant 115 : i32
    %362 = tpu.dynamic_rotate %191 by %c115_i32 dim 1 : vector<8x128xf32>, i32 -> vector<8x128xf32>
    %c35 = arith.constant 35 : index
    %c0_198 = arith.constant 0 : index
    %c0_199 = arith.constant 0 : index
    %363 = vector.load %arg3[%c35, %c0_198, %c0_199] : memref<49x8x128xf32, #tpu.memory_space<vmem>>, vector<1x8x128xf32>
    %364 = vector.shape_cast %363 : vector<1x8x128xf32> to vector<8x128xf32>
    %365 = arith.mulf %364, %362 : vector<8x128xf32>
    %366 = arith.addf %346, %365 : vector<8x128xf32>
    %c114_i32 = arith.constant 114 : i32
    %367 = tpu.dynamic_rotate %191 by %c114_i32 dim 1 : vector<8x128xf32>, i32 -> vector<8x128xf32>
    %c36 = arith.constant 36 : index
    %c0_200 = arith.constant 0 : index
    %c0_201 = arith.constant 0 : index
    %368 = vector.load %arg3[%c36, %c0_200, %c0_201] : memref<49x8x128xf32, #tpu.memory_space<vmem>>, vector<1x8x128xf32>
    %369 = vector.shape_cast %368 : vector<1x8x128xf32> to vector<8x128xf32>
    %370 = arith.mulf %369, %367 : vector<8x128xf32>
    %371 = arith.addf %351, %370 : vector<8x128xf32>
    %c113_i32 = arith.constant 113 : i32
    %372 = tpu.dynamic_rotate %191 by %c113_i32 dim 1 : vector<8x128xf32>, i32 -> vector<8x128xf32>
    %c37 = arith.constant 37 : index
    %c0_202 = arith.constant 0 : index
    %c0_203 = arith.constant 0 : index
    %373 = vector.load %arg3[%c37, %c0_202, %c0_203] : memref<49x8x128xf32, #tpu.memory_space<vmem>>, vector<1x8x128xf32>
    %374 = vector.shape_cast %373 : vector<1x8x128xf32> to vector<8x128xf32>
    %375 = arith.mulf %374, %372 : vector<8x128xf32>
    %376 = arith.addf %356, %375 : vector<8x128xf32>
    %c112_i32 = arith.constant 112 : i32
    %377 = tpu.dynamic_rotate %191 by %c112_i32 dim 1 : vector<8x128xf32>, i32 -> vector<8x128xf32>
    %c38 = arith.constant 38 : index
    %c0_204 = arith.constant 0 : index
    %c0_205 = arith.constant 0 : index
    %378 = vector.load %arg3[%c38, %c0_204, %c0_205] : memref<49x8x128xf32, #tpu.memory_space<vmem>>, vector<1x8x128xf32>
    %379 = vector.shape_cast %378 : vector<1x8x128xf32> to vector<8x128xf32>
    %380 = arith.mulf %379, %377 : vector<8x128xf32>
    %381 = arith.addf %361, %380 : vector<8x128xf32>
    %c111_i32 = arith.constant 111 : i32
    %382 = tpu.dynamic_rotate %191 by %c111_i32 dim 1 : vector<8x128xf32>, i32 -> vector<8x128xf32>
    %c39 = arith.constant 39 : index
    %c0_206 = arith.constant 0 : index
    %c0_207 = arith.constant 0 : index
    %383 = vector.load %arg3[%c39, %c0_206, %c0_207] : memref<49x8x128xf32, #tpu.memory_space<vmem>>, vector<1x8x128xf32>
    %384 = vector.shape_cast %383 : vector<1x8x128xf32> to vector<8x128xf32>
    %385 = arith.mulf %384, %382 : vector<8x128xf32>
    %386 = arith.addf %366, %385 : vector<8x128xf32>
    %c110_i32 = arith.constant 110 : i32
    %387 = tpu.dynamic_rotate %191 by %c110_i32 dim 1 : vector<8x128xf32>, i32 -> vector<8x128xf32>
    %c40 = arith.constant 40 : index
    %c0_208 = arith.constant 0 : index
    %c0_209 = arith.constant 0 : index
    %388 = vector.load %arg3[%c40, %c0_208, %c0_209] : memref<49x8x128xf32, #tpu.memory_space<vmem>>, vector<1x8x128xf32>
    %389 = vector.shape_cast %388 : vector<1x8x128xf32> to vector<8x128xf32>
    %390 = arith.mulf %389, %387 : vector<8x128xf32>
    %391 = arith.addf %371, %390 : vector<8x128xf32>
    %c109_i32 = arith.constant 109 : i32
    %392 = tpu.dynamic_rotate %191 by %c109_i32 dim 1 : vector<8x128xf32>, i32 -> vector<8x128xf32>
    %c41 = arith.constant 41 : index
    %c0_210 = arith.constant 0 : index
    %c0_211 = arith.constant 0 : index
    %393 = vector.load %arg3[%c41, %c0_210, %c0_211] : memref<49x8x128xf32, #tpu.memory_space<vmem>>, vector<1x8x128xf32>
    %394 = vector.shape_cast %393 : vector<1x8x128xf32> to vector<8x128xf32>
    %395 = arith.mulf %394, %392 : vector<8x128xf32>
    %396 = arith.addf %376, %395 : vector<8x128xf32>
    %c107_i32 = arith.constant 107 : i32
    %397 = tpu.dynamic_rotate %191 by %c107_i32 dim 1 : vector<8x128xf32>, i32 -> vector<8x128xf32>
    %c42 = arith.constant 42 : index
    %c0_212 = arith.constant 0 : index
    %c0_213 = arith.constant 0 : index
    %398 = vector.load %arg3[%c42, %c0_212, %c0_213] : memref<49x8x128xf32, #tpu.memory_space<vmem>>, vector<1x8x128xf32>
    %399 = vector.shape_cast %398 : vector<1x8x128xf32> to vector<8x128xf32>
    %400 = arith.mulf %399, %397 : vector<8x128xf32>
    %401 = arith.addf %381, %400 : vector<8x128xf32>
    %c106_i32 = arith.constant 106 : i32
    %402 = tpu.dynamic_rotate %191 by %c106_i32 dim 1 : vector<8x128xf32>, i32 -> vector<8x128xf32>
    %c43 = arith.constant 43 : index
    %c0_214 = arith.constant 0 : index
    %c0_215 = arith.constant 0 : index
    %403 = vector.load %arg3[%c43, %c0_214, %c0_215] : memref<49x8x128xf32, #tpu.memory_space<vmem>>, vector<1x8x128xf32>
    %404 = vector.shape_cast %403 : vector<1x8x128xf32> to vector<8x128xf32>
    %405 = arith.mulf %404, %402 : vector<8x128xf32>
    %406 = arith.addf %386, %405 : vector<8x128xf32>
    %c105_i32 = arith.constant 105 : i32
    %407 = tpu.dynamic_rotate %191 by %c105_i32 dim 1 : vector<8x128xf32>, i32 -> vector<8x128xf32>
    %c44 = arith.constant 44 : index
    %c0_216 = arith.constant 0 : index
    %c0_217 = arith.constant 0 : index
    %408 = vector.load %arg3[%c44, %c0_216, %c0_217] : memref<49x8x128xf32, #tpu.memory_space<vmem>>, vector<1x8x128xf32>
    %409 = vector.shape_cast %408 : vector<1x8x128xf32> to vector<8x128xf32>
    %410 = arith.mulf %409, %407 : vector<8x128xf32>
    %411 = arith.addf %391, %410 : vector<8x128xf32>
    %c104_i32 = arith.constant 104 : i32
    %412 = tpu.dynamic_rotate %191 by %c104_i32 dim 1 : vector<8x128xf32>, i32 -> vector<8x128xf32>
    %c45 = arith.constant 45 : index
    %c0_218 = arith.constant 0 : index
    %c0_219 = arith.constant 0 : index
    %413 = vector.load %arg3[%c45, %c0_218, %c0_219] : memref<49x8x128xf32, #tpu.memory_space<vmem>>, vector<1x8x128xf32>
    %414 = vector.shape_cast %413 : vector<1x8x128xf32> to vector<8x128xf32>
    %415 = arith.mulf %414, %412 : vector<8x128xf32>
    %416 = arith.addf %396, %415 : vector<8x128xf32>
    %c103_i32 = arith.constant 103 : i32
    %417 = tpu.dynamic_rotate %191 by %c103_i32 dim 1 : vector<8x128xf32>, i32 -> vector<8x128xf32>
    %c46 = arith.constant 46 : index
    %c0_220 = arith.constant 0 : index
    %c0_221 = arith.constant 0 : index
    %418 = vector.load %arg3[%c46, %c0_220, %c0_221] : memref<49x8x128xf32, #tpu.memory_space<vmem>>, vector<1x8x128xf32>
    %419 = vector.shape_cast %418 : vector<1x8x128xf32> to vector<8x128xf32>
    %420 = arith.mulf %419, %417 : vector<8x128xf32>
    %421 = arith.addf %401, %420 : vector<8x128xf32>
    %c102_i32 = arith.constant 102 : i32
    %422 = tpu.dynamic_rotate %191 by %c102_i32 dim 1 : vector<8x128xf32>, i32 -> vector<8x128xf32>
    %c47 = arith.constant 47 : index
    %c0_222 = arith.constant 0 : index
    %c0_223 = arith.constant 0 : index
    %423 = vector.load %arg3[%c47, %c0_222, %c0_223] : memref<49x8x128xf32, #tpu.memory_space<vmem>>, vector<1x8x128xf32>
    %424 = vector.shape_cast %423 : vector<1x8x128xf32> to vector<8x128xf32>
    %425 = arith.mulf %424, %422 : vector<8x128xf32>
    %426 = arith.addf %406, %425 : vector<8x128xf32>
    %c101_i32 = arith.constant 101 : i32
    %427 = tpu.dynamic_rotate %191 by %c101_i32 dim 1 : vector<8x128xf32>, i32 -> vector<8x128xf32>
    %c48 = arith.constant 48 : index
    %c0_224 = arith.constant 0 : index
    %c0_225 = arith.constant 0 : index
    %428 = vector.load %arg3[%c48, %c0_224, %c0_225] : memref<49x8x128xf32, #tpu.memory_space<vmem>>, vector<1x8x128xf32>
    %429 = vector.shape_cast %428 : vector<1x8x128xf32> to vector<8x128xf32>
    %430 = arith.mulf %429, %427 : vector<8x128xf32>
    %431 = arith.addf %411, %430 : vector<8x128xf32>
    %432 = arith.addf %431, %416 : vector<8x128xf32>
    %433 = arith.addf %421, %426 : vector<8x128xf32>
    %434 = arith.addf %432, %433 : vector<8x128xf32>
    %c24_226 = arith.constant 24 : index
    %c0_227 = arith.constant 0 : index
    %435 = vector.load %arg2[%c24_226, %c0_227] : memref<152x128xf32, #tpu.memory_space<vmem>>, vector<8x128xf32>
    %436 = arith.mulf %434, %435 : vector<8x128xf32>
    %c32_228 = arith.constant 32 : index
    %c0_229 = arith.constant 0 : index
    %437 = vector.load %arg2[%c32_228, %c0_229] : memref<152x128xf32, #tpu.memory_space<vmem>>, vector<8x128xf32>
    %438 = arith.addf %436, %437 : vector<8x128xf32>
    %c0_230 = arith.constant 0 : index
    %c0_231 = arith.constant 0 : index
    %c0_232 = arith.constant 0 : index
    %439 = vector.load %arg4[%c0_230, %c0_231, %c0_232] : memref<8x16x128xf32, #tpu.memory_space<vmem>>, vector<1x16x128xf32>
    %440 = vector.shape_cast %439 : vector<1x16x128xf32> to vector<16x128xf32>
    %441 = vector.extract_strided_slice %438 {offsets = [0, 0], sizes = [1, 128], strides = [1, 1]} : vector<8x128xf32> to vector<1x128xf32>
    %442 = vector.broadcast %441 : vector<1x128xf32> to vector<16x128xf32>
    %443 = arith.mulf %440, %442 : vector<16x128xf32>
    %c1_233 = arith.constant 1 : index
    %c0_234 = arith.constant 0 : index
    %c0_235 = arith.constant 0 : index
    %444 = vector.load %arg4[%c1_233, %c0_234, %c0_235] : memref<8x16x128xf32, #tpu.memory_space<vmem>>, vector<1x16x128xf32>
    %445 = vector.shape_cast %444 : vector<1x16x128xf32> to vector<16x128xf32>
    %446 = vector.extract_strided_slice %438 {offsets = [1, 0], sizes = [1, 128], strides = [1, 1]} : vector<8x128xf32> to vector<1x128xf32>
    %447 = vector.broadcast %446 : vector<1x128xf32> to vector<16x128xf32>
    %448 = arith.mulf %445, %447 : vector<16x128xf32>
    %c2_236 = arith.constant 2 : index
    %c0_237 = arith.constant 0 : index
    %c0_238 = arith.constant 0 : index
    %449 = vector.load %arg4[%c2_236, %c0_237, %c0_238] : memref<8x16x128xf32, #tpu.memory_space<vmem>>, vector<1x16x128xf32>
    %450 = vector.shape_cast %449 : vector<1x16x128xf32> to vector<16x128xf32>
    %451 = vector.extract_strided_slice %438 {offsets = [2, 0], sizes = [1, 128], strides = [1, 1]} : vector<8x128xf32> to vector<1x128xf32>
    %452 = vector.broadcast %451 : vector<1x128xf32> to vector<16x128xf32>
    %453 = arith.mulf %450, %452 : vector<16x128xf32>
    %454 = arith.addf %443, %453 : vector<16x128xf32>
    %c3_239 = arith.constant 3 : index
    %c0_240 = arith.constant 0 : index
    %c0_241 = arith.constant 0 : index
    %455 = vector.load %arg4[%c3_239, %c0_240, %c0_241] : memref<8x16x128xf32, #tpu.memory_space<vmem>>, vector<1x16x128xf32>
    %456 = vector.shape_cast %455 : vector<1x16x128xf32> to vector<16x128xf32>
    %457 = vector.extract_strided_slice %438 {offsets = [3, 0], sizes = [1, 128], strides = [1, 1]} : vector<8x128xf32> to vector<1x128xf32>
    %458 = vector.broadcast %457 : vector<1x128xf32> to vector<16x128xf32>
    %459 = arith.mulf %456, %458 : vector<16x128xf32>
    %460 = arith.addf %448, %459 : vector<16x128xf32>
    %c4_242 = arith.constant 4 : index
    %c0_243 = arith.constant 0 : index
    %c0_244 = arith.constant 0 : index
    %461 = vector.load %arg4[%c4_242, %c0_243, %c0_244] : memref<8x16x128xf32, #tpu.memory_space<vmem>>, vector<1x16x128xf32>
    %462 = vector.shape_cast %461 : vector<1x16x128xf32> to vector<16x128xf32>
    %463 = vector.extract_strided_slice %438 {offsets = [4, 0], sizes = [1, 128], strides = [1, 1]} : vector<8x128xf32> to vector<1x128xf32>
    %464 = vector.broadcast %463 : vector<1x128xf32> to vector<16x128xf32>
    %465 = arith.mulf %462, %464 : vector<16x128xf32>
    %466 = arith.addf %454, %465 : vector<16x128xf32>
    %c5_245 = arith.constant 5 : index
    %c0_246 = arith.constant 0 : index
    %c0_247 = arith.constant 0 : index
    %467 = vector.load %arg4[%c5_245, %c0_246, %c0_247] : memref<8x16x128xf32, #tpu.memory_space<vmem>>, vector<1x16x128xf32>
    %468 = vector.shape_cast %467 : vector<1x16x128xf32> to vector<16x128xf32>
    %469 = vector.extract_strided_slice %438 {offsets = [5, 0], sizes = [1, 128], strides = [1, 1]} : vector<8x128xf32> to vector<1x128xf32>
    %470 = vector.broadcast %469 : vector<1x128xf32> to vector<16x128xf32>
    %471 = arith.mulf %468, %470 : vector<16x128xf32>
    %472 = arith.addf %460, %471 : vector<16x128xf32>
    %c6_248 = arith.constant 6 : index
    %c0_249 = arith.constant 0 : index
    %c0_250 = arith.constant 0 : index
    %473 = vector.load %arg4[%c6_248, %c0_249, %c0_250] : memref<8x16x128xf32, #tpu.memory_space<vmem>>, vector<1x16x128xf32>
    %474 = vector.shape_cast %473 : vector<1x16x128xf32> to vector<16x128xf32>
    %475 = vector.extract_strided_slice %438 {offsets = [6, 0], sizes = [1, 128], strides = [1, 1]} : vector<8x128xf32> to vector<1x128xf32>
    %476 = vector.broadcast %475 : vector<1x128xf32> to vector<16x128xf32>
    %477 = arith.mulf %474, %476 : vector<16x128xf32>
    %478 = arith.addf %466, %477 : vector<16x128xf32>
    %c7_251 = arith.constant 7 : index
    %c0_252 = arith.constant 0 : index
    %c0_253 = arith.constant 0 : index
    %479 = vector.load %arg4[%c7_251, %c0_252, %c0_253] : memref<8x16x128xf32, #tpu.memory_space<vmem>>, vector<1x16x128xf32>
    %480 = vector.shape_cast %479 : vector<1x16x128xf32> to vector<16x128xf32>
    %481 = vector.extract_strided_slice %438 {offsets = [7, 0], sizes = [1, 128], strides = [1, 1]} : vector<8x128xf32> to vector<1x128xf32>
    %482 = vector.broadcast %481 : vector<1x128xf32> to vector<16x128xf32>
    %483 = arith.mulf %480, %482 : vector<16x128xf32>
    %484 = arith.addf %472, %483 : vector<16x128xf32>
    %485 = arith.addf %478, %484 : vector<16x128xf32>
    %c40_254 = arith.constant 40 : index
    %c0_255 = arith.constant 0 : index
    %486 = vector.load %arg2[%c40_254, %c0_255] : memref<152x128xf32, #tpu.memory_space<vmem>>, vector<16x128xf32>
    %487 = arith.addf %485, %486 : vector<16x128xf32>
    %cst_256 = arith.constant 5.000000e-01 : f32
    %488 = vector.broadcast %cst_256 : f32 to vector<16x128xf32>
    %489 = arith.mulf %488, %487 : vector<16x128xf32>
    %cst_257 = arith.constant 4.471500e-02 : f32
    %490 = vector.broadcast %cst_257 : f32 to vector<16x128xf32>
    %491 = arith.mulf %490, %487 : vector<16x128xf32>
    %492 = arith.mulf %491, %487 : vector<16x128xf32>
    %493 = arith.mulf %492, %487 : vector<16x128xf32>
    %494 = arith.addf %487, %493 : vector<16x128xf32>
    %cst_258 = arith.constant 0.797884583 : f32
    %495 = vector.broadcast %cst_258 : f32 to vector<16x128xf32>
    %496 = arith.mulf %495, %494 : vector<16x128xf32>
    %497 = math.tanh %496 : vector<16x128xf32>
    %cst_259 = arith.constant 1.000000e+00 : f32
    %498 = vector.broadcast %cst_259 : f32 to vector<16x128xf32>
    %499 = arith.addf %498, %497 : vector<16x128xf32>
    %500 = arith.mulf %489, %499 : vector<16x128xf32>
    %c0_260 = arith.constant 0 : index
    %c0_261 = arith.constant 0 : index
    %c0_262 = arith.constant 0 : index
    %501 = vector.load %arg5[%c0_260, %c0_261, %c0_262] : memref<16x8x128xf32, #tpu.memory_space<vmem>>, vector<1x8x128xf32>
    %502 = vector.shape_cast %501 : vector<1x8x128xf32> to vector<8x128xf32>
    %503 = vector.extract_strided_slice %500 {offsets = [0, 0], sizes = [1, 128], strides = [1, 1]} : vector<16x128xf32> to vector<1x128xf32>
    %504 = vector.broadcast %503 : vector<1x128xf32> to vector<8x128xf32>
    %505 = arith.mulf %502, %504 : vector<8x128xf32>
    %c1_263 = arith.constant 1 : index
    %c0_264 = arith.constant 0 : index
    %c0_265 = arith.constant 0 : index
    %506 = vector.load %arg5[%c1_263, %c0_264, %c0_265] : memref<16x8x128xf32, #tpu.memory_space<vmem>>, vector<1x8x128xf32>
    %507 = vector.shape_cast %506 : vector<1x8x128xf32> to vector<8x128xf32>
    %508 = vector.extract_strided_slice %500 {offsets = [1, 0], sizes = [1, 128], strides = [1, 1]} : vector<16x128xf32> to vector<1x128xf32>
    %509 = vector.broadcast %508 : vector<1x128xf32> to vector<8x128xf32>
    %510 = arith.mulf %507, %509 : vector<8x128xf32>
    %c2_266 = arith.constant 2 : index
    %c0_267 = arith.constant 0 : index
    %c0_268 = arith.constant 0 : index
    %511 = vector.load %arg5[%c2_266, %c0_267, %c0_268] : memref<16x8x128xf32, #tpu.memory_space<vmem>>, vector<1x8x128xf32>
    %512 = vector.shape_cast %511 : vector<1x8x128xf32> to vector<8x128xf32>
    %513 = vector.extract_strided_slice %500 {offsets = [2, 0], sizes = [1, 128], strides = [1, 1]} : vector<16x128xf32> to vector<1x128xf32>
    %514 = vector.broadcast %513 : vector<1x128xf32> to vector<8x128xf32>
    %515 = arith.mulf %512, %514 : vector<8x128xf32>
    %516 = arith.addf %505, %515 : vector<8x128xf32>
    %c3_269 = arith.constant 3 : index
    %c0_270 = arith.constant 0 : index
    %c0_271 = arith.constant 0 : index
    %517 = vector.load %arg5[%c3_269, %c0_270, %c0_271] : memref<16x8x128xf32, #tpu.memory_space<vmem>>, vector<1x8x128xf32>
    %518 = vector.shape_cast %517 : vector<1x8x128xf32> to vector<8x128xf32>
    %519 = vector.extract_strided_slice %500 {offsets = [3, 0], sizes = [1, 128], strides = [1, 1]} : vector<16x128xf32> to vector<1x128xf32>
    %520 = vector.broadcast %519 : vector<1x128xf32> to vector<8x128xf32>
    %521 = arith.mulf %518, %520 : vector<8x128xf32>
    %522 = arith.addf %510, %521 : vector<8x128xf32>
    %c4_272 = arith.constant 4 : index
    %c0_273 = arith.constant 0 : index
    %c0_274 = arith.constant 0 : index
    %523 = vector.load %arg5[%c4_272, %c0_273, %c0_274] : memref<16x8x128xf32, #tpu.memory_space<vmem>>, vector<1x8x128xf32>
    %524 = vector.shape_cast %523 : vector<1x8x128xf32> to vector<8x128xf32>
    %525 = vector.extract_strided_slice %500 {offsets = [4, 0], sizes = [1, 128], strides = [1, 1]} : vector<16x128xf32> to vector<1x128xf32>
    %526 = vector.broadcast %525 : vector<1x128xf32> to vector<8x128xf32>
    %527 = arith.mulf %524, %526 : vector<8x128xf32>
    %528 = arith.addf %516, %527 : vector<8x128xf32>
    %c5_275 = arith.constant 5 : index
    %c0_276 = arith.constant 0 : index
    %c0_277 = arith.constant 0 : index
    %529 = vector.load %arg5[%c5_275, %c0_276, %c0_277] : memref<16x8x128xf32, #tpu.memory_space<vmem>>, vector<1x8x128xf32>
    %530 = vector.shape_cast %529 : vector<1x8x128xf32> to vector<8x128xf32>
    %531 = vector.extract_strided_slice %500 {offsets = [5, 0], sizes = [1, 128], strides = [1, 1]} : vector<16x128xf32> to vector<1x128xf32>
    %532 = vector.broadcast %531 : vector<1x128xf32> to vector<8x128xf32>
    %533 = arith.mulf %530, %532 : vector<8x128xf32>
    %534 = arith.addf %522, %533 : vector<8x128xf32>
    %c6_278 = arith.constant 6 : index
    %c0_279 = arith.constant 0 : index
    %c0_280 = arith.constant 0 : index
    %535 = vector.load %arg5[%c6_278, %c0_279, %c0_280] : memref<16x8x128xf32, #tpu.memory_space<vmem>>, vector<1x8x128xf32>
    %536 = vector.shape_cast %535 : vector<1x8x128xf32> to vector<8x128xf32>
    %537 = vector.extract_strided_slice %500 {offsets = [6, 0], sizes = [1, 128], strides = [1, 1]} : vector<16x128xf32> to vector<1x128xf32>
    %538 = vector.broadcast %537 : vector<1x128xf32> to vector<8x128xf32>
    %539 = arith.mulf %536, %538 : vector<8x128xf32>
    %540 = arith.addf %528, %539 : vector<8x128xf32>
    %c7_281 = arith.constant 7 : index
    %c0_282 = arith.constant 0 : index
    %c0_283 = arith.constant 0 : index
    %541 = vector.load %arg5[%c7_281, %c0_282, %c0_283] : memref<16x8x128xf32, #tpu.memory_space<vmem>>, vector<1x8x128xf32>
    %542 = vector.shape_cast %541 : vector<1x8x128xf32> to vector<8x128xf32>
    %543 = vector.extract_strided_slice %500 {offsets = [7, 0], sizes = [1, 128], strides = [1, 1]} : vector<16x128xf32> to vector<1x128xf32>
    %544 = vector.broadcast %543 : vector<1x128xf32> to vector<8x128xf32>
    %545 = arith.mulf %542, %544 : vector<8x128xf32>
    %546 = arith.addf %534, %545 : vector<8x128xf32>
    %c8_284 = arith.constant 8 : index
    %c0_285 = arith.constant 0 : index
    %c0_286 = arith.constant 0 : index
    %547 = vector.load %arg5[%c8_284, %c0_285, %c0_286] : memref<16x8x128xf32, #tpu.memory_space<vmem>>, vector<1x8x128xf32>
    %548 = vector.shape_cast %547 : vector<1x8x128xf32> to vector<8x128xf32>
    %549 = vector.extract_strided_slice %500 {offsets = [8, 0], sizes = [1, 128], strides = [1, 1]} : vector<16x128xf32> to vector<1x128xf32>
    %550 = vector.broadcast %549 : vector<1x128xf32> to vector<8x128xf32>
    %551 = arith.mulf %548, %550 : vector<8x128xf32>
    %552 = arith.addf %540, %551 : vector<8x128xf32>
    %c9_287 = arith.constant 9 : index
    %c0_288 = arith.constant 0 : index
    %c0_289 = arith.constant 0 : index
    %553 = vector.load %arg5[%c9_287, %c0_288, %c0_289] : memref<16x8x128xf32, #tpu.memory_space<vmem>>, vector<1x8x128xf32>
    %554 = vector.shape_cast %553 : vector<1x8x128xf32> to vector<8x128xf32>
    %555 = vector.extract_strided_slice %500 {offsets = [9, 0], sizes = [1, 128], strides = [1, 1]} : vector<16x128xf32> to vector<1x128xf32>
    %556 = vector.broadcast %555 : vector<1x128xf32> to vector<8x128xf32>
    %557 = arith.mulf %554, %556 : vector<8x128xf32>
    %558 = arith.addf %546, %557 : vector<8x128xf32>
    %c10_290 = arith.constant 10 : index
    %c0_291 = arith.constant 0 : index
    %c0_292 = arith.constant 0 : index
    %559 = vector.load %arg5[%c10_290, %c0_291, %c0_292] : memref<16x8x128xf32, #tpu.memory_space<vmem>>, vector<1x8x128xf32>
    %560 = vector.shape_cast %559 : vector<1x8x128xf32> to vector<8x128xf32>
    %561 = vector.extract_strided_slice %500 {offsets = [10, 0], sizes = [1, 128], strides = [1, 1]} : vector<16x128xf32> to vector<1x128xf32>
    %562 = vector.broadcast %561 : vector<1x128xf32> to vector<8x128xf32>
    %563 = arith.mulf %560, %562 : vector<8x128xf32>
    %564 = arith.addf %552, %563 : vector<8x128xf32>
    %c11_293 = arith.constant 11 : index
    %c0_294 = arith.constant 0 : index
    %c0_295 = arith.constant 0 : index
    %565 = vector.load %arg5[%c11_293, %c0_294, %c0_295] : memref<16x8x128xf32, #tpu.memory_space<vmem>>, vector<1x8x128xf32>
    %566 = vector.shape_cast %565 : vector<1x8x128xf32> to vector<8x128xf32>
    %567 = vector.extract_strided_slice %500 {offsets = [11, 0], sizes = [1, 128], strides = [1, 1]} : vector<16x128xf32> to vector<1x128xf32>
    %568 = vector.broadcast %567 : vector<1x128xf32> to vector<8x128xf32>
    %569 = arith.mulf %566, %568 : vector<8x128xf32>
    %570 = arith.addf %558, %569 : vector<8x128xf32>
    %c12_296 = arith.constant 12 : index
    %c0_297 = arith.constant 0 : index
    %c0_298 = arith.constant 0 : index
    %571 = vector.load %arg5[%c12_296, %c0_297, %c0_298] : memref<16x8x128xf32, #tpu.memory_space<vmem>>, vector<1x8x128xf32>
    %572 = vector.shape_cast %571 : vector<1x8x128xf32> to vector<8x128xf32>
    %573 = vector.extract_strided_slice %500 {offsets = [12, 0], sizes = [1, 128], strides = [1, 1]} : vector<16x128xf32> to vector<1x128xf32>
    %574 = vector.broadcast %573 : vector<1x128xf32> to vector<8x128xf32>
    %575 = arith.mulf %572, %574 : vector<8x128xf32>
    %576 = arith.addf %564, %575 : vector<8x128xf32>
    %c13_299 = arith.constant 13 : index
    %c0_300 = arith.constant 0 : index
    %c0_301 = arith.constant 0 : index
    %577 = vector.load %arg5[%c13_299, %c0_300, %c0_301] : memref<16x8x128xf32, #tpu.memory_space<vmem>>, vector<1x8x128xf32>
    %578 = vector.shape_cast %577 : vector<1x8x128xf32> to vector<8x128xf32>
    %579 = vector.extract_strided_slice %500 {offsets = [13, 0], sizes = [1, 128], strides = [1, 1]} : vector<16x128xf32> to vector<1x128xf32>
    %580 = vector.broadcast %579 : vector<1x128xf32> to vector<8x128xf32>
    %581 = arith.mulf %578, %580 : vector<8x128xf32>
    %582 = arith.addf %570, %581 : vector<8x128xf32>
    %c14_302 = arith.constant 14 : index
    %c0_303 = arith.constant 0 : index
    %c0_304 = arith.constant 0 : index
    %583 = vector.load %arg5[%c14_302, %c0_303, %c0_304] : memref<16x8x128xf32, #tpu.memory_space<vmem>>, vector<1x8x128xf32>
    %584 = vector.shape_cast %583 : vector<1x8x128xf32> to vector<8x128xf32>
    %585 = vector.extract_strided_slice %500 {offsets = [14, 0], sizes = [1, 128], strides = [1, 1]} : vector<16x128xf32> to vector<1x128xf32>
    %586 = vector.broadcast %585 : vector<1x128xf32> to vector<8x128xf32>
    %587 = arith.mulf %584, %586 : vector<8x128xf32>
    %588 = arith.addf %576, %587 : vector<8x128xf32>
    %c15_305 = arith.constant 15 : index
    %c0_306 = arith.constant 0 : index
    %c0_307 = arith.constant 0 : index
    %589 = vector.load %arg5[%c15_305, %c0_306, %c0_307] : memref<16x8x128xf32, #tpu.memory_space<vmem>>, vector<1x8x128xf32>
    %590 = vector.shape_cast %589 : vector<1x8x128xf32> to vector<8x128xf32>
    %591 = vector.extract_strided_slice %500 {offsets = [15, 0], sizes = [1, 128], strides = [1, 1]} : vector<16x128xf32> to vector<1x128xf32>
    %592 = vector.broadcast %591 : vector<1x128xf32> to vector<8x128xf32>
    %593 = arith.mulf %590, %592 : vector<8x128xf32>
    %594 = arith.addf %582, %593 : vector<8x128xf32>
    %595 = arith.addf %588, %594 : vector<8x128xf32>
    %c56 = arith.constant 56 : index
    %c0_308 = arith.constant 0 : index
    %596 = vector.load %arg2[%c56, %c0_308] : memref<152x128xf32, #tpu.memory_space<vmem>>, vector<8x128xf32>
    %597 = arith.addf %595, %596 : vector<8x128xf32>
    %c64 = arith.constant 64 : index
    %c0_309 = arith.constant 0 : index
    %598 = vector.load %arg2[%c64, %c0_309] : memref<152x128xf32, #tpu.memory_space<vmem>>, vector<8x128xf32>
    %599 = arith.mulf %598, %597 : vector<8x128xf32>
    %600 = arith.addf %599, %191 : vector<8x128xf32>
    %c72 = arith.constant 72 : index
    %c0_310 = arith.constant 0 : index
    %601 = vector.load %arg2[%c72, %c0_310] : memref<152x128xf32, #tpu.memory_space<vmem>>, vector<8x128xf32>
    %c80 = arith.constant 80 : index
    %c0_311 = arith.constant 0 : index
    %602 = vector.load %arg2[%c80, %c0_311] : memref<152x128xf32, #tpu.memory_space<vmem>>, vector<8x128xf32>
    %cst_312 = arith.constant dense<0.000000e+00> : vector<128xf32>
    %603 = vector.multi_reduction <add>, %600, %cst_312 [0] : vector<8x128xf32> to vector<128xf32>
    %604 = vector.shape_cast %603 : vector<128xf32> to vector<1x128xf32>
    %cst_313 = arith.constant 8.000000e+00 : f32
    %605 = vector.broadcast %cst_313 : f32 to vector<1x128xf32>
    %606 = arith.divf %604, %605 : vector<1x128xf32>
    %607 = vector.broadcast %606 : vector<1x128xf32> to vector<8x128xf32>
    %608 = arith.subf %600, %607 : vector<8x128xf32>
    %609 = arith.mulf %608, %608 : vector<8x128xf32>
    %cst_314 = arith.constant dense<0.000000e+00> : vector<128xf32>
    %610 = vector.multi_reduction <add>, %609, %cst_314 [0] : vector<8x128xf32> to vector<128xf32>
    %611 = vector.shape_cast %610 : vector<128xf32> to vector<1x128xf32>
    %cst_315 = arith.constant 8.000000e+00 : f32
    %612 = vector.broadcast %cst_315 : f32 to vector<1x128xf32>
    %613 = arith.divf %611, %612 : vector<1x128xf32>
    %cst_316 = arith.constant 9.99999974E-6 : f32
    %614 = vector.broadcast %cst_316 : f32 to vector<1x128xf32>
    %615 = arith.addf %613, %614 : vector<1x128xf32>
    %616 = math.rsqrt %615 : vector<1x128xf32>
    %617 = vector.broadcast %616 : vector<1x128xf32> to vector<8x128xf32>
    %618 = arith.mulf %608, %617 : vector<8x128xf32>
    %619 = arith.mulf %618, %601 : vector<8x128xf32>
    %620 = arith.addf %619, %602 : vector<8x128xf32>
    %c0_317 = arith.constant 0 : index
    %c0_318 = arith.constant 0 : index
    %c0_319 = arith.constant 0 : index
    %621 = vector.load %arg6[%c0_317, %c0_318, %c0_319] : memref<8x8x128xf32, #tpu.memory_space<vmem>>, vector<1x8x128xf32>
    %622 = vector.shape_cast %621 : vector<1x8x128xf32> to vector<8x128xf32>
    %623 = vector.extract_strided_slice %620 {offsets = [0, 0], sizes = [1, 128], strides = [1, 1]} : vector<8x128xf32> to vector<1x128xf32>
    %624 = vector.broadcast %623 : vector<1x128xf32> to vector<8x128xf32>
    %625 = arith.mulf %622, %624 : vector<8x128xf32>
    %c1_320 = arith.constant 1 : index
    %c0_321 = arith.constant 0 : index
    %c0_322 = arith.constant 0 : index
    %626 = vector.load %arg6[%c1_320, %c0_321, %c0_322] : memref<8x8x128xf32, #tpu.memory_space<vmem>>, vector<1x8x128xf32>
    %627 = vector.shape_cast %626 : vector<1x8x128xf32> to vector<8x128xf32>
    %628 = vector.extract_strided_slice %620 {offsets = [1, 0], sizes = [1, 128], strides = [1, 1]} : vector<8x128xf32> to vector<1x128xf32>
    %629 = vector.broadcast %628 : vector<1x128xf32> to vector<8x128xf32>
    %630 = arith.mulf %627, %629 : vector<8x128xf32>
    %c2_323 = arith.constant 2 : index
    %c0_324 = arith.constant 0 : index
    %c0_325 = arith.constant 0 : index
    %631 = vector.load %arg6[%c2_323, %c0_324, %c0_325] : memref<8x8x128xf32, #tpu.memory_space<vmem>>, vector<1x8x128xf32>
    %632 = vector.shape_cast %631 : vector<1x8x128xf32> to vector<8x128xf32>
    %633 = vector.extract_strided_slice %620 {offsets = [2, 0], sizes = [1, 128], strides = [1, 1]} : vector<8x128xf32> to vector<1x128xf32>
    %634 = vector.broadcast %633 : vector<1x128xf32> to vector<8x128xf32>
    %635 = arith.mulf %632, %634 : vector<8x128xf32>
    %636 = arith.addf %625, %635 : vector<8x128xf32>
    %c3_326 = arith.constant 3 : index
    %c0_327 = arith.constant 0 : index
    %c0_328 = arith.constant 0 : index
    %637 = vector.load %arg6[%c3_326, %c0_327, %c0_328] : memref<8x8x128xf32, #tpu.memory_space<vmem>>, vector<1x8x128xf32>
    %638 = vector.shape_cast %637 : vector<1x8x128xf32> to vector<8x128xf32>
    %639 = vector.extract_strided_slice %620 {offsets = [3, 0], sizes = [1, 128], strides = [1, 1]} : vector<8x128xf32> to vector<1x128xf32>
    %640 = vector.broadcast %639 : vector<1x128xf32> to vector<8x128xf32>
    %641 = arith.mulf %638, %640 : vector<8x128xf32>
    %642 = arith.addf %630, %641 : vector<8x128xf32>
    %c4_329 = arith.constant 4 : index
    %c0_330 = arith.constant 0 : index
    %c0_331 = arith.constant 0 : index
    %643 = vector.load %arg6[%c4_329, %c0_330, %c0_331] : memref<8x8x128xf32, #tpu.memory_space<vmem>>, vector<1x8x128xf32>
    %644 = vector.shape_cast %643 : vector<1x8x128xf32> to vector<8x128xf32>
    %645 = vector.extract_strided_slice %620 {offsets = [4, 0], sizes = [1, 128], strides = [1, 1]} : vector<8x128xf32> to vector<1x128xf32>
    %646 = vector.broadcast %645 : vector<1x128xf32> to vector<8x128xf32>
    %647 = arith.mulf %644, %646 : vector<8x128xf32>
    %648 = arith.addf %636, %647 : vector<8x128xf32>
    %c5_332 = arith.constant 5 : index
    %c0_333 = arith.constant 0 : index
    %c0_334 = arith.constant 0 : index
    %649 = vector.load %arg6[%c5_332, %c0_333, %c0_334] : memref<8x8x128xf32, #tpu.memory_space<vmem>>, vector<1x8x128xf32>
    %650 = vector.shape_cast %649 : vector<1x8x128xf32> to vector<8x128xf32>
    %651 = vector.extract_strided_slice %620 {offsets = [5, 0], sizes = [1, 128], strides = [1, 1]} : vector<8x128xf32> to vector<1x128xf32>
    %652 = vector.broadcast %651 : vector<1x128xf32> to vector<8x128xf32>
    %653 = arith.mulf %650, %652 : vector<8x128xf32>
    %654 = arith.addf %642, %653 : vector<8x128xf32>
    %c6_335 = arith.constant 6 : index
    %c0_336 = arith.constant 0 : index
    %c0_337 = arith.constant 0 : index
    %655 = vector.load %arg6[%c6_335, %c0_336, %c0_337] : memref<8x8x128xf32, #tpu.memory_space<vmem>>, vector<1x8x128xf32>
    %656 = vector.shape_cast %655 : vector<1x8x128xf32> to vector<8x128xf32>
    %657 = vector.extract_strided_slice %620 {offsets = [6, 0], sizes = [1, 128], strides = [1, 1]} : vector<8x128xf32> to vector<1x128xf32>
    %658 = vector.broadcast %657 : vector<1x128xf32> to vector<8x128xf32>
    %659 = arith.mulf %656, %658 : vector<8x128xf32>
    %660 = arith.addf %648, %659 : vector<8x128xf32>
    %c7_338 = arith.constant 7 : index
    %c0_339 = arith.constant 0 : index
    %c0_340 = arith.constant 0 : index
    %661 = vector.load %arg6[%c7_338, %c0_339, %c0_340] : memref<8x8x128xf32, #tpu.memory_space<vmem>>, vector<1x8x128xf32>
    %662 = vector.shape_cast %661 : vector<1x8x128xf32> to vector<8x128xf32>
    %663 = vector.extract_strided_slice %620 {offsets = [7, 0], sizes = [1, 128], strides = [1, 1]} : vector<8x128xf32> to vector<1x128xf32>
    %664 = vector.broadcast %663 : vector<1x128xf32> to vector<8x128xf32>
    %665 = arith.mulf %662, %664 : vector<8x128xf32>
    %666 = arith.addf %654, %665 : vector<8x128xf32>
    %667 = arith.addf %660, %666 : vector<8x128xf32>
    %c27_i32_341 = arith.constant 27 : i32
    %668 = tpu.dynamic_rotate %667 by %c27_i32_341 dim 1 : vector<8x128xf32>, i32 -> vector<8x128xf32>
    %c0_342 = arith.constant 0 : index
    %c0_343 = arith.constant 0 : index
    %c0_344 = arith.constant 0 : index
    %669 = vector.load %arg7[%c0_342, %c0_343, %c0_344] : memref<49x8x128xf32, #tpu.memory_space<vmem>>, vector<1x8x128xf32>
    %670 = vector.shape_cast %669 : vector<1x8x128xf32> to vector<8x128xf32>
    %671 = arith.mulf %670, %668 : vector<8x128xf32>
    %c26_i32_345 = arith.constant 26 : i32
    %672 = tpu.dynamic_rotate %667 by %c26_i32_345 dim 1 : vector<8x128xf32>, i32 -> vector<8x128xf32>
    %c1_346 = arith.constant 1 : index
    %c0_347 = arith.constant 0 : index
    %c0_348 = arith.constant 0 : index
    %673 = vector.load %arg7[%c1_346, %c0_347, %c0_348] : memref<49x8x128xf32, #tpu.memory_space<vmem>>, vector<1x8x128xf32>
    %674 = vector.shape_cast %673 : vector<1x8x128xf32> to vector<8x128xf32>
    %675 = arith.mulf %674, %672 : vector<8x128xf32>
    %c25_i32_349 = arith.constant 25 : i32
    %676 = tpu.dynamic_rotate %667 by %c25_i32_349 dim 1 : vector<8x128xf32>, i32 -> vector<8x128xf32>
    %c2_350 = arith.constant 2 : index
    %c0_351 = arith.constant 0 : index
    %c0_352 = arith.constant 0 : index
    %677 = vector.load %arg7[%c2_350, %c0_351, %c0_352] : memref<49x8x128xf32, #tpu.memory_space<vmem>>, vector<1x8x128xf32>
    %678 = vector.shape_cast %677 : vector<1x8x128xf32> to vector<8x128xf32>
    %679 = arith.mulf %678, %676 : vector<8x128xf32>
    %c24_i32_353 = arith.constant 24 : i32
    %680 = tpu.dynamic_rotate %667 by %c24_i32_353 dim 1 : vector<8x128xf32>, i32 -> vector<8x128xf32>
    %c3_354 = arith.constant 3 : index
    %c0_355 = arith.constant 0 : index
    %c0_356 = arith.constant 0 : index
    %681 = vector.load %arg7[%c3_354, %c0_355, %c0_356] : memref<49x8x128xf32, #tpu.memory_space<vmem>>, vector<1x8x128xf32>
    %682 = vector.shape_cast %681 : vector<1x8x128xf32> to vector<8x128xf32>
    %683 = arith.mulf %682, %680 : vector<8x128xf32>
    %c23_i32_357 = arith.constant 23 : i32
    %684 = tpu.dynamic_rotate %667 by %c23_i32_357 dim 1 : vector<8x128xf32>, i32 -> vector<8x128xf32>
    %c4_358 = arith.constant 4 : index
    %c0_359 = arith.constant 0 : index
    %c0_360 = arith.constant 0 : index
    %685 = vector.load %arg7[%c4_358, %c0_359, %c0_360] : memref<49x8x128xf32, #tpu.memory_space<vmem>>, vector<1x8x128xf32>
    %686 = vector.shape_cast %685 : vector<1x8x128xf32> to vector<8x128xf32>
    %687 = arith.mulf %686, %684 : vector<8x128xf32>
    %688 = arith.addf %671, %687 : vector<8x128xf32>
    %c22_i32_361 = arith.constant 22 : i32
    %689 = tpu.dynamic_rotate %667 by %c22_i32_361 dim 1 : vector<8x128xf32>, i32 -> vector<8x128xf32>
    %c5_362 = arith.constant 5 : index
    %c0_363 = arith.constant 0 : index
    %c0_364 = arith.constant 0 : index
    %690 = vector.load %arg7[%c5_362, %c0_363, %c0_364] : memref<49x8x128xf32, #tpu.memory_space<vmem>>, vector<1x8x128xf32>
    %691 = vector.shape_cast %690 : vector<1x8x128xf32> to vector<8x128xf32>
    %692 = arith.mulf %691, %689 : vector<8x128xf32>
    %693 = arith.addf %675, %692 : vector<8x128xf32>
    %c21_i32_365 = arith.constant 21 : i32
    %694 = tpu.dynamic_rotate %667 by %c21_i32_365 dim 1 : vector<8x128xf32>, i32 -> vector<8x128xf32>
    %c6_366 = arith.constant 6 : index
    %c0_367 = arith.constant 0 : index
    %c0_368 = arith.constant 0 : index
    %695 = vector.load %arg7[%c6_366, %c0_367, %c0_368] : memref<49x8x128xf32, #tpu.memory_space<vmem>>, vector<1x8x128xf32>
    %696 = vector.shape_cast %695 : vector<1x8x128xf32> to vector<8x128xf32>
    %697 = arith.mulf %696, %694 : vector<8x128xf32>
    %698 = arith.addf %679, %697 : vector<8x128xf32>
    %c19_i32_369 = arith.constant 19 : i32
    %699 = tpu.dynamic_rotate %667 by %c19_i32_369 dim 1 : vector<8x128xf32>, i32 -> vector<8x128xf32>
    %c7_370 = arith.constant 7 : index
    %c0_371 = arith.constant 0 : index
    %c0_372 = arith.constant 0 : index
    %700 = vector.load %arg7[%c7_370, %c0_371, %c0_372] : memref<49x8x128xf32, #tpu.memory_space<vmem>>, vector<1x8x128xf32>
    %701 = vector.shape_cast %700 : vector<1x8x128xf32> to vector<8x128xf32>
    %702 = arith.mulf %701, %699 : vector<8x128xf32>
    %703 = arith.addf %683, %702 : vector<8x128xf32>
    %c18_i32_373 = arith.constant 18 : i32
    %704 = tpu.dynamic_rotate %667 by %c18_i32_373 dim 1 : vector<8x128xf32>, i32 -> vector<8x128xf32>
    %c8_374 = arith.constant 8 : index
    %c0_375 = arith.constant 0 : index
    %c0_376 = arith.constant 0 : index
    %705 = vector.load %arg7[%c8_374, %c0_375, %c0_376] : memref<49x8x128xf32, #tpu.memory_space<vmem>>, vector<1x8x128xf32>
    %706 = vector.shape_cast %705 : vector<1x8x128xf32> to vector<8x128xf32>
    %707 = arith.mulf %706, %704 : vector<8x128xf32>
    %708 = arith.addf %688, %707 : vector<8x128xf32>
    %c17_i32_377 = arith.constant 17 : i32
    %709 = tpu.dynamic_rotate %667 by %c17_i32_377 dim 1 : vector<8x128xf32>, i32 -> vector<8x128xf32>
    %c9_378 = arith.constant 9 : index
    %c0_379 = arith.constant 0 : index
    %c0_380 = arith.constant 0 : index
    %710 = vector.load %arg7[%c9_378, %c0_379, %c0_380] : memref<49x8x128xf32, #tpu.memory_space<vmem>>, vector<1x8x128xf32>
    %711 = vector.shape_cast %710 : vector<1x8x128xf32> to vector<8x128xf32>
    %712 = arith.mulf %711, %709 : vector<8x128xf32>
    %713 = arith.addf %693, %712 : vector<8x128xf32>
    %c16_i32_381 = arith.constant 16 : i32
    %714 = tpu.dynamic_rotate %667 by %c16_i32_381 dim 1 : vector<8x128xf32>, i32 -> vector<8x128xf32>
    %c10_382 = arith.constant 10 : index
    %c0_383 = arith.constant 0 : index
    %c0_384 = arith.constant 0 : index
    %715 = vector.load %arg7[%c10_382, %c0_383, %c0_384] : memref<49x8x128xf32, #tpu.memory_space<vmem>>, vector<1x8x128xf32>
    %716 = vector.shape_cast %715 : vector<1x8x128xf32> to vector<8x128xf32>
    %717 = arith.mulf %716, %714 : vector<8x128xf32>
    %718 = arith.addf %698, %717 : vector<8x128xf32>
    %c15_i32_385 = arith.constant 15 : i32
    %719 = tpu.dynamic_rotate %667 by %c15_i32_385 dim 1 : vector<8x128xf32>, i32 -> vector<8x128xf32>
    %c11_386 = arith.constant 11 : index
    %c0_387 = arith.constant 0 : index
    %c0_388 = arith.constant 0 : index
    %720 = vector.load %arg7[%c11_386, %c0_387, %c0_388] : memref<49x8x128xf32, #tpu.memory_space<vmem>>, vector<1x8x128xf32>
    %721 = vector.shape_cast %720 : vector<1x8x128xf32> to vector<8x128xf32>
    %722 = arith.mulf %721, %719 : vector<8x128xf32>
    %723 = arith.addf %703, %722 : vector<8x128xf32>
    %c14_i32_389 = arith.constant 14 : i32
    %724 = tpu.dynamic_rotate %667 by %c14_i32_389 dim 1 : vector<8x128xf32>, i32 -> vector<8x128xf32>
    %c12_390 = arith.constant 12 : index
    %c0_391 = arith.constant 0 : index
    %c0_392 = arith.constant 0 : index
    %725 = vector.load %arg7[%c12_390, %c0_391, %c0_392] : memref<49x8x128xf32, #tpu.memory_space<vmem>>, vector<1x8x128xf32>
    %726 = vector.shape_cast %725 : vector<1x8x128xf32> to vector<8x128xf32>
    %727 = arith.mulf %726, %724 : vector<8x128xf32>
    %728 = arith.addf %708, %727 : vector<8x128xf32>
    %c13_i32_393 = arith.constant 13 : i32
    %729 = tpu.dynamic_rotate %667 by %c13_i32_393 dim 1 : vector<8x128xf32>, i32 -> vector<8x128xf32>
    %c13_394 = arith.constant 13 : index
    %c0_395 = arith.constant 0 : index
    %c0_396 = arith.constant 0 : index
    %730 = vector.load %arg7[%c13_394, %c0_395, %c0_396] : memref<49x8x128xf32, #tpu.memory_space<vmem>>, vector<1x8x128xf32>
    %731 = vector.shape_cast %730 : vector<1x8x128xf32> to vector<8x128xf32>
    %732 = arith.mulf %731, %729 : vector<8x128xf32>
    %733 = arith.addf %713, %732 : vector<8x128xf32>
    %c11_i32_397 = arith.constant 11 : i32
    %734 = tpu.dynamic_rotate %667 by %c11_i32_397 dim 1 : vector<8x128xf32>, i32 -> vector<8x128xf32>
    %c14_398 = arith.constant 14 : index
    %c0_399 = arith.constant 0 : index
    %c0_400 = arith.constant 0 : index
    %735 = vector.load %arg7[%c14_398, %c0_399, %c0_400] : memref<49x8x128xf32, #tpu.memory_space<vmem>>, vector<1x8x128xf32>
    %736 = vector.shape_cast %735 : vector<1x8x128xf32> to vector<8x128xf32>
    %737 = arith.mulf %736, %734 : vector<8x128xf32>
    %738 = arith.addf %718, %737 : vector<8x128xf32>
    %c10_i32_401 = arith.constant 10 : i32
    %739 = tpu.dynamic_rotate %667 by %c10_i32_401 dim 1 : vector<8x128xf32>, i32 -> vector<8x128xf32>
    %c15_402 = arith.constant 15 : index
    %c0_403 = arith.constant 0 : index
    %c0_404 = arith.constant 0 : index
    %740 = vector.load %arg7[%c15_402, %c0_403, %c0_404] : memref<49x8x128xf32, #tpu.memory_space<vmem>>, vector<1x8x128xf32>
    %741 = vector.shape_cast %740 : vector<1x8x128xf32> to vector<8x128xf32>
    %742 = arith.mulf %741, %739 : vector<8x128xf32>
    %743 = arith.addf %723, %742 : vector<8x128xf32>
    %c9_i32_405 = arith.constant 9 : i32
    %744 = tpu.dynamic_rotate %667 by %c9_i32_405 dim 1 : vector<8x128xf32>, i32 -> vector<8x128xf32>
    %c16_406 = arith.constant 16 : index
    %c0_407 = arith.constant 0 : index
    %c0_408 = arith.constant 0 : index
    %745 = vector.load %arg7[%c16_406, %c0_407, %c0_408] : memref<49x8x128xf32, #tpu.memory_space<vmem>>, vector<1x8x128xf32>
    %746 = vector.shape_cast %745 : vector<1x8x128xf32> to vector<8x128xf32>
    %747 = arith.mulf %746, %744 : vector<8x128xf32>
    %748 = arith.addf %728, %747 : vector<8x128xf32>
    %c8_i32_409 = arith.constant 8 : i32
    %749 = tpu.dynamic_rotate %667 by %c8_i32_409 dim 1 : vector<8x128xf32>, i32 -> vector<8x128xf32>
    %c17_410 = arith.constant 17 : index
    %c0_411 = arith.constant 0 : index
    %c0_412 = arith.constant 0 : index
    %750 = vector.load %arg7[%c17_410, %c0_411, %c0_412] : memref<49x8x128xf32, #tpu.memory_space<vmem>>, vector<1x8x128xf32>
    %751 = vector.shape_cast %750 : vector<1x8x128xf32> to vector<8x128xf32>
    %752 = arith.mulf %751, %749 : vector<8x128xf32>
    %753 = arith.addf %733, %752 : vector<8x128xf32>
    %c7_i32_413 = arith.constant 7 : i32
    %754 = tpu.dynamic_rotate %667 by %c7_i32_413 dim 1 : vector<8x128xf32>, i32 -> vector<8x128xf32>
    %c18_414 = arith.constant 18 : index
    %c0_415 = arith.constant 0 : index
    %c0_416 = arith.constant 0 : index
    %755 = vector.load %arg7[%c18_414, %c0_415, %c0_416] : memref<49x8x128xf32, #tpu.memory_space<vmem>>, vector<1x8x128xf32>
    %756 = vector.shape_cast %755 : vector<1x8x128xf32> to vector<8x128xf32>
    %757 = arith.mulf %756, %754 : vector<8x128xf32>
    %758 = arith.addf %738, %757 : vector<8x128xf32>
    %c6_i32_417 = arith.constant 6 : i32
    %759 = tpu.dynamic_rotate %667 by %c6_i32_417 dim 1 : vector<8x128xf32>, i32 -> vector<8x128xf32>
    %c19_418 = arith.constant 19 : index
    %c0_419 = arith.constant 0 : index
    %c0_420 = arith.constant 0 : index
    %760 = vector.load %arg7[%c19_418, %c0_419, %c0_420] : memref<49x8x128xf32, #tpu.memory_space<vmem>>, vector<1x8x128xf32>
    %761 = vector.shape_cast %760 : vector<1x8x128xf32> to vector<8x128xf32>
    %762 = arith.mulf %761, %759 : vector<8x128xf32>
    %763 = arith.addf %743, %762 : vector<8x128xf32>
    %c5_i32_421 = arith.constant 5 : i32
    %764 = tpu.dynamic_rotate %667 by %c5_i32_421 dim 1 : vector<8x128xf32>, i32 -> vector<8x128xf32>
    %c20_422 = arith.constant 20 : index
    %c0_423 = arith.constant 0 : index
    %c0_424 = arith.constant 0 : index
    %765 = vector.load %arg7[%c20_422, %c0_423, %c0_424] : memref<49x8x128xf32, #tpu.memory_space<vmem>>, vector<1x8x128xf32>
    %766 = vector.shape_cast %765 : vector<1x8x128xf32> to vector<8x128xf32>
    %767 = arith.mulf %766, %764 : vector<8x128xf32>
    %768 = arith.addf %748, %767 : vector<8x128xf32>
    %c3_i32_425 = arith.constant 3 : i32
    %769 = tpu.dynamic_rotate %667 by %c3_i32_425 dim 1 : vector<8x128xf32>, i32 -> vector<8x128xf32>
    %c21_426 = arith.constant 21 : index
    %c0_427 = arith.constant 0 : index
    %c0_428 = arith.constant 0 : index
    %770 = vector.load %arg7[%c21_426, %c0_427, %c0_428] : memref<49x8x128xf32, #tpu.memory_space<vmem>>, vector<1x8x128xf32>
    %771 = vector.shape_cast %770 : vector<1x8x128xf32> to vector<8x128xf32>
    %772 = arith.mulf %771, %769 : vector<8x128xf32>
    %773 = arith.addf %753, %772 : vector<8x128xf32>
    %c2_i32_429 = arith.constant 2 : i32
    %774 = tpu.dynamic_rotate %667 by %c2_i32_429 dim 1 : vector<8x128xf32>, i32 -> vector<8x128xf32>
    %c22_430 = arith.constant 22 : index
    %c0_431 = arith.constant 0 : index
    %c0_432 = arith.constant 0 : index
    %775 = vector.load %arg7[%c22_430, %c0_431, %c0_432] : memref<49x8x128xf32, #tpu.memory_space<vmem>>, vector<1x8x128xf32>
    %776 = vector.shape_cast %775 : vector<1x8x128xf32> to vector<8x128xf32>
    %777 = arith.mulf %776, %774 : vector<8x128xf32>
    %778 = arith.addf %758, %777 : vector<8x128xf32>
    %c1_i32_433 = arith.constant 1 : i32
    %779 = tpu.dynamic_rotate %667 by %c1_i32_433 dim 1 : vector<8x128xf32>, i32 -> vector<8x128xf32>
    %c23_434 = arith.constant 23 : index
    %c0_435 = arith.constant 0 : index
    %c0_436 = arith.constant 0 : index
    %780 = vector.load %arg7[%c23_434, %c0_435, %c0_436] : memref<49x8x128xf32, #tpu.memory_space<vmem>>, vector<1x8x128xf32>
    %781 = vector.shape_cast %780 : vector<1x8x128xf32> to vector<8x128xf32>
    %782 = arith.mulf %781, %779 : vector<8x128xf32>
    %783 = arith.addf %763, %782 : vector<8x128xf32>
    %c24_437 = arith.constant 24 : index
    %c0_438 = arith.constant 0 : index
    %c0_439 = arith.constant 0 : index
    %784 = vector.load %arg7[%c24_437, %c0_438, %c0_439] : memref<49x8x128xf32, #tpu.memory_space<vmem>>, vector<1x8x128xf32>
    %785 = vector.shape_cast %784 : vector<1x8x128xf32> to vector<8x128xf32>
    %786 = arith.mulf %785, %667 : vector<8x128xf32>
    %787 = arith.addf %768, %786 : vector<8x128xf32>
    %c127_i32_440 = arith.constant 127 : i32
    %788 = tpu.dynamic_rotate %667 by %c127_i32_440 dim 1 : vector<8x128xf32>, i32 -> vector<8x128xf32>
    %c25_441 = arith.constant 25 : index
    %c0_442 = arith.constant 0 : index
    %c0_443 = arith.constant 0 : index
    %789 = vector.load %arg7[%c25_441, %c0_442, %c0_443] : memref<49x8x128xf32, #tpu.memory_space<vmem>>, vector<1x8x128xf32>
    %790 = vector.shape_cast %789 : vector<1x8x128xf32> to vector<8x128xf32>
    %791 = arith.mulf %790, %788 : vector<8x128xf32>
    %792 = arith.addf %773, %791 : vector<8x128xf32>
    %c126_i32_444 = arith.constant 126 : i32
    %793 = tpu.dynamic_rotate %667 by %c126_i32_444 dim 1 : vector<8x128xf32>, i32 -> vector<8x128xf32>
    %c26_445 = arith.constant 26 : index
    %c0_446 = arith.constant 0 : index
    %c0_447 = arith.constant 0 : index
    %794 = vector.load %arg7[%c26_445, %c0_446, %c0_447] : memref<49x8x128xf32, #tpu.memory_space<vmem>>, vector<1x8x128xf32>
    %795 = vector.shape_cast %794 : vector<1x8x128xf32> to vector<8x128xf32>
    %796 = arith.mulf %795, %793 : vector<8x128xf32>
    %797 = arith.addf %778, %796 : vector<8x128xf32>
    %c125_i32_448 = arith.constant 125 : i32
    %798 = tpu.dynamic_rotate %667 by %c125_i32_448 dim 1 : vector<8x128xf32>, i32 -> vector<8x128xf32>
    %c27_449 = arith.constant 27 : index
    %c0_450 = arith.constant 0 : index
    %c0_451 = arith.constant 0 : index
    %799 = vector.load %arg7[%c27_449, %c0_450, %c0_451] : memref<49x8x128xf32, #tpu.memory_space<vmem>>, vector<1x8x128xf32>
    %800 = vector.shape_cast %799 : vector<1x8x128xf32> to vector<8x128xf32>
    %801 = arith.mulf %800, %798 : vector<8x128xf32>
    %802 = arith.addf %783, %801 : vector<8x128xf32>
    %c123_i32_452 = arith.constant 123 : i32
    %803 = tpu.dynamic_rotate %667 by %c123_i32_452 dim 1 : vector<8x128xf32>, i32 -> vector<8x128xf32>
    %c28_453 = arith.constant 28 : index
    %c0_454 = arith.constant 0 : index
    %c0_455 = arith.constant 0 : index
    %804 = vector.load %arg7[%c28_453, %c0_454, %c0_455] : memref<49x8x128xf32, #tpu.memory_space<vmem>>, vector<1x8x128xf32>
    %805 = vector.shape_cast %804 : vector<1x8x128xf32> to vector<8x128xf32>
    %806 = arith.mulf %805, %803 : vector<8x128xf32>
    %807 = arith.addf %787, %806 : vector<8x128xf32>
    %c122_i32_456 = arith.constant 122 : i32
    %808 = tpu.dynamic_rotate %667 by %c122_i32_456 dim 1 : vector<8x128xf32>, i32 -> vector<8x128xf32>
    %c29_457 = arith.constant 29 : index
    %c0_458 = arith.constant 0 : index
    %c0_459 = arith.constant 0 : index
    %809 = vector.load %arg7[%c29_457, %c0_458, %c0_459] : memref<49x8x128xf32, #tpu.memory_space<vmem>>, vector<1x8x128xf32>
    %810 = vector.shape_cast %809 : vector<1x8x128xf32> to vector<8x128xf32>
    %811 = arith.mulf %810, %808 : vector<8x128xf32>
    %812 = arith.addf %792, %811 : vector<8x128xf32>
    %c121_i32_460 = arith.constant 121 : i32
    %813 = tpu.dynamic_rotate %667 by %c121_i32_460 dim 1 : vector<8x128xf32>, i32 -> vector<8x128xf32>
    %c30_461 = arith.constant 30 : index
    %c0_462 = arith.constant 0 : index
    %c0_463 = arith.constant 0 : index
    %814 = vector.load %arg7[%c30_461, %c0_462, %c0_463] : memref<49x8x128xf32, #tpu.memory_space<vmem>>, vector<1x8x128xf32>
    %815 = vector.shape_cast %814 : vector<1x8x128xf32> to vector<8x128xf32>
    %816 = arith.mulf %815, %813 : vector<8x128xf32>
    %817 = arith.addf %797, %816 : vector<8x128xf32>
    %c120_i32_464 = arith.constant 120 : i32
    %818 = tpu.dynamic_rotate %667 by %c120_i32_464 dim 1 : vector<8x128xf32>, i32 -> vector<8x128xf32>
    %c31_465 = arith.constant 31 : index
    %c0_466 = arith.constant 0 : index
    %c0_467 = arith.constant 0 : index
    %819 = vector.load %arg7[%c31_465, %c0_466, %c0_467] : memref<49x8x128xf32, #tpu.memory_space<vmem>>, vector<1x8x128xf32>
    %820 = vector.shape_cast %819 : vector<1x8x128xf32> to vector<8x128xf32>
    %821 = arith.mulf %820, %818 : vector<8x128xf32>
    %822 = arith.addf %802, %821 : vector<8x128xf32>
    %c119_i32_468 = arith.constant 119 : i32
    %823 = tpu.dynamic_rotate %667 by %c119_i32_468 dim 1 : vector<8x128xf32>, i32 -> vector<8x128xf32>
    %c32_469 = arith.constant 32 : index
    %c0_470 = arith.constant 0 : index
    %c0_471 = arith.constant 0 : index
    %824 = vector.load %arg7[%c32_469, %c0_470, %c0_471] : memref<49x8x128xf32, #tpu.memory_space<vmem>>, vector<1x8x128xf32>
    %825 = vector.shape_cast %824 : vector<1x8x128xf32> to vector<8x128xf32>
    %826 = arith.mulf %825, %823 : vector<8x128xf32>
    %827 = arith.addf %807, %826 : vector<8x128xf32>
    %c118_i32_472 = arith.constant 118 : i32
    %828 = tpu.dynamic_rotate %667 by %c118_i32_472 dim 1 : vector<8x128xf32>, i32 -> vector<8x128xf32>
    %c33_473 = arith.constant 33 : index
    %c0_474 = arith.constant 0 : index
    %c0_475 = arith.constant 0 : index
    %829 = vector.load %arg7[%c33_473, %c0_474, %c0_475] : memref<49x8x128xf32, #tpu.memory_space<vmem>>, vector<1x8x128xf32>
    %830 = vector.shape_cast %829 : vector<1x8x128xf32> to vector<8x128xf32>
    %831 = arith.mulf %830, %828 : vector<8x128xf32>
    %832 = arith.addf %812, %831 : vector<8x128xf32>
    %c117_i32_476 = arith.constant 117 : i32
    %833 = tpu.dynamic_rotate %667 by %c117_i32_476 dim 1 : vector<8x128xf32>, i32 -> vector<8x128xf32>
    %c34_477 = arith.constant 34 : index
    %c0_478 = arith.constant 0 : index
    %c0_479 = arith.constant 0 : index
    %834 = vector.load %arg7[%c34_477, %c0_478, %c0_479] : memref<49x8x128xf32, #tpu.memory_space<vmem>>, vector<1x8x128xf32>
    %835 = vector.shape_cast %834 : vector<1x8x128xf32> to vector<8x128xf32>
    %836 = arith.mulf %835, %833 : vector<8x128xf32>
    %837 = arith.addf %817, %836 : vector<8x128xf32>
    %c115_i32_480 = arith.constant 115 : i32
    %838 = tpu.dynamic_rotate %667 by %c115_i32_480 dim 1 : vector<8x128xf32>, i32 -> vector<8x128xf32>
    %c35_481 = arith.constant 35 : index
    %c0_482 = arith.constant 0 : index
    %c0_483 = arith.constant 0 : index
    %839 = vector.load %arg7[%c35_481, %c0_482, %c0_483] : memref<49x8x128xf32, #tpu.memory_space<vmem>>, vector<1x8x128xf32>
    %840 = vector.shape_cast %839 : vector<1x8x128xf32> to vector<8x128xf32>
    %841 = arith.mulf %840, %838 : vector<8x128xf32>
    %842 = arith.addf %822, %841 : vector<8x128xf32>
    %c114_i32_484 = arith.constant 114 : i32
    %843 = tpu.dynamic_rotate %667 by %c114_i32_484 dim 1 : vector<8x128xf32>, i32 -> vector<8x128xf32>
    %c36_485 = arith.constant 36 : index
    %c0_486 = arith.constant 0 : index
    %c0_487 = arith.constant 0 : index
    %844 = vector.load %arg7[%c36_485, %c0_486, %c0_487] : memref<49x8x128xf32, #tpu.memory_space<vmem>>, vector<1x8x128xf32>
    %845 = vector.shape_cast %844 : vector<1x8x128xf32> to vector<8x128xf32>
    %846 = arith.mulf %845, %843 : vector<8x128xf32>
    %847 = arith.addf %827, %846 : vector<8x128xf32>
    %c113_i32_488 = arith.constant 113 : i32
    %848 = tpu.dynamic_rotate %667 by %c113_i32_488 dim 1 : vector<8x128xf32>, i32 -> vector<8x128xf32>
    %c37_489 = arith.constant 37 : index
    %c0_490 = arith.constant 0 : index
    %c0_491 = arith.constant 0 : index
    %849 = vector.load %arg7[%c37_489, %c0_490, %c0_491] : memref<49x8x128xf32, #tpu.memory_space<vmem>>, vector<1x8x128xf32>
    %850 = vector.shape_cast %849 : vector<1x8x128xf32> to vector<8x128xf32>
    %851 = arith.mulf %850, %848 : vector<8x128xf32>
    %852 = arith.addf %832, %851 : vector<8x128xf32>
    %c112_i32_492 = arith.constant 112 : i32
    %853 = tpu.dynamic_rotate %667 by %c112_i32_492 dim 1 : vector<8x128xf32>, i32 -> vector<8x128xf32>
    %c38_493 = arith.constant 38 : index
    %c0_494 = arith.constant 0 : index
    %c0_495 = arith.constant 0 : index
    %854 = vector.load %arg7[%c38_493, %c0_494, %c0_495] : memref<49x8x128xf32, #tpu.memory_space<vmem>>, vector<1x8x128xf32>
    %855 = vector.shape_cast %854 : vector<1x8x128xf32> to vector<8x128xf32>
    %856 = arith.mulf %855, %853 : vector<8x128xf32>
    %857 = arith.addf %837, %856 : vector<8x128xf32>
    %c111_i32_496 = arith.constant 111 : i32
    %858 = tpu.dynamic_rotate %667 by %c111_i32_496 dim 1 : vector<8x128xf32>, i32 -> vector<8x128xf32>
    %c39_497 = arith.constant 39 : index
    %c0_498 = arith.constant 0 : index
    %c0_499 = arith.constant 0 : index
    %859 = vector.load %arg7[%c39_497, %c0_498, %c0_499] : memref<49x8x128xf32, #tpu.memory_space<vmem>>, vector<1x8x128xf32>
    %860 = vector.shape_cast %859 : vector<1x8x128xf32> to vector<8x128xf32>
    %861 = arith.mulf %860, %858 : vector<8x128xf32>
    %862 = arith.addf %842, %861 : vector<8x128xf32>
    %c110_i32_500 = arith.constant 110 : i32
    %863 = tpu.dynamic_rotate %667 by %c110_i32_500 dim 1 : vector<8x128xf32>, i32 -> vector<8x128xf32>
    %c40_501 = arith.constant 40 : index
    %c0_502 = arith.constant 0 : index
    %c0_503 = arith.constant 0 : index
    %864 = vector.load %arg7[%c40_501, %c0_502, %c0_503] : memref<49x8x128xf32, #tpu.memory_space<vmem>>, vector<1x8x128xf32>
    %865 = vector.shape_cast %864 : vector<1x8x128xf32> to vector<8x128xf32>
    %866 = arith.mulf %865, %863 : vector<8x128xf32>
    %867 = arith.addf %847, %866 : vector<8x128xf32>
    %c109_i32_504 = arith.constant 109 : i32
    %868 = tpu.dynamic_rotate %667 by %c109_i32_504 dim 1 : vector<8x128xf32>, i32 -> vector<8x128xf32>
    %c41_505 = arith.constant 41 : index
    %c0_506 = arith.constant 0 : index
    %c0_507 = arith.constant 0 : index
    %869 = vector.load %arg7[%c41_505, %c0_506, %c0_507] : memref<49x8x128xf32, #tpu.memory_space<vmem>>, vector<1x8x128xf32>
    %870 = vector.shape_cast %869 : vector<1x8x128xf32> to vector<8x128xf32>
    %871 = arith.mulf %870, %868 : vector<8x128xf32>
    %872 = arith.addf %852, %871 : vector<8x128xf32>
    %c107_i32_508 = arith.constant 107 : i32
    %873 = tpu.dynamic_rotate %667 by %c107_i32_508 dim 1 : vector<8x128xf32>, i32 -> vector<8x128xf32>
    %c42_509 = arith.constant 42 : index
    %c0_510 = arith.constant 0 : index
    %c0_511 = arith.constant 0 : index
    %874 = vector.load %arg7[%c42_509, %c0_510, %c0_511] : memref<49x8x128xf32, #tpu.memory_space<vmem>>, vector<1x8x128xf32>
    %875 = vector.shape_cast %874 : vector<1x8x128xf32> to vector<8x128xf32>
    %876 = arith.mulf %875, %873 : vector<8x128xf32>
    %877 = arith.addf %857, %876 : vector<8x128xf32>
    %c106_i32_512 = arith.constant 106 : i32
    %878 = tpu.dynamic_rotate %667 by %c106_i32_512 dim 1 : vector<8x128xf32>, i32 -> vector<8x128xf32>
    %c43_513 = arith.constant 43 : index
    %c0_514 = arith.constant 0 : index
    %c0_515 = arith.constant 0 : index
    %879 = vector.load %arg7[%c43_513, %c0_514, %c0_515] : memref<49x8x128xf32, #tpu.memory_space<vmem>>, vector<1x8x128xf32>
    %880 = vector.shape_cast %879 : vector<1x8x128xf32> to vector<8x128xf32>
    %881 = arith.mulf %880, %878 : vector<8x128xf32>
    %882 = arith.addf %862, %881 : vector<8x128xf32>
    %c105_i32_516 = arith.constant 105 : i32
    %883 = tpu.dynamic_rotate %667 by %c105_i32_516 dim 1 : vector<8x128xf32>, i32 -> vector<8x128xf32>
    %c44_517 = arith.constant 44 : index
    %c0_518 = arith.constant 0 : index
    %c0_519 = arith.constant 0 : index
    %884 = vector.load %arg7[%c44_517, %c0_518, %c0_519] : memref<49x8x128xf32, #tpu.memory_space<vmem>>, vector<1x8x128xf32>
    %885 = vector.shape_cast %884 : vector<1x8x128xf32> to vector<8x128xf32>
    %886 = arith.mulf %885, %883 : vector<8x128xf32>
    %887 = arith.addf %867, %886 : vector<8x128xf32>
    %c104_i32_520 = arith.constant 104 : i32
    %888 = tpu.dynamic_rotate %667 by %c104_i32_520 dim 1 : vector<8x128xf32>, i32 -> vector<8x128xf32>
    %c45_521 = arith.constant 45 : index
    %c0_522 = arith.constant 0 : index
    %c0_523 = arith.constant 0 : index
    %889 = vector.load %arg7[%c45_521, %c0_522, %c0_523] : memref<49x8x128xf32, #tpu.memory_space<vmem>>, vector<1x8x128xf32>
    %890 = vector.shape_cast %889 : vector<1x8x128xf32> to vector<8x128xf32>
    %891 = arith.mulf %890, %888 : vector<8x128xf32>
    %892 = arith.addf %872, %891 : vector<8x128xf32>
    %c103_i32_524 = arith.constant 103 : i32
    %893 = tpu.dynamic_rotate %667 by %c103_i32_524 dim 1 : vector<8x128xf32>, i32 -> vector<8x128xf32>
    %c46_525 = arith.constant 46 : index
    %c0_526 = arith.constant 0 : index
    %c0_527 = arith.constant 0 : index
    %894 = vector.load %arg7[%c46_525, %c0_526, %c0_527] : memref<49x8x128xf32, #tpu.memory_space<vmem>>, vector<1x8x128xf32>
    %895 = vector.shape_cast %894 : vector<1x8x128xf32> to vector<8x128xf32>
    %896 = arith.mulf %895, %893 : vector<8x128xf32>
    %897 = arith.addf %877, %896 : vector<8x128xf32>
    %c102_i32_528 = arith.constant 102 : i32
    %898 = tpu.dynamic_rotate %667 by %c102_i32_528 dim 1 : vector<8x128xf32>, i32 -> vector<8x128xf32>
    %c47_529 = arith.constant 47 : index
    %c0_530 = arith.constant 0 : index
    %c0_531 = arith.constant 0 : index
    %899 = vector.load %arg7[%c47_529, %c0_530, %c0_531] : memref<49x8x128xf32, #tpu.memory_space<vmem>>, vector<1x8x128xf32>
    %900 = vector.shape_cast %899 : vector<1x8x128xf32> to vector<8x128xf32>
    %901 = arith.mulf %900, %898 : vector<8x128xf32>
    %902 = arith.addf %882, %901 : vector<8x128xf32>
    %c101_i32_532 = arith.constant 101 : i32
    %903 = tpu.dynamic_rotate %667 by %c101_i32_532 dim 1 : vector<8x128xf32>, i32 -> vector<8x128xf32>
    %c48_533 = arith.constant 48 : index
    %c0_534 = arith.constant 0 : index
    %c0_535 = arith.constant 0 : index
    %904 = vector.load %arg7[%c48_533, %c0_534, %c0_535] : memref<49x8x128xf32, #tpu.memory_space<vmem>>, vector<1x8x128xf32>
    %905 = vector.shape_cast %904 : vector<1x8x128xf32> to vector<8x128xf32>
    %906 = arith.mulf %905, %903 : vector<8x128xf32>
    %907 = arith.addf %887, %906 : vector<8x128xf32>
    %908 = arith.addf %907, %892 : vector<8x128xf32>
    %909 = arith.addf %897, %902 : vector<8x128xf32>
    %910 = arith.addf %908, %909 : vector<8x128xf32>
    %c88 = arith.constant 88 : index
    %c0_536 = arith.constant 0 : index
    %911 = vector.load %arg2[%c88, %c0_536] : memref<152x128xf32, #tpu.memory_space<vmem>>, vector<8x128xf32>
    %912 = arith.mulf %910, %911 : vector<8x128xf32>
    %c96 = arith.constant 96 : index
    %c0_537 = arith.constant 0 : index
    %913 = vector.load %arg2[%c96, %c0_537] : memref<152x128xf32, #tpu.memory_space<vmem>>, vector<8x128xf32>
    %914 = arith.addf %912, %913 : vector<8x128xf32>
    %c0_538 = arith.constant 0 : index
    %c0_539 = arith.constant 0 : index
    %c0_540 = arith.constant 0 : index
    %915 = vector.load %arg8[%c0_538, %c0_539, %c0_540] : memref<8x16x128xf32, #tpu.memory_space<vmem>>, vector<1x16x128xf32>
    %916 = vector.shape_cast %915 : vector<1x16x128xf32> to vector<16x128xf32>
    %917 = vector.extract_strided_slice %914 {offsets = [0, 0], sizes = [1, 128], strides = [1, 1]} : vector<8x128xf32> to vector<1x128xf32>
    %918 = vector.broadcast %917 : vector<1x128xf32> to vector<16x128xf32>
    %919 = arith.mulf %916, %918 : vector<16x128xf32>
    %c1_541 = arith.constant 1 : index
    %c0_542 = arith.constant 0 : index
    %c0_543 = arith.constant 0 : index
    %920 = vector.load %arg8[%c1_541, %c0_542, %c0_543] : memref<8x16x128xf32, #tpu.memory_space<vmem>>, vector<1x16x128xf32>
    %921 = vector.shape_cast %920 : vector<1x16x128xf32> to vector<16x128xf32>
    %922 = vector.extract_strided_slice %914 {offsets = [1, 0], sizes = [1, 128], strides = [1, 1]} : vector<8x128xf32> to vector<1x128xf32>
    %923 = vector.broadcast %922 : vector<1x128xf32> to vector<16x128xf32>
    %924 = arith.mulf %921, %923 : vector<16x128xf32>
    %c2_544 = arith.constant 2 : index
    %c0_545 = arith.constant 0 : index
    %c0_546 = arith.constant 0 : index
    %925 = vector.load %arg8[%c2_544, %c0_545, %c0_546] : memref<8x16x128xf32, #tpu.memory_space<vmem>>, vector<1x16x128xf32>
    %926 = vector.shape_cast %925 : vector<1x16x128xf32> to vector<16x128xf32>
    %927 = vector.extract_strided_slice %914 {offsets = [2, 0], sizes = [1, 128], strides = [1, 1]} : vector<8x128xf32> to vector<1x128xf32>
    %928 = vector.broadcast %927 : vector<1x128xf32> to vector<16x128xf32>
    %929 = arith.mulf %926, %928 : vector<16x128xf32>
    %930 = arith.addf %919, %929 : vector<16x128xf32>
    %c3_547 = arith.constant 3 : index
    %c0_548 = arith.constant 0 : index
    %c0_549 = arith.constant 0 : index
    %931 = vector.load %arg8[%c3_547, %c0_548, %c0_549] : memref<8x16x128xf32, #tpu.memory_space<vmem>>, vector<1x16x128xf32>
    %932 = vector.shape_cast %931 : vector<1x16x128xf32> to vector<16x128xf32>
    %933 = vector.extract_strided_slice %914 {offsets = [3, 0], sizes = [1, 128], strides = [1, 1]} : vector<8x128xf32> to vector<1x128xf32>
    %934 = vector.broadcast %933 : vector<1x128xf32> to vector<16x128xf32>
    %935 = arith.mulf %932, %934 : vector<16x128xf32>
    %936 = arith.addf %924, %935 : vector<16x128xf32>
    %c4_550 = arith.constant 4 : index
    %c0_551 = arith.constant 0 : index
    %c0_552 = arith.constant 0 : index
    %937 = vector.load %arg8[%c4_550, %c0_551, %c0_552] : memref<8x16x128xf32, #tpu.memory_space<vmem>>, vector<1x16x128xf32>
    %938 = vector.shape_cast %937 : vector<1x16x128xf32> to vector<16x128xf32>
    %939 = vector.extract_strided_slice %914 {offsets = [4, 0], sizes = [1, 128], strides = [1, 1]} : vector<8x128xf32> to vector<1x128xf32>
    %940 = vector.broadcast %939 : vector<1x128xf32> to vector<16x128xf32>
    %941 = arith.mulf %938, %940 : vector<16x128xf32>
    %942 = arith.addf %930, %941 : vector<16x128xf32>
    %c5_553 = arith.constant 5 : index
    %c0_554 = arith.constant 0 : index
    %c0_555 = arith.constant 0 : index
    %943 = vector.load %arg8[%c5_553, %c0_554, %c0_555] : memref<8x16x128xf32, #tpu.memory_space<vmem>>, vector<1x16x128xf32>
    %944 = vector.shape_cast %943 : vector<1x16x128xf32> to vector<16x128xf32>
    %945 = vector.extract_strided_slice %914 {offsets = [5, 0], sizes = [1, 128], strides = [1, 1]} : vector<8x128xf32> to vector<1x128xf32>
    %946 = vector.broadcast %945 : vector<1x128xf32> to vector<16x128xf32>
    %947 = arith.mulf %944, %946 : vector<16x128xf32>
    %948 = arith.addf %936, %947 : vector<16x128xf32>
    %c6_556 = arith.constant 6 : index
    %c0_557 = arith.constant 0 : index
    %c0_558 = arith.constant 0 : index
    %949 = vector.load %arg8[%c6_556, %c0_557, %c0_558] : memref<8x16x128xf32, #tpu.memory_space<vmem>>, vector<1x16x128xf32>
    %950 = vector.shape_cast %949 : vector<1x16x128xf32> to vector<16x128xf32>
    %951 = vector.extract_strided_slice %914 {offsets = [6, 0], sizes = [1, 128], strides = [1, 1]} : vector<8x128xf32> to vector<1x128xf32>
    %952 = vector.broadcast %951 : vector<1x128xf32> to vector<16x128xf32>
    %953 = arith.mulf %950, %952 : vector<16x128xf32>
    %954 = arith.addf %942, %953 : vector<16x128xf32>
    %c7_559 = arith.constant 7 : index
    %c0_560 = arith.constant 0 : index
    %c0_561 = arith.constant 0 : index
    %955 = vector.load %arg8[%c7_559, %c0_560, %c0_561] : memref<8x16x128xf32, #tpu.memory_space<vmem>>, vector<1x16x128xf32>
    %956 = vector.shape_cast %955 : vector<1x16x128xf32> to vector<16x128xf32>
    %957 = vector.extract_strided_slice %914 {offsets = [7, 0], sizes = [1, 128], strides = [1, 1]} : vector<8x128xf32> to vector<1x128xf32>
    %958 = vector.broadcast %957 : vector<1x128xf32> to vector<16x128xf32>
    %959 = arith.mulf %956, %958 : vector<16x128xf32>
    %960 = arith.addf %948, %959 : vector<16x128xf32>
    %961 = arith.addf %954, %960 : vector<16x128xf32>
    %c104 = arith.constant 104 : index
    %c0_562 = arith.constant 0 : index
    %962 = vector.load %arg2[%c104, %c0_562] : memref<152x128xf32, #tpu.memory_space<vmem>>, vector<16x128xf32>
    %963 = arith.addf %961, %962 : vector<16x128xf32>
    %cst_563 = arith.constant 5.000000e-01 : f32
    %964 = vector.broadcast %cst_563 : f32 to vector<16x128xf32>
    %965 = arith.mulf %964, %963 : vector<16x128xf32>
    %cst_564 = arith.constant 4.471500e-02 : f32
    %966 = vector.broadcast %cst_564 : f32 to vector<16x128xf32>
    %967 = arith.mulf %966, %963 : vector<16x128xf32>
    %968 = arith.mulf %967, %963 : vector<16x128xf32>
    %969 = arith.mulf %968, %963 : vector<16x128xf32>
    %970 = arith.addf %963, %969 : vector<16x128xf32>
    %cst_565 = arith.constant 0.797884583 : f32
    %971 = vector.broadcast %cst_565 : f32 to vector<16x128xf32>
    %972 = arith.mulf %971, %970 : vector<16x128xf32>
    %973 = math.tanh %972 : vector<16x128xf32>
    %cst_566 = arith.constant 1.000000e+00 : f32
    %974 = vector.broadcast %cst_566 : f32 to vector<16x128xf32>
    %975 = arith.addf %974, %973 : vector<16x128xf32>
    %976 = arith.mulf %965, %975 : vector<16x128xf32>
    %c0_567 = arith.constant 0 : index
    %c0_568 = arith.constant 0 : index
    %c0_569 = arith.constant 0 : index
    %977 = vector.load %arg9[%c0_567, %c0_568, %c0_569] : memref<16x8x128xf32, #tpu.memory_space<vmem>>, vector<1x8x128xf32>
    %978 = vector.shape_cast %977 : vector<1x8x128xf32> to vector<8x128xf32>
    %979 = vector.extract_strided_slice %976 {offsets = [0, 0], sizes = [1, 128], strides = [1, 1]} : vector<16x128xf32> to vector<1x128xf32>
    %980 = vector.broadcast %979 : vector<1x128xf32> to vector<8x128xf32>
    %981 = arith.mulf %978, %980 : vector<8x128xf32>
    %c1_570 = arith.constant 1 : index
    %c0_571 = arith.constant 0 : index
    %c0_572 = arith.constant 0 : index
    %982 = vector.load %arg9[%c1_570, %c0_571, %c0_572] : memref<16x8x128xf32, #tpu.memory_space<vmem>>, vector<1x8x128xf32>
    %983 = vector.shape_cast %982 : vector<1x8x128xf32> to vector<8x128xf32>
    %984 = vector.extract_strided_slice %976 {offsets = [1, 0], sizes = [1, 128], strides = [1, 1]} : vector<16x128xf32> to vector<1x128xf32>
    %985 = vector.broadcast %984 : vector<1x128xf32> to vector<8x128xf32>
    %986 = arith.mulf %983, %985 : vector<8x128xf32>
    %c2_573 = arith.constant 2 : index
    %c0_574 = arith.constant 0 : index
    %c0_575 = arith.constant 0 : index
    %987 = vector.load %arg9[%c2_573, %c0_574, %c0_575] : memref<16x8x128xf32, #tpu.memory_space<vmem>>, vector<1x8x128xf32>
    %988 = vector.shape_cast %987 : vector<1x8x128xf32> to vector<8x128xf32>
    %989 = vector.extract_strided_slice %976 {offsets = [2, 0], sizes = [1, 128], strides = [1, 1]} : vector<16x128xf32> to vector<1x128xf32>
    %990 = vector.broadcast %989 : vector<1x128xf32> to vector<8x128xf32>
    %991 = arith.mulf %988, %990 : vector<8x128xf32>
    %992 = arith.addf %981, %991 : vector<8x128xf32>
    %c3_576 = arith.constant 3 : index
    %c0_577 = arith.constant 0 : index
    %c0_578 = arith.constant 0 : index
    %993 = vector.load %arg9[%c3_576, %c0_577, %c0_578] : memref<16x8x128xf32, #tpu.memory_space<vmem>>, vector<1x8x128xf32>
    %994 = vector.shape_cast %993 : vector<1x8x128xf32> to vector<8x128xf32>
    %995 = vector.extract_strided_slice %976 {offsets = [3, 0], sizes = [1, 128], strides = [1, 1]} : vector<16x128xf32> to vector<1x128xf32>
    %996 = vector.broadcast %995 : vector<1x128xf32> to vector<8x128xf32>
    %997 = arith.mulf %994, %996 : vector<8x128xf32>
    %998 = arith.addf %986, %997 : vector<8x128xf32>
    %c4_579 = arith.constant 4 : index
    %c0_580 = arith.constant 0 : index
    %c0_581 = arith.constant 0 : index
    %999 = vector.load %arg9[%c4_579, %c0_580, %c0_581] : memref<16x8x128xf32, #tpu.memory_space<vmem>>, vector<1x8x128xf32>
    %1000 = vector.shape_cast %999 : vector<1x8x128xf32> to vector<8x128xf32>
    %1001 = vector.extract_strided_slice %976 {offsets = [4, 0], sizes = [1, 128], strides = [1, 1]} : vector<16x128xf32> to vector<1x128xf32>
    %1002 = vector.broadcast %1001 : vector<1x128xf32> to vector<8x128xf32>
    %1003 = arith.mulf %1000, %1002 : vector<8x128xf32>
    %1004 = arith.addf %992, %1003 : vector<8x128xf32>
    %c5_582 = arith.constant 5 : index
    %c0_583 = arith.constant 0 : index
    %c0_584 = arith.constant 0 : index
    %1005 = vector.load %arg9[%c5_582, %c0_583, %c0_584] : memref<16x8x128xf32, #tpu.memory_space<vmem>>, vector<1x8x128xf32>
    %1006 = vector.shape_cast %1005 : vector<1x8x128xf32> to vector<8x128xf32>
    %1007 = vector.extract_strided_slice %976 {offsets = [5, 0], sizes = [1, 128], strides = [1, 1]} : vector<16x128xf32> to vector<1x128xf32>
    %1008 = vector.broadcast %1007 : vector<1x128xf32> to vector<8x128xf32>
    %1009 = arith.mulf %1006, %1008 : vector<8x128xf32>
    %1010 = arith.addf %998, %1009 : vector<8x128xf32>
    %c6_585 = arith.constant 6 : index
    %c0_586 = arith.constant 0 : index
    %c0_587 = arith.constant 0 : index
    %1011 = vector.load %arg9[%c6_585, %c0_586, %c0_587] : memref<16x8x128xf32, #tpu.memory_space<vmem>>, vector<1x8x128xf32>
    %1012 = vector.shape_cast %1011 : vector<1x8x128xf32> to vector<8x128xf32>
    %1013 = vector.extract_strided_slice %976 {offsets = [6, 0], sizes = [1, 128], strides = [1, 1]} : vector<16x128xf32> to vector<1x128xf32>
    %1014 = vector.broadcast %1013 : vector<1x128xf32> to vector<8x128xf32>
    %1015 = arith.mulf %1012, %1014 : vector<8x128xf32>
    %1016 = arith.addf %1004, %1015 : vector<8x128xf32>
    %c7_588 = arith.constant 7 : index
    %c0_589 = arith.constant 0 : index
    %c0_590 = arith.constant 0 : index
    %1017 = vector.load %arg9[%c7_588, %c0_589, %c0_590] : memref<16x8x128xf32, #tpu.memory_space<vmem>>, vector<1x8x128xf32>
    %1018 = vector.shape_cast %1017 : vector<1x8x128xf32> to vector<8x128xf32>
    %1019 = vector.extract_strided_slice %976 {offsets = [7, 0], sizes = [1, 128], strides = [1, 1]} : vector<16x128xf32> to vector<1x128xf32>
    %1020 = vector.broadcast %1019 : vector<1x128xf32> to vector<8x128xf32>
    %1021 = arith.mulf %1018, %1020 : vector<8x128xf32>
    %1022 = arith.addf %1010, %1021 : vector<8x128xf32>
    %c8_591 = arith.constant 8 : index
    %c0_592 = arith.constant 0 : index
    %c0_593 = arith.constant 0 : index
    %1023 = vector.load %arg9[%c8_591, %c0_592, %c0_593] : memref<16x8x128xf32, #tpu.memory_space<vmem>>, vector<1x8x128xf32>
    %1024 = vector.shape_cast %1023 : vector<1x8x128xf32> to vector<8x128xf32>
    %1025 = vector.extract_strided_slice %976 {offsets = [8, 0], sizes = [1, 128], strides = [1, 1]} : vector<16x128xf32> to vector<1x128xf32>
    %1026 = vector.broadcast %1025 : vector<1x128xf32> to vector<8x128xf32>
    %1027 = arith.mulf %1024, %1026 : vector<8x128xf32>
    %1028 = arith.addf %1016, %1027 : vector<8x128xf32>
    %c9_594 = arith.constant 9 : index
    %c0_595 = arith.constant 0 : index
    %c0_596 = arith.constant 0 : index
    %1029 = vector.load %arg9[%c9_594, %c0_595, %c0_596] : memref<16x8x128xf32, #tpu.memory_space<vmem>>, vector<1x8x128xf32>
    %1030 = vector.shape_cast %1029 : vector<1x8x128xf32> to vector<8x128xf32>
    %1031 = vector.extract_strided_slice %976 {offsets = [9, 0], sizes = [1, 128], strides = [1, 1]} : vector<16x128xf32> to vector<1x128xf32>
    %1032 = vector.broadcast %1031 : vector<1x128xf32> to vector<8x128xf32>
    %1033 = arith.mulf %1030, %1032 : vector<8x128xf32>
    %1034 = arith.addf %1022, %1033 : vector<8x128xf32>
    %c10_597 = arith.constant 10 : index
    %c0_598 = arith.constant 0 : index
    %c0_599 = arith.constant 0 : index
    %1035 = vector.load %arg9[%c10_597, %c0_598, %c0_599] : memref<16x8x128xf32, #tpu.memory_space<vmem>>, vector<1x8x128xf32>
    %1036 = vector.shape_cast %1035 : vector<1x8x128xf32> to vector<8x128xf32>
    %1037 = vector.extract_strided_slice %976 {offsets = [10, 0], sizes = [1, 128], strides = [1, 1]} : vector<16x128xf32> to vector<1x128xf32>
    %1038 = vector.broadcast %1037 : vector<1x128xf32> to vector<8x128xf32>
    %1039 = arith.mulf %1036, %1038 : vector<8x128xf32>
    %1040 = arith.addf %1028, %1039 : vector<8x128xf32>
    %c11_600 = arith.constant 11 : index
    %c0_601 = arith.constant 0 : index
    %c0_602 = arith.constant 0 : index
    %1041 = vector.load %arg9[%c11_600, %c0_601, %c0_602] : memref<16x8x128xf32, #tpu.memory_space<vmem>>, vector<1x8x128xf32>
    %1042 = vector.shape_cast %1041 : vector<1x8x128xf32> to vector<8x128xf32>
    %1043 = vector.extract_strided_slice %976 {offsets = [11, 0], sizes = [1, 128], strides = [1, 1]} : vector<16x128xf32> to vector<1x128xf32>
    %1044 = vector.broadcast %1043 : vector<1x128xf32> to vector<8x128xf32>
    %1045 = arith.mulf %1042, %1044 : vector<8x128xf32>
    %1046 = arith.addf %1034, %1045 : vector<8x128xf32>
    %c12_603 = arith.constant 12 : index
    %c0_604 = arith.constant 0 : index
    %c0_605 = arith.constant 0 : index
    %1047 = vector.load %arg9[%c12_603, %c0_604, %c0_605] : memref<16x8x128xf32, #tpu.memory_space<vmem>>, vector<1x8x128xf32>
    %1048 = vector.shape_cast %1047 : vector<1x8x128xf32> to vector<8x128xf32>
    %1049 = vector.extract_strided_slice %976 {offsets = [12, 0], sizes = [1, 128], strides = [1, 1]} : vector<16x128xf32> to vector<1x128xf32>
    %1050 = vector.broadcast %1049 : vector<1x128xf32> to vector<8x128xf32>
    %1051 = arith.mulf %1048, %1050 : vector<8x128xf32>
    %1052 = arith.addf %1040, %1051 : vector<8x128xf32>
    %c13_606 = arith.constant 13 : index
    %c0_607 = arith.constant 0 : index
    %c0_608 = arith.constant 0 : index
    %1053 = vector.load %arg9[%c13_606, %c0_607, %c0_608] : memref<16x8x128xf32, #tpu.memory_space<vmem>>, vector<1x8x128xf32>
    %1054 = vector.shape_cast %1053 : vector<1x8x128xf32> to vector<8x128xf32>
    %1055 = vector.extract_strided_slice %976 {offsets = [13, 0], sizes = [1, 128], strides = [1, 1]} : vector<16x128xf32> to vector<1x128xf32>
    %1056 = vector.broadcast %1055 : vector<1x128xf32> to vector<8x128xf32>
    %1057 = arith.mulf %1054, %1056 : vector<8x128xf32>
    %1058 = arith.addf %1046, %1057 : vector<8x128xf32>
    %c14_609 = arith.constant 14 : index
    %c0_610 = arith.constant 0 : index
    %c0_611 = arith.constant 0 : index
    %1059 = vector.load %arg9[%c14_609, %c0_610, %c0_611] : memref<16x8x128xf32, #tpu.memory_space<vmem>>, vector<1x8x128xf32>
    %1060 = vector.shape_cast %1059 : vector<1x8x128xf32> to vector<8x128xf32>
    %1061 = vector.extract_strided_slice %976 {offsets = [14, 0], sizes = [1, 128], strides = [1, 1]} : vector<16x128xf32> to vector<1x128xf32>
    %1062 = vector.broadcast %1061 : vector<1x128xf32> to vector<8x128xf32>
    %1063 = arith.mulf %1060, %1062 : vector<8x128xf32>
    %1064 = arith.addf %1052, %1063 : vector<8x128xf32>
    %c15_612 = arith.constant 15 : index
    %c0_613 = arith.constant 0 : index
    %c0_614 = arith.constant 0 : index
    %1065 = vector.load %arg9[%c15_612, %c0_613, %c0_614] : memref<16x8x128xf32, #tpu.memory_space<vmem>>, vector<1x8x128xf32>
    %1066 = vector.shape_cast %1065 : vector<1x8x128xf32> to vector<8x128xf32>
    %1067 = vector.extract_strided_slice %976 {offsets = [15, 0], sizes = [1, 128], strides = [1, 1]} : vector<16x128xf32> to vector<1x128xf32>
    %1068 = vector.broadcast %1067 : vector<1x128xf32> to vector<8x128xf32>
    %1069 = arith.mulf %1066, %1068 : vector<8x128xf32>
    %1070 = arith.addf %1058, %1069 : vector<8x128xf32>
    %1071 = arith.addf %1064, %1070 : vector<8x128xf32>
    %c120 = arith.constant 120 : index
    %c0_615 = arith.constant 0 : index
    %1072 = vector.load %arg2[%c120, %c0_615] : memref<152x128xf32, #tpu.memory_space<vmem>>, vector<8x128xf32>
    %1073 = arith.addf %1071, %1072 : vector<8x128xf32>
    %c128 = arith.constant 128 : index
    %c0_616 = arith.constant 0 : index
    %1074 = vector.load %arg2[%c128, %c0_616] : memref<152x128xf32, #tpu.memory_space<vmem>>, vector<8x128xf32>
    %1075 = arith.mulf %1074, %1073 : vector<8x128xf32>
    %1076 = arith.addf %1075, %667 : vector<8x128xf32>
    %c136 = arith.constant 136 : index
    %c0_617 = arith.constant 0 : index
    %1077 = vector.load %arg2[%c136, %c0_617] : memref<152x128xf32, #tpu.memory_space<vmem>>, vector<8x128xf32>
    %c144 = arith.constant 144 : index
    %c0_618 = arith.constant 0 : index
    %1078 = vector.load %arg2[%c144, %c0_618] : memref<152x128xf32, #tpu.memory_space<vmem>>, vector<8x128xf32>
    %cst_619 = arith.constant dense<0.000000e+00> : vector<128xf32>
    %1079 = vector.multi_reduction <add>, %1076, %cst_619 [0] : vector<8x128xf32> to vector<128xf32>
    %1080 = vector.shape_cast %1079 : vector<128xf32> to vector<1x128xf32>
    %cst_620 = arith.constant 8.000000e+00 : f32
    %1081 = vector.broadcast %cst_620 : f32 to vector<1x128xf32>
    %1082 = arith.divf %1080, %1081 : vector<1x128xf32>
    %1083 = vector.broadcast %1082 : vector<1x128xf32> to vector<8x128xf32>
    %1084 = arith.subf %1076, %1083 : vector<8x128xf32>
    %1085 = arith.mulf %1084, %1084 : vector<8x128xf32>
    %cst_621 = arith.constant dense<0.000000e+00> : vector<128xf32>
    %1086 = vector.multi_reduction <add>, %1085, %cst_621 [0] : vector<8x128xf32> to vector<128xf32>
    %1087 = vector.shape_cast %1086 : vector<128xf32> to vector<1x128xf32>
    %cst_622 = arith.constant 8.000000e+00 : f32
    %1088 = vector.broadcast %cst_622 : f32 to vector<1x128xf32>
    %1089 = arith.divf %1087, %1088 : vector<1x128xf32>
    %cst_623 = arith.constant 9.99999974E-6 : f32
    %1090 = vector.broadcast %cst_623 : f32 to vector<1x128xf32>
    %1091 = arith.addf %1089, %1090 : vector<1x128xf32>
    %1092 = math.rsqrt %1091 : vector<1x128xf32>
    %1093 = vector.broadcast %1092 : vector<1x128xf32> to vector<8x128xf32>
    %1094 = arith.mulf %1084, %1093 : vector<8x128xf32>
    %1095 = arith.mulf %1094, %1077 : vector<8x128xf32>
    %1096 = arith.addf %1095, %1078 : vector<8x128xf32>
    %c0_624 = arith.constant 0 : index
    %c0_625 = arith.constant 0 : index
    %c0_626 = arith.constant 0 : index
    %1097 = vector.load %arg10[%c0_624, %c0_625, %c0_626] : memref<8x3x128xf32, #tpu.memory_space<vmem>>, vector<1x3x128xf32>
    %1098 = vector.shape_cast %1097 : vector<1x3x128xf32> to vector<3x128xf32>
    %1099 = vector.extract_strided_slice %1096 {offsets = [0, 0], sizes = [1, 128], strides = [1, 1]} : vector<8x128xf32> to vector<1x128xf32>
    %1100 = vector.broadcast %1099 : vector<1x128xf32> to vector<3x128xf32>
    %1101 = arith.mulf %1098, %1100 : vector<3x128xf32>
    %c1_627 = arith.constant 1 : index
    %c0_628 = arith.constant 0 : index
    %c0_629 = arith.constant 0 : index
    %1102 = vector.load %arg10[%c1_627, %c0_628, %c0_629] : memref<8x3x128xf32, #tpu.memory_space<vmem>>, vector<1x3x128xf32>
    %1103 = vector.shape_cast %1102 : vector<1x3x128xf32> to vector<3x128xf32>
    %1104 = vector.extract_strided_slice %1096 {offsets = [1, 0], sizes = [1, 128], strides = [1, 1]} : vector<8x128xf32> to vector<1x128xf32>
    %1105 = vector.broadcast %1104 : vector<1x128xf32> to vector<3x128xf32>
    %1106 = arith.mulf %1103, %1105 : vector<3x128xf32>
    %c2_630 = arith.constant 2 : index
    %c0_631 = arith.constant 0 : index
    %c0_632 = arith.constant 0 : index
    %1107 = vector.load %arg10[%c2_630, %c0_631, %c0_632] : memref<8x3x128xf32, #tpu.memory_space<vmem>>, vector<1x3x128xf32>
    %1108 = vector.shape_cast %1107 : vector<1x3x128xf32> to vector<3x128xf32>
    %1109 = vector.extract_strided_slice %1096 {offsets = [2, 0], sizes = [1, 128], strides = [1, 1]} : vector<8x128xf32> to vector<1x128xf32>
    %1110 = vector.broadcast %1109 : vector<1x128xf32> to vector<3x128xf32>
    %1111 = arith.mulf %1108, %1110 : vector<3x128xf32>
    %1112 = arith.addf %1101, %1111 : vector<3x128xf32>
    %c3_633 = arith.constant 3 : index
    %c0_634 = arith.constant 0 : index
    %c0_635 = arith.constant 0 : index
    %1113 = vector.load %arg10[%c3_633, %c0_634, %c0_635] : memref<8x3x128xf32, #tpu.memory_space<vmem>>, vector<1x3x128xf32>
    %1114 = vector.shape_cast %1113 : vector<1x3x128xf32> to vector<3x128xf32>
    %1115 = vector.extract_strided_slice %1096 {offsets = [3, 0], sizes = [1, 128], strides = [1, 1]} : vector<8x128xf32> to vector<1x128xf32>
    %1116 = vector.broadcast %1115 : vector<1x128xf32> to vector<3x128xf32>
    %1117 = arith.mulf %1114, %1116 : vector<3x128xf32>
    %1118 = arith.addf %1106, %1117 : vector<3x128xf32>
    %c4_636 = arith.constant 4 : index
    %c0_637 = arith.constant 0 : index
    %c0_638 = arith.constant 0 : index
    %1119 = vector.load %arg10[%c4_636, %c0_637, %c0_638] : memref<8x3x128xf32, #tpu.memory_space<vmem>>, vector<1x3x128xf32>
    %1120 = vector.shape_cast %1119 : vector<1x3x128xf32> to vector<3x128xf32>
    %1121 = vector.extract_strided_slice %1096 {offsets = [4, 0], sizes = [1, 128], strides = [1, 1]} : vector<8x128xf32> to vector<1x128xf32>
    %1122 = vector.broadcast %1121 : vector<1x128xf32> to vector<3x128xf32>
    %1123 = arith.mulf %1120, %1122 : vector<3x128xf32>
    %1124 = arith.addf %1112, %1123 : vector<3x128xf32>
    %c5_639 = arith.constant 5 : index
    %c0_640 = arith.constant 0 : index
    %c0_641 = arith.constant 0 : index
    %1125 = vector.load %arg10[%c5_639, %c0_640, %c0_641] : memref<8x3x128xf32, #tpu.memory_space<vmem>>, vector<1x3x128xf32>
    %1126 = vector.shape_cast %1125 : vector<1x3x128xf32> to vector<3x128xf32>
    %1127 = vector.extract_strided_slice %1096 {offsets = [5, 0], sizes = [1, 128], strides = [1, 1]} : vector<8x128xf32> to vector<1x128xf32>
    %1128 = vector.broadcast %1127 : vector<1x128xf32> to vector<3x128xf32>
    %1129 = arith.mulf %1126, %1128 : vector<3x128xf32>
    %1130 = arith.addf %1118, %1129 : vector<3x128xf32>
    %c6_642 = arith.constant 6 : index
    %c0_643 = arith.constant 0 : index
    %c0_644 = arith.constant 0 : index
    %1131 = vector.load %arg10[%c6_642, %c0_643, %c0_644] : memref<8x3x128xf32, #tpu.memory_space<vmem>>, vector<1x3x128xf32>
    %1132 = vector.shape_cast %1131 : vector<1x3x128xf32> to vector<3x128xf32>
    %1133 = vector.extract_strided_slice %1096 {offsets = [6, 0], sizes = [1, 128], strides = [1, 1]} : vector<8x128xf32> to vector<1x128xf32>
    %1134 = vector.broadcast %1133 : vector<1x128xf32> to vector<3x128xf32>
    %1135 = arith.mulf %1132, %1134 : vector<3x128xf32>
    %1136 = arith.addf %1124, %1135 : vector<3x128xf32>
    %c7_645 = arith.constant 7 : index
    %c0_646 = arith.constant 0 : index
    %c0_647 = arith.constant 0 : index
    %1137 = vector.load %arg10[%c7_645, %c0_646, %c0_647] : memref<8x3x128xf32, #tpu.memory_space<vmem>>, vector<1x3x128xf32>
    %1138 = vector.shape_cast %1137 : vector<1x3x128xf32> to vector<3x128xf32>
    %1139 = vector.extract_strided_slice %1096 {offsets = [7, 0], sizes = [1, 128], strides = [1, 1]} : vector<8x128xf32> to vector<1x128xf32>
    %1140 = vector.broadcast %1139 : vector<1x128xf32> to vector<3x128xf32>
    %1141 = arith.mulf %1138, %1140 : vector<3x128xf32>
    %1142 = arith.addf %1130, %1141 : vector<3x128xf32>
    %1143 = arith.addf %1136, %1142 : vector<3x128xf32>
    %1144 = vector.extract_strided_slice %0 {offsets = [0, 0], sizes = [3, 128], strides = [1, 1]} : vector<8x128xf32> to vector<3x128xf32>
    %1145 = arith.addf %1144, %1143 : vector<3x128xf32>
    %c0_648 = arith.constant 0 : index
    %c0_649 = arith.constant 0 : index
    %1146 = vector.load %arg11[%c0_648, %c0_649] : memref<3x128xf32, #tpu.memory_space<vmem>>, vector<3x128xf32>
    tpu.vector_store %arg11[%c0_648, %c0_649], %1145 {strides = array<i32>} : memref<3x128xf32, #tpu.memory_space<vmem>>, vector<3x128xf32>,
    return
  }
}

</mosaic_0001>

<llo_original>
// kernel: tile.13
$region0: #{tile.13}
  #allocation0 [shape = 's32[1]{0}', space=sflag, size = 0x4, scoped, tag = 'scoped memory for tile.13']
  %s0 = inlined_call_operand.vmem [shape: f32[8], index: 0, kind: input, shape index: {}]
  %s1 = inlined_call_operand.vmem [shape: f32[16,8], index: 1, kind: output, shape index: {}]
  // Predicated region
  $region2: #{tile.13} parent=0 // pred_check
    _
  $region3: #{tile.13} parent=0 // pred_check_branch
    %3 = sbr.rel (0) target = $region5
  $region4: #{tile.13} parent=0 // pred_region
    _
  $region5: #{tile.13} parent=0 // pred_fallthru
    _
  %v4 = vld [vmem:[%s0] ss:$0 sm:$0xff]
  %5 = vst [vmem:[%s1] sm:$0xff] %v4
  %s6 = scalar_lea.vmem %s1, 8
  %7 = vst [vmem:[%s6] sm:$0xff] %v4

// kernel: chromanet_forward.1
$region0: #{chromanet_forward.1}
  #allocation0 [shape = 'u32[]', space=smem, size = 0x4, offset = 0x4, fixed_abs, tag = 'smem constant byte address 0x4 - core index']
  #allocation1 [shape = 'u32[144,128]{1,0:T(1,128)}', space=vmem, size = 0x12000, scoped, tag = 'internal scratch']
  %s0 = inlined_call_operand.vmem [shape: f32[8,128], index: 0, kind: input, shape index: {}]
  %s1 = inlined_call_operand.vmem [shape: f32[9,3,8,128], index: 1, kind: input, shape index: {}]
  %s2 = inlined_call_operand.vmem [shape: f32[152,128], index: 2, kind: input, shape index: {}]
  %s3 = inlined_call_operand.vmem [shape: f32[49,8,128], index: 3, kind: input, shape index: {}]
  %s4 = inlined_call_operand.vmem [shape: f32[8,16,128], index: 4, kind: input, shape index: {}]
  %s5 = inlined_call_operand.vmem [shape: f32[16,8,128], index: 5, kind: input, shape index: {}]
  %s6 = inlined_call_operand.vmem [shape: f32[8,8,128], index: 6, kind: input, shape index: {}]
  %s7 = inlined_call_operand.vmem [shape: f32[49,8,128], index: 7, kind: input, shape index: {}]
  %s8 = inlined_call_operand.vmem [shape: f32[8,16,128], index: 8, kind: input, shape index: {}]
  %s9 = inlined_call_operand.vmem [shape: f32[16,8,128], index: 9, kind: input, shape index: {}]
  %s10 = inlined_call_operand.vmem [shape: f32[8,3,128], index: 10, kind: input, shape index: {}]
  %s11 = inlined_call_operand.vmem [shape: f32[3,128], index: 11, kind: output, shape index: {}]
  %s12 = sld [smem:[#allocation0]]
  $region54: #{chromanet_forward.1} parent=0
    _
  %s14 = ssub.s32 1, %s12
  %s15 = scalar_select 0, %s14, %s12
  // Predicated region
  $region2: #{chromanet_forward.1} parent=0 // pred_check
    _
  $region3: #{chromanet_forward.1} parent=0 // pred_check_branch
    %17 = sbr.rel (0) target = $region5
  $region4: #{chromanet_forward.1} parent=0 // pred_region
    _
  $region5: #{chromanet_forward.1} parent=0 // pred_fallthru
    _
  // Predicated region
  $region6: #{chromanet_forward.1} parent=0 // pred_check
    _
  $region7: #{chromanet_forward.1} parent=0 // pred_check_branch
    %19 = sbr.rel (0) target = $region9
  $region8: #{chromanet_forward.1} parent=0 // pred_region
    _
  $region9: #{chromanet_forward.1} parent=0 // pred_fallthru
    _
  // Predicated region
  $region10: #{chromanet_forward.1} parent=0 // pred_check
    _
  $region11: #{chromanet_forward.1} parent=0 // pred_check_branch
    %21 = sbr.rel (0) target = $region13
  $region12: #{chromanet_forward.1} parent=0 // pred_region
    _
  $region13: #{chromanet_forward.1} parent=0 // pred_fallthru
    _
  // Predicated region
  $region14: #{chromanet_forward.1} parent=0 // pred_check
    _
  $region15: #{chromanet_forward.1} parent=0 // pred_check_branch
    %23 = sbr.rel (0) target = $region17
  $region16: #{chromanet_forward.1} parent=0 // pred_region
    _
  $region17: #{chromanet_forward.1} parent=0 // pred_fallthru
    _
  // Predicated region
  $region18: #{chromanet_forward.1} parent=0 // pred_check
    _
  $region19: #{chromanet_forward.1} parent=0 // pred_check_branch
    %25 = sbr.rel (0) target = $region21
  $region20: #{chromanet_forward.1} parent=0 // pred_region
    _
  $region21: #{chromanet_forward.1} parent=0 // pred_fallthru
    _
  // Predicated region
  $region22: #{chromanet_forward.1} parent=0 // pred_check
    _
  $region23: #{chromanet_forward.1} parent=0 // pred_check_branch
    %27 = sbr.rel (0) target = $region25
  $region24: #{chromanet_forward.1} parent=0 // pred_region
    _
  $region25: #{chromanet_forward.1} parent=0 // pred_fallthru
    _
  // Predicated region
  $region26: #{chromanet_forward.1} parent=0 // pred_check
    _
  $region27: #{chromanet_forward.1} parent=0 // pred_check_branch
    %29 = sbr.rel (0) target = $region29
  $region28: #{chromanet_forward.1} parent=0 // pred_region
    _
  $region29: #{chromanet_forward.1} parent=0 // pred_fallthru
    _
  // Predicated region
  $region30: #{chromanet_forward.1} parent=0 // pred_check
    _
  $region31: #{chromanet_forward.1} parent=0 // pred_check_branch
    %31 = sbr.rel (0) target = $region33
  $region32: #{chromanet_forward.1} parent=0 // pred_region
    _
  $region33: #{chromanet_forward.1} parent=0 // pred_fallthru
    _
  // Predicated region
  $region34: #{chromanet_forward.1} parent=0 // pred_check
    _
  $region35: #{chromanet_forward.1} parent=0 // pred_check_branch
    %33 = sbr.rel (0) target = $region37
  $region36: #{chromanet_forward.1} parent=0 // pred_region
    _
  $region37: #{chromanet_forward.1} parent=0 // pred_fallthru
    _
  // Predicated region
  $region38: #{chromanet_forward.1} parent=0 // pred_check
    _
  $region39: #{chromanet_forward.1} parent=0 // pred_check_branch
    %35 = sbr.rel (0) target = $region41
  $region40: #{chromanet_forward.1} parent=0 // pred_region
    _
  $region41: #{chromanet_forward.1} parent=0 // pred_fallthru
    _
  // Predicated region
  $region42: #{chromanet_forward.1} parent=0 // pred_check
    _
  $region43: #{chromanet_forward.1} parent=0 // pred_check_branch
    %37 = sbr.rel (0) target = $region45
  $region44: #{chromanet_forward.1} parent=0 // pred_region
    _
  $region45: #{chromanet_forward.1} parent=0 // pred_fallthru
    _
  %v38 = vld [vmem:[%s0] sm:$0xff]
  %39 = vrot.lane.b32.xlu0 %v38, 9
  %v40 = vpop.permute.xlu0 %39
  %v41 = vld [vmem:[%s1] sm:$0xff]
  %v42 = vlaneseq
  %v43 = vshrl.u32 %v42, 7
  %v44 = vsub.s32 0, %v43
  %v45 = vrot.slane %v40, %v44
  %v46 = vmul.f32 %v41, %v45
  %s47 = scalar_lea.vmem %s1, 8
  %v48 = vld [vmem:[%s47] sm:$0xff]
  %v49 = vlaneseq
  %v50 = vshrl.u32 %v49, 7
  %v51 = vsub.s32 1, %v50
  %v52 = vrot.slane %v40, %v51
  %v53 = vmul.f32 %v48, %v52
  %v54 = vadd.f32 %v46, %v53
  %s55 = scalar_lea.vmem %s1, 16
  %v56 = vld [vmem:[%s55] sm:$0xff]
  %v57 = vlaneseq
  %v58 = vshrl.u32 %v57, 7
  %v59 = vsub.s32 2, %v58
  %v60 = vrot.slane %v40, %v59
  %v61 = vmul.f32 %v56, %v60
  %v62 = vadd.f32 %v54, %v61
  %63 = vrot.lane.b32.xlu0 %v38, 8
  %v64 = vpop.permute.xlu0 %63
  %s65 = scalar_lea.vmem %s1, 24
  %v66 = vld [vmem:[%s65] sm:$0xff]
  %v67 = vlaneseq
  %v68 = vshrl.u32 %v67, 7
  %v69 = vsub.s32 0, %v68
  %v70 = vrot.slane %v64, %v69
  %v71 = vmul.f32 %v66, %v70
  %s72 = scalar_lea.vmem %s1, 32
  %v73 = vld [vmem:[%s72] sm:$0xff]
  %v74 = vlaneseq
  %v75 = vshrl.u32 %v74, 7
  %v76 = vsub.s32 1, %v75
  %v77 = vrot.slane %v64, %v76
  %v78 = vmul.f32 %v73, %v77
  %v79 = vadd.f32 %v71, %v78
  %s80 = scalar_lea.vmem %s1, 40
  %v81 = vld [vmem:[%s80] sm:$0xff]
  %v82 = vlaneseq
  %v83 = vshrl.u32 %v82, 7
  %v84 = vsub.s32 2, %v83
  %v85 = vrot.slane %v64, %v84
  %v86 = vmul.f32 %v81, %v85
  %v87 = vadd.f32 %v79, %v86
  %88 = vrot.lane.b32.xlu0 %v38, 7
  %v89 = vpop.permute.xlu0 %88
  %s90 = scalar_lea.vmem %s1, 48
  %v91 = vld [vmem:[%s90] sm:$0xff]
  %v92 = vlaneseq
  %v93 = vshrl.u32 %v92, 7
  %v94 = vsub.s32 0, %v93
  %v95 = vrot.slane %v89, %v94
  %v96 = vmul.f32 %v91, %v95
  %s97 = scalar_lea.vmem %s1, 56
  %v98 = vld [vmem:[%s97] sm:$0xff]
  %v99 = vlaneseq
  %v100 = vshrl.u32 %v99, 7
  %v101 = vsub.s32 1, %v100
  %v102 = vrot.slane %v89, %v101
  %v103 = vmul.f32 %v98, %v102
  %v104 = vadd.f32 %v96, %v103
  %s105 = scalar_lea.vmem %s1, 64
  %v106 = vld [vmem:[%s105] sm:$0xff]
  %v107 = vlaneseq
  %v108 = vshrl.u32 %v107, 7
  %v109 = vsub.s32 2, %v108
  %v110 = vrot.slane %v89, %v109
  %v111 = vmul.f32 %v106, %v110
  %v112 = vadd.f32 %v104, %v111
  %113 = vrot.lane.b32.xlu0 %v38, 1
  %v114 = vpop.permute.xlu0 %113
  %s115 = scalar_lea.vmem %s1, 72
  %v116 = vld [vmem:[%s115] sm:$0xff]
  %v117 = vlaneseq
  %v118 = vshrl.u32 %v117, 7
  %v119 = vsub.s32 0, %v118
  %v120 = vrot.slane %v114, %v119
  %v121 = vmul.f32 %v116, %v120
  %v122 = vadd.f32 %v62, %v121
  %s123 = scalar_lea.vmem %s1, 80
  %v124 = vld [vmem:[%s123] sm:$0xff]
  %v125 = vlaneseq
  %v126 = vshrl.u32 %v125, 7
  %v127 = vsub.s32 1, %v126
  %v128 = vrot.slane %v114, %v127
  %v129 = vmul.f32 %v124, %v128
  %v130 = vadd.f32 %v122, %v129
  %s131 = scalar_lea.vmem %s1, 88
  %v132 = vld [vmem:[%s131] sm:$0xff]
  %v133 = vlaneseq
  %v134 = vshrl.u32 %v133, 7
  %v135 = vsub.s32 2, %v134
  %v136 = vrot.slane %v114, %v135
  %v137 = vmul.f32 %v132, %v136
  %v138 = vadd.f32 %v130, %v137
  %s139 = scalar_lea.vmem %s1, 96
  %v140 = vld [vmem:[%s139] sm:$0xff]
  %v141 = vlaneseq
  %v142 = vshrl.u32 %v141, 7
  %v143 = vsub.s32 0, %v142
  %v144 = vrot.slane %v38, %v143
  %v145 = vmul.f32 %v140, %v144
  %v146 = vadd.f32 %v87, %v145
  %s147 = scalar_lea.vmem %s1, 104
  %v148 = vld [vmem:[%s147] sm:$0xff]
  %v149 = vlaneseq
  %v150 = vshrl.u32 %v149, 7
  %v151 = vsub.s32 1, %v150
  %v152 = vrot.slane %v38, %v151
  %v153 = vmul.f32 %v148, %v152
  %v154 = vadd.f32 %v146, %v153
  %s155 = scalar_lea.vmem %s1, 112
  %v156 = vld [vmem:[%s155] sm:$0xff]
  %v157 = vlaneseq
  %v158 = vshrl.u32 %v157, 7
  %v159 = vsub.s32 2, %v158
  %v160 = vrot.slane %v38, %v159
  %v161 = vmul.f32 %v156, %v160
  %v162 = vadd.f32 %v154, %v161
  %163 = vrot.lane.b32.xlu0 %v38, 127
  %v164 = vpop.permute.xlu0 %163
  %s165 = scalar_lea.vmem %s1, 120
  %v166 = vld [vmem:[%s165] sm:$0xff]
  %v167 = vlaneseq
  %v168 = vshrl.u32 %v167, 7
  %v169 = vsub.s32 0, %v168
  %v170 = vrot.slane %v164, %v169
  %v171 = vmul.f32 %v166, %v170
  %v172 = vadd.f32 %v112, %v171
  %s173 = scalar_lea.vmem %s1, 128
  %v174 = vld [vmem:[%s173] sm:$0xff]
  %v175 = vlaneseq
  %v176 = vshrl.u32 %v175, 7
  %v177 = vsub.s32 1, %v176
  %v178 = vrot.slane %v164, %v177
  %v179 = vmul.f32 %v174, %v178
  %v180 = vadd.f32 %v172, %v179
  %s181 = scalar_lea.vmem %s1, 136
  %v182 = vld [vmem:[%s181] sm:$0xff]
  %v183 = vlaneseq
  %v184 = vshrl.u32 %v183, 7
  %v185 = vsub.s32 2, %v184
  %v186 = vrot.slane %v164, %v185
  %v187 = vmul.f32 %v182, %v186
  %v188 = vadd.f32 %v180, %v187
  %189 = vrot.lane.b32.xlu0 %v38, 121
  %v190 = vpop.permute.xlu0 %189
  %s191 = scalar_lea.vmem %s1, 144
  %v192 = vld [vmem:[%s191] sm:$0xff]
  %v193 = vlaneseq
  %v194 = vshrl.u32 %v193, 7
  %v195 = vsub.s32 0, %v194
  %v196 = vrot.slane %v190, %v195
  %v197 = vmul.f32 %v192, %v196
  %v198 = vadd.f32 %v138, %v197
  %s199 = scalar_lea.vmem %s1, 152
  %v200 = vld [vmem:[%s199] sm:$0xff]
  %v201 = vlaneseq
  %v202 = vshrl.u32 %v201, 7
  %v203 = vsub.s32 1, %v202
  %v204 = vrot.slane %v190, %v203
  %v205 = vmul.f32 %v200, %v204
  %v206 = vadd.f32 %v198, %v205
  %s207 = scalar_lea.vmem %s1, 160
  %v208 = vld [vmem:[%s207] sm:$0xff]
  %v209 = vlaneseq
  %v210 = vshrl.u32 %v209, 7
  %v211 = vsub.s32 2, %v210
  %v212 = vrot.slane %v190, %v211
  %v213 = vmul.f32 %v208, %v212
  %v214 = vadd.f32 %v206, %v213
  %215 = vrot.lane.b32.xlu0 %v38, 120
  %v216 = vpop.permute.xlu0 %215
  %s217 = scalar_lea.vmem %s1, 168
  %v218 = vld [vmem:[%s217] sm:$0xff]
  %v219 = vlaneseq
  %v220 = vshrl.u32 %v219, 7
  %v221 = vsub.s32 0, %v220
  %v222 = vrot.slane %v216, %v221
  %v223 = vmul.f32 %v218, %v222
  %v224 = vadd.f32 %v162, %v223
  %s225 = scalar_lea.vmem %s1, 176
  %v226 = vld [vmem:[%s225] sm:$0xff]
  %v227 = vlaneseq
  %v228 = vshrl.u32 %v227, 7
  %v229 = vsub.s32 1, %v228
  %v230 = vrot.slane %v216, %v229
  %v231 = vmul.f32 %v226, %v230
  %v232 = vadd.f32 %v224, %v231
  %s233 = scalar_lea.vmem %s1, 184
  %v234 = vld [vmem:[%s233] sm:$0xff]
  %v235 = vlaneseq
  %v236 = vshrl.u32 %v235, 7
  %v237 = vsub.s32 2, %v236
  %v238 = vrot.slane %v216, %v237
  %v239 = vmul.f32 %v234, %v238
  %v240 = vadd.f32 %v232, %v239
  %241 = vrot.lane.b32.xlu0 %v38, 119
  %v242 = vpop.permute.xlu0 %241
  %s243 = scalar_lea.vmem %s1, 192
  %v244 = vld [vmem:[%s243] sm:$0xff]
  %v245 = vlaneseq
  %v246 = vshrl.u32 %v245, 7
  %v247 = vsub.s32 0, %v246
  %v248 = vrot.slane %v242, %v247
  %v249 = vmul.f32 %v244, %v248
  %v250 = vadd.f32 %v188, %v249
  %s251 = scalar_lea.vmem %s1, 200
  %v252 = vld [vmem:[%s251] sm:$0xff]
  %v253 = vlaneseq
  %v254 = vshrl.u32 %v253, 7
  %v255 = vsub.s32 1, %v254
  %v256 = vrot.slane %v242, %v255
  %v257 = vmul.f32 %v252, %v256
  %v258 = vadd.f32 %v250, %v257
  %s259 = scalar_lea.vmem %s1, 208
  %v260 = vld [vmem:[%s259] sm:$0xff]
  %v261 = vlaneseq
  %v262 = vshrl.u32 %v261, 7
  %v263 = vsub.s32 2, %v262
  %v264 = vrot.slane %v242, %v263
  %v265 = vmul.f32 %v260, %v264
  %v266 = vadd.f32 %v258, %v265
  %v267 = vadd.f32 %v214, %v240
  %v268 = vadd.f32 %v267, %v266
  %v269 = vld [vmem:[%s2] sm:$0xff]
  %v270 = vadd.f32 %v268, %v269
  %v271 = vld [vmem:[%s2 + $0x8] sm:$0xff]
  %v272 = vld [vmem:[%s2 + $0x10] sm:$0xff]
  %v273 = vrot.slane %v270, 4
  %v274 = vadd.f32 %v270, %v273
  %v275 = vrot.slane %v274, 2
  %v276 = vadd.f32 %v274, %v275
  %v277 = vrot.slane %v276, 1
  %v278 = vadd.f32 %v276, %v277
  %v279 = vrcp.pop 8.0
  %v280 = vmul.f32 %v278, %v279
  %v281 = vsub.f32 %v270, %v280
  %v282 = vmul.f32 %v281, %v281
  %v283 = vrot.slane %v282, 4
  %v284 = vadd.f32 %v282, %v283
  %v285 = vrot.slane %v284, 2
  %v286 = vadd.f32 %v284, %v285
  %v287 = vrot.slane %v286, 1
  %v288 = vadd.f32 %v286, %v287
  %v289 = vmul.f32 %v288, %v279
  %v290 = vadd.f32 %v289, 1e-05
  %v291 = vrsqrt.pop %v290
  %v292 = vmul.f32 %v281, %v291
  %v293 = vmul.f32 %v292, %v271
  %v294 = vadd.f32 %v293, %v272
  %295 = vrot.lane.b32.xlu0 %v294, 27
  %v296 = vpop.permute.xlu0 %295
  %v297 = vld [vmem:[%s3] sm:$0xff]
  %v298 = vmul.f32 %v297, %v296
  %299 = vrot.lane.b32.xlu0 %v294, 26
  %v300 = vpop.permute.xlu0 %299
  %s301 = scalar_lea.vmem %s3, 8
  %v302 = vld [vmem:[%s301] sm:$0xff]
  %v303 = vmul.f32 %v302, %v300
  %304 = vrot.lane.b32.xlu0 %v294, 25
  %v305 = vpop.permute.xlu0 %304
  %s306 = scalar_lea.vmem %s3, 16
  %v307 = vld [vmem:[%s306] sm:$0xff]
  %v308 = vmul.f32 %v307, %v305
  %309 = vrot.lane.b32.xlu0 %v294, 24
  %v310 = vpop.permute.xlu0 %309
  %s311 = scalar_lea.vmem %s3, 24
  %v312 = vld [vmem:[%s311] sm:$0xff]
  %v313 = vmul.f32 %v312, %v310
  %314 = vrot.lane.b32.xlu0 %v294, 23
  %v315 = vpop.permute.xlu0 %314
  %s316 = scalar_lea.vmem %s3, 32
  %v317 = vld [vmem:[%s316] sm:$0xff]
  %v318 = vmul.f32 %v317, %v315
  %v319 = vadd.f32 %v298, %v318
  %320 = vrot.lane.b32.xlu0 %v294, 22
  %v321 = vpop.permute.xlu0 %320
  %s322 = scalar_lea.vmem %s3, 40
  %v323 = vld [vmem:[%s322] sm:$0xff]
  %v324 = vmul.f32 %v323, %v321
  %v325 = vadd.f32 %v303, %v324
  %326 = vrot.lane.b32.xlu0 %v294, 21
  %v327 = vpop.permute.xlu0 %326
  %s328 = scalar_lea.vmem %s3, 48
  %v329 = vld [vmem:[%s328] sm:$0xff]
  %v330 = vmul.f32 %v329, %v327
  %v331 = vadd.f32 %v308, %v330
  %332 = vrot.lane.b32.xlu0 %v294, 19
  %v333 = vpop.permute.xlu0 %332
  %s334 = scalar_lea.vmem %s3, 56
  %v335 = vld [vmem:[%s334] sm:$0xff]
  %v336 = vmul.f32 %v335, %v333
  %v337 = vadd.f32 %v313, %v336
  %338 = vrot.lane.b32.xlu0 %v294, 18
  %v339 = vpop.permute.xlu0 %338
  %s340 = scalar_lea.vmem %s3, 64
  %v341 = vld [vmem:[%s340] sm:$0xff]
  %v342 = vmul.f32 %v341, %v339
  %v343 = vadd.f32 %v319, %v342
  %344 = vrot.lane.b32.xlu0 %v294, 17
  %v345 = vpop.permute.xlu0 %344
  %s346 = scalar_lea.vmem %s3, 72
  %v347 = vld [vmem:[%s346] sm:$0xff]
  %v348 = vmul.f32 %v347, %v345
  %v349 = vadd.f32 %v325, %v348
  %350 = vrot.lane.b32.xlu0 %v294, 16
  %v351 = vpop.permute.xlu0 %350
  %s352 = scalar_lea.vmem %s3, 80
  %v353 = vld [vmem:[%s352] sm:$0xff]
  %v354 = vmul.f32 %v353, %v351
  %v355 = vadd.f32 %v331, %v354
  %356 = vrot.lane.b32.xlu0 %v294, 15
  %v357 = vpop.permute.xlu0 %356
  %s358 = scalar_lea.vmem %s3, 88
  %v359 = vld [vmem:[%s358] sm:$0xff]
  %v360 = vmul.f32 %v359, %v357
  %v361 = vadd.f32 %v337, %v360
  %362 = vrot.lane.b32.xlu0 %v294, 14
  %v363 = vpop.permute.xlu0 %362
  %s364 = scalar_lea.vmem %s3, 96
  %v365 = vld [vmem:[%s364] sm:$0xff]
  %v366 = vmul.f32 %v365, %v363
  %v367 = vadd.f32 %v343, %v366
  %368 = vrot.lane.b32.xlu0 %v294, 13
  %v369 = vpop.permute.xlu0 %368
  %s370 = scalar_lea.vmem %s3, 104
  %v371 = vld [vmem:[%s370] sm:$0xff]
  %v372 = vmul.f32 %v371, %v369
  %v373 = vadd.f32 %v349, %v372
  %374 = vrot.lane.b32.xlu0 %v294, 11
  %v375 = vpop.permute.xlu0 %374
  %s376 = scalar_lea.vmem %s3, 112
  %v377 = vld [vmem:[%s376] sm:$0xff]
  %v378 = vmul.f32 %v377, %v375
  %v379 = vadd.f32 %v355, %v378
  %380 = vrot.lane.b32.xlu0 %v294, 10
  %v381 = vpop.permute.xlu0 %380
  %s382 = scalar_lea.vmem %s3, 120
  %v383 = vld [vmem:[%s382] sm:$0xff]
  %v384 = vmul.f32 %v383, %v381
  %v385 = vadd.f32 %v361, %v384
  %386 = vrot.lane.b32.xlu0 %v294, 9
  %v387 = vpop.permute.xlu0 %386
  %s388 = scalar_lea.vmem %s3, 128
  %v389 = vld [vmem:[%s388] sm:$0xff]
  %v390 = vmul.f32 %v389, %v387
  %v391 = vadd.f32 %v367, %v390
  %392 = vrot.lane.b32.xlu0 %v294, 8
  %v393 = vpop.permute.xlu0 %392
  %s394 = scalar_lea.vmem %s3, 136
  %v395 = vld [vmem:[%s394] sm:$0xff]
  %v396 = vmul.f32 %v395, %v393
  %v397 = vadd.f32 %v373, %v396
  %398 = vrot.lane.b32.xlu0 %v294, 7
  %v399 = vpop.permute.xlu0 %398
  %s400 = scalar_lea.vmem %s3, 144
  %v401 = vld [vmem:[%s400] sm:$0xff]
  %v402 = vmul.f32 %v401, %v399
  %v403 = vadd.f32 %v379, %v402
  %404 = vrot.lane.b32.xlu0 %v294, 6
  %v405 = vpop.permute.xlu0 %404
  %s406 = scalar_lea.vmem %s3, 152
  %v407 = vld [vmem:[%s406] sm:$0xff]
  %v408 = vmul.f32 %v407, %v405
  %v409 = vadd.f32 %v385, %v408
  %410 = vrot.lane.b32.xlu0 %v294, 5
  %v411 = vpop.permute.xlu0 %410
  %s412 = scalar_lea.vmem %s3, 160
  %v413 = vld [vmem:[%s412] sm:$0xff]
  %v414 = vmul.f32 %v413, %v411
  %v415 = vadd.f32 %v391, %v414
  %416 = vrot.lane.b32.xlu0 %v294, 3
  %v417 = vpop.permute.xlu0 %416
  %s418 = scalar_lea.vmem %s3, 168
  %v419 = vld [vmem:[%s418] sm:$0xff]
  %v420 = vmul.f32 %v419, %v417
  %v421 = vadd.f32 %v397, %v420
  %422 = vrot.lane.b32.xlu0 %v294, 2
  %v423 = vpop.permute.xlu0 %422
  %s424 = scalar_lea.vmem %s3, 176
  %v425 = vld [vmem:[%s424] sm:$0xff]
  %v426 = vmul.f32 %v425, %v423
  %v427 = vadd.f32 %v403, %v426
  %428 = vrot.lane.b32.xlu0 %v294, 1
  %v429 = vpop.permute.xlu0 %428
  %s430 = scalar_lea.vmem %s3, 184
  %v431 = vld [vmem:[%s430] sm:$0xff]
  %v432 = vmul.f32 %v431, %v429
  %v433 = vadd.f32 %v409, %v432
  %s434 = scalar_lea.vmem %s3, 192
  %v435 = vld [vmem:[%s434] sm:$0xff]
  %v436 = vmul.f32 %v435, %v294
  %v437 = vadd.f32 %v415, %v436
  %438 = vrot.lane.b32.xlu0 %v294, 127
  %v439 = vpop.permute.xlu0 %438
  %s440 = scalar_lea.vmem %s3, 200
  %v441 = vld [vmem:[%s440] sm:$0xff]
  %v442 = vmul.f32 %v441, %v439
  %v443 = vadd.f32 %v421, %v442
  %444 = vrot.lane.b32.xlu0 %v294, 126
  %v445 = vpop.permute.xlu0 %444
  %s446 = scalar_lea.vmem %s3, 208
  %v447 = vld [vmem:[%s446] sm:$0xff]
  %v448 = vmul.f32 %v447, %v445
  %v449 = vadd.f32 %v427, %v448
  %450 = vrot.lane.b32.xlu0 %v294, 125
  %v451 = vpop.permute.xlu0 %450
  %s452 = scalar_lea.vmem %s3, 216
  %v453 = vld [vmem:[%s452] sm:$0xff]
  %v454 = vmul.f32 %v453, %v451
  %v455 = vadd.f32 %v433, %v454
  %456 = vrot.lane.b32.xlu0 %v294, 123
  %v457 = vpop.permute.xlu0 %456
  %s458 = scalar_lea.vmem %s3, 224
  %v459 = vld [vmem:[%s458] sm:$0xff]
  %v460 = vmul.f32 %v459, %v457
  %v461 = vadd.f32 %v437, %v460
  %462 = vrot.lane.b32.xlu0 %v294, 122
  %v463 = vpop.permute.xlu0 %462
  %s464 = scalar_lea.vmem %s3, 232
  %v465 = vld [vmem:[%s464] sm:$0xff]
  %v466 = vmul.f32 %v465, %v463
  %v467 = vadd.f32 %v443, %v466
  %468 = vrot.lane.b32.xlu0 %v294, 121
  %v469 = vpop.permute.xlu0 %468
  %s470 = scalar_lea.vmem %s3, 240
  %v471 = vld [vmem:[%s470] sm:$0xff]
  %v472 = vmul.f32 %v471, %v469
  %v473 = vadd.f32 %v449, %v472
  %474 = vrot.lane.b32.xlu0 %v294, 120
  %v475 = vpop.permute.xlu0 %474
  %s476 = scalar_lea.vmem %s3, 248
  %v477 = vld [vmem:[%s476] sm:$0xff]
  %v478 = vmul.f32 %v477, %v475
  %v479 = vadd.f32 %v455, %v478
  %480 = vrot.lane.b32.xlu0 %v294, 119
  %v481 = vpop.permute.xlu0 %480
  %s482 = scalar_lea.vmem %s3, 256
  %v483 = vld [vmem:[%s482] sm:$0xff]
  %v484 = vmul.f32 %v483, %v481
  %v485 = vadd.f32 %v461, %v484
  %486 = vrot.lane.b32.xlu0 %v294, 118
  %v487 = vpop.permute.xlu0 %486
  %s488 = scalar_lea.vmem %s3, 264
  %v489 = vld [vmem:[%s488] sm:$0xff]
  %v490 = vmul.f32 %v489, %v487
  %v491 = vadd.f32 %v467, %v490
  %492 = vrot.lane.b32.xlu0 %v294, 117
  %v493 = vpop.permute.xlu0 %492
  %s494 = scalar_lea.vmem %s3, 272
  %v495 = vld [vmem:[%s494] sm:$0xff]
  %v496 = vmul.f32 %v495, %v493
  %v497 = vadd.f32 %v473, %v496
  %498 = vrot.lane.b32.xlu0 %v294, 115
  %v499 = vpop.permute.xlu0 %498
  %s500 = scalar_lea.vmem %s3, 280
  %v501 = vld [vmem:[%s500] sm:$0xff]
  %v502 = vmul.f32 %v501, %v499
  %v503 = vadd.f32 %v479, %v502
  %504 = vrot.lane.b32.xlu0 %v294, 114
  %v505 = vpop.permute.xlu0 %504
  %s506 = scalar_lea.vmem %s3, 288
  %v507 = vld [vmem:[%s506] sm:$0xff]
  %v508 = vmul.f32 %v507, %v505
  %v509 = vadd.f32 %v485, %v508
  %510 = vrot.lane.b32.xlu0 %v294, 113
  %v511 = vpop.permute.xlu0 %510
  %s512 = scalar_lea.vmem %s3, 296
  %v513 = vld [vmem:[%s512] sm:$0xff]
  %v514 = vmul.f32 %v513, %v511
  %v515 = vadd.f32 %v491, %v514
  %516 = vrot.lane.b32.xlu0 %v294, 112
  %v517 = vpop.permute.xlu0 %516
  %s518 = scalar_lea.vmem %s3, 304
  %v519 = vld [vmem:[%s518] sm:$0xff]
  %v520 = vmul.f32 %v519, %v517
  %v521 = vadd.f32 %v497, %v520
  %522 = vrot.lane.b32.xlu0 %v294, 111
  %v523 = vpop.permute.xlu0 %522
  %s524 = scalar_lea.vmem %s3, 312
  %v525 = vld [vmem:[%s524] sm:$0xff]
  %v526 = vmul.f32 %v525, %v523
  %v527 = vadd.f32 %v503, %v526
  %528 = vrot.lane.b32.xlu0 %v294, 110
  %v529 = vpop.permute.xlu0 %528
  %s530 = scalar_lea.vmem %s3, 320
  %v531 = vld [vmem:[%s530] sm:$0xff]
  %v532 = vmul.f32 %v531, %v529
  %v533 = vadd.f32 %v509, %v532
  %534 = vrot.lane.b32.xlu0 %v294, 109
  %v535 = vpop.permute.xlu0 %534
  %s536 = scalar_lea.vmem %s3, 328
  %v537 = vld [vmem:[%s536] sm:$0xff]
  %v538 = vmul.f32 %v537, %v535
  %v539 = vadd.f32 %v515, %v538
  %540 = vrot.lane.b32.xlu0 %v294, 107
  %v541 = vpop.permute.xlu0 %540
  %s542 = scalar_lea.vmem %s3, 336
  %v543 = vld [vmem:[%s542] sm:$0xff]
  %v544 = vmul.f32 %v543, %v541
  %v545 = vadd.f32 %v521, %v544
  %546 = vrot.lane.b32.xlu0 %v294, 106
  %v547 = vpop.permute.xlu0 %546
  %s548 = scalar_lea.vmem %s3, 344
  %v549 = vld [vmem:[%s548] sm:$0xff]
  %v550 = vmul.f32 %v549, %v547
  %v551 = vadd.f32 %v527, %v550
  %552 = vrot.lane.b32.xlu0 %v294, 105
  %v553 = vpop.permute.xlu0 %552
  %s554 = scalar_lea.vmem %s3, 352
  %v555 = vld [vmem:[%s554] sm:$0xff]
  %v556 = vmul.f32 %v555, %v553
  %v557 = vadd.f32 %v533, %v556
  %558 = vrot.lane.b32.xlu0 %v294, 104
  %v559 = vpop.permute.xlu0 %558
  %s560 = scalar_lea.vmem %s3, 360
  %v561 = vld [vmem:[%s560] sm:$0xff]
  %v562 = vmul.f32 %v561, %v559
  %v563 = vadd.f32 %v539, %v562
  %564 = vrot.lane.b32.xlu0 %v294, 103
  %v565 = vpop.permute.xlu0 %564
  %s566 = scalar_lea.vmem %s3, 368
  %v567 = vld [vmem:[%s566] sm:$0xff]
  %v568 = vmul.f32 %v567, %v565
  %v569 = vadd.f32 %v545, %v568
  %570 = vrot.lane.b32.xlu0 %v294, 102
  %v571 = vpop.permute.xlu0 %570
  %s572 = scalar_lea.vmem %s3, 376
  %v573 = vld [vmem:[%s572] sm:$0xff]
  %v574 = vmul.f32 %v573, %v571
  %v575 = vadd.f32 %v551, %v574
  %576 = vrot.lane.b32.xlu0 %v294, 101
  %v577 = vpop.permute.xlu0 %576
  %s578 = scalar_lea.vmem %s3, 384
  %v579 = vld [vmem:[%s578] sm:$0xff]
  %v580 = vmul.f32 %v579, %v577
  %v581 = vadd.f32 %v557, %v580
  %v582 = vadd.f32 %v581, %v563
  %v583 = vadd.f32 %v569, %v575
  %v584 = vadd.f32 %v582, %v583
  %v585 = vld [vmem:[%s2 + $0x18] sm:$0xff]
  %v586 = vmul.f32 %v584, %v585
  %v587 = vld [vmem:[%s2 + $0x20] sm:$0xff]
  %v588 = vadd.f32 %v586, %v587
  %v589 = vld [vmem:[%s4] sm:$0xff]
  %v590 = vld [vmem:[%s4 + $0x8] sm:$0xff]
  %v591 = vlaneseq
  %v592 = vshrl.u32 %v591, 7
  %v593 = vsub.s32 0, %v592
  %v594 = vrot.slane %v588, %v593
  %v595 = vmul.f32 %v589, %v594
  %v596 = vmul.f32 %v590, %v594
  %s597 = scalar_lea.vmem %s4, 16
  %v598 = vld [vmem:[%s597] sm:$0xff]
  %v599 = vld [vmem:[%s597 + $0x8] sm:$0xff]
  %v600 = vlaneseq
  %v601 = vshrl.u32 %v600, 7
  %v602 = vsub.s32 1, %v601
  %v603 = vrot.slane %v588, %v602
  %v604 = vmul.f32 %v598, %v603
  %v605 = vmul.f32 %v599, %v603
  %s606 = scalar_lea.vmem %s4, 32
  %v607 = vld [vmem:[%s606] sm:$0xff]
  %v608 = vld [vmem:[%s606 + $0x8] sm:$0xff]
  %v609 = vlaneseq
  %v610 = vshrl.u32 %v609, 7
  %v611 = vsub.s32 2, %v610
  %v612 = vrot.slane %v588, %v611
  %v613 = vmul.f32 %v607, %v612
  %v614 = vmul.f32 %v608, %v612
  %v615 = vadd.f32 %v595, %v613
  %v616 = vadd.f32 %v596, %v614
  %s617 = scalar_lea.vmem %s4, 48
  %v618 = vld [vmem:[%s617] sm:$0xff]
  %v619 = vld [vmem:[%s617 + $0x8] sm:$0xff]
  %v620 = vlaneseq
  %v621 = vshrl.u32 %v620, 7
  %v622 = vsub.s32 3, %v621
  %v623 = vrot.slane %v588, %v622
  %v624 = vmul.f32 %v618, %v623
  %v625 = vmul.f32 %v619, %v623
  %v626 = vadd.f32 %v604, %v624
  %v627 = vadd.f32 %v605, %v625
  %s628 = scalar_lea.vmem %s4, 64
  %v629 = vld [vmem:[%s628] sm:$0xff]
  %v630 = vld [vmem:[%s628 + $0x8] sm:$0xff]
  %v631 = vlaneseq
  %v632 = vshrl.u32 %v631, 7
  %v633 = vsub.s32 4, %v632
  %v634 = vrot.slane %v588, %v633
  %v635 = vmul.f32 %v629, %v634
  %v636 = vmul.f32 %v630, %v634
  %v637 = vadd.f32 %v615, %v635
  %v638 = vadd.f32 %v616, %v636
  %s639 = scalar_lea.vmem %s4, 80
  %v640 = vld [vmem:[%s639] sm:$0xff]
  %v641 = vld [vmem:[%s639 + $0x8] sm:$0xff]
  %v642 = vlaneseq
  %v643 = vshrl.u32 %v642, 7
  %v644 = vsub.s32 5, %v643
  %v645 = vrot.slane %v588, %v644
  %v646 = vmul.f32 %v640, %v645
  %v647 = vmul.f32 %v641, %v645
  %v648 = vadd.f32 %v626, %v646
  %v649 = vadd.f32 %v627, %v647
  %s650 = scalar_lea.vmem %s4, 96
  %v651 = vld [vmem:[%s650] sm:$0xff]
  %v652 = vld [vmem:[%s650 + $0x8] sm:$0xff]
  %v653 = vlaneseq
  %v654 = vshrl.u32 %v653, 7
  %v655 = vsub.s32 6, %v654
  %v656 = vrot.slane %v588, %v655
  %v657 = vmul.f32 %v651, %v656
  %v658 = vmul.f32 %v652, %v656
  %v659 = vadd.f32 %v637, %v657
  %v660 = vadd.f32 %v638, %v658
  %s661 = scalar_lea.vmem %s4, 112
  %v662 = vld [vmem:[%s661] sm:$0xff]
  %v663 = vld [vmem:[%s661 + $0x8] sm:$0xff]
  %v664 = vlaneseq
  %v665 = vshrl.u32 %v664, 7
  %v666 = vsub.s32 7, %v665
  %v667 = vrot.slane %v588, %v666
  %v668 = vmul.f32 %v662, %v667
  %v669 = vmul.f32 %v663, %v667
  %v670 = vadd.f32 %v648, %v668
  %v671 = vadd.f32 %v649, %v669
  %v672 = vadd.f32 %v659, %v670
  %v673 = vadd.f32 %v660, %v671
  %v674 = vld [vmem:[%s2 + $0x28] sm:$0xff]
  %v675 = vld [vmem:[%s2 + $0x30] sm:$0xff]
  %v676 = vadd.f32 %v672, %v674
  %v677 = vadd.f32 %v673, %v675
  %v678 = vmul.f32 %v676, 0.5
  %v679 = vmul.f32 %v677, 0.5
  %v680 = vmul.f32 %v676, 0.044715
  %v681 = vmul.f32 %v677, 0.044715
  %v682 = vmul.f32 %v680, %v676
  %v683 = vmul.f32 %v681, %v677
  %v684 = vmul.f32 %v682, %v676
  %v685 = vmul.f32 %v683, %v677
  %v686 = vadd.f32 %v676, %v684
  %v687 = vadd.f32 %v677, %v685
  %v688 = vmul.f32 %v686, 0.7978846
  %v689 = vmul.f32 %v687, 0.7978846
  %v690 = vtanh.pop %v688
  %v691 = vtanh.pop %v689
  %v692 = vadd.f32 %v690, 1.0
  %v693 = vadd.f32 %v691, 1.0
  %v694 = vmul.f32 %v678, %v692
  %v695 = vmul.f32 %v679, %v693
  %v696 = vld [vmem:[%s5] sm:$0xff]
  %v697 = vlaneseq
  %v698 = vshrl.u32 %v697, 7
  %v699 = vsub.s32 0, %v698
  %v700 = vrot.slane %v694, %v699
  %v701 = vmul.f32 %v696, %v700
  %s702 = scalar_lea.vmem %s5, 8
  %v703 = vld [vmem:[%s702] sm:$0xff]
  %v704 = vlaneseq
  %v705 = vshrl.u32 %v704, 7
  %v706 = vsub.s32 1, %v705
  %v707 = vrot.slane %v694, %v706
  %v708 = vmul.f32 %v703, %v707
  %s709 = scalar_lea.vmem %s5, 16
  %v710 = vld [vmem:[%s709] sm:$0xff]
  %v711 = vlaneseq
  %v712 = vshrl.u32 %v711, 7
  %v713 = vsub.s32 2, %v712
  %v714 = vrot.slane %v694, %v713
  %v715 = vmul.f32 %v710, %v714
  %v716 = vadd.f32 %v701, %v715
  %s717 = scalar_lea.vmem %s5, 24
  %v718 = vld [vmem:[%s717] sm:$0xff]
  %v719 = vlaneseq
  %v720 = vshrl.u32 %v719, 7
  %v721 = vsub.s32 3, %v720
  %v722 = vrot.slane %v694, %v721
  %v723 = vmul.f32 %v718, %v722
  %v724 = vadd.f32 %v708, %v723
  %s725 = scalar_lea.vmem %s5, 32
  %v726 = vld [vmem:[%s725] sm:$0xff]
  %v727 = vlaneseq
  %v728 = vshrl.u32 %v727, 7
  %v729 = vsub.s32 4, %v728
  %v730 = vrot.slane %v694, %v729
  %v731 = vmul.f32 %v726, %v730
  %v732 = vadd.f32 %v716, %v731
  %s733 = scalar_lea.vmem %s5, 40
  %v734 = vld [vmem:[%s733] sm:$0xff]
  %v735 = vlaneseq
  %v736 = vshrl.u32 %v735, 7
  %v737 = vsub.s32 5, %v736
  %v738 = vrot.slane %v694, %v737
  %v739 = vmul.f32 %v734, %v738
  %v740 = vadd.f32 %v724, %v739
  %s741 = scalar_lea.vmem %s5, 48
  %v742 = vld [vmem:[%s741] sm:$0xff]
  %v743 = vlaneseq
  %v744 = vshrl.u32 %v743, 7
  %v745 = vsub.s32 6, %v744
  %v746 = vrot.slane %v694, %v745
  %v747 = vmul.f32 %v742, %v746
  %v748 = vadd.f32 %v732, %v747
  %s749 = scalar_lea.vmem %s5, 56
  %v750 = vld [vmem:[%s749] sm:$0xff]
  %v751 = vlaneseq
  %v752 = vshrl.u32 %v751, 7
  %v753 = vsub.s32 7, %v752
  %v754 = vrot.slane %v694, %v753
  %v755 = vmul.f32 %v750, %v754
  %v756 = vadd.f32 %v740, %v755
  %s757 = scalar_lea.vmem %s5, 64
  %v758 = vld [vmem:[%s757] sm:$0xff]
  %v759 = vlaneseq
  %v760 = vshrl.u32 %v759, 7
  %v761 = vsub.s32 0, %v760
  %v762 = vrot.slane %v695, %v761
  %v763 = vmul.f32 %v758, %v762
  %v764 = vadd.f32 %v748, %v763
  %s765 = scalar_lea.vmem %s5, 72
  %v766 = vld [vmem:[%s765] sm:$0xff]
  %v767 = vlaneseq
  %v768 = vshrl.u32 %v767, 7
  %v769 = vsub.s32 1, %v768
  %v770 = vrot.slane %v695, %v769
  %v771 = vmul.f32 %v766, %v770
  %v772 = vadd.f32 %v756, %v771
  %s773 = scalar_lea.vmem %s5, 80
  %v774 = vld [vmem:[%s773] sm:$0xff]
  %v775 = vlaneseq
  %v776 = vshrl.u32 %v775, 7
  %v777 = vsub.s32 2, %v776
  %v778 = vrot.slane %v695, %v777
  %v779 = vmul.f32 %v774, %v778
  %v780 = vadd.f32 %v764, %v779
  %s781 = scalar_lea.vmem %s5, 88
  %v782 = vld [vmem:[%s781] sm:$0xff]
  %v783 = vlaneseq
  %v784 = vshrl.u32 %v783, 7
  %v785 = vsub.s32 3, %v784
  %v786 = vrot.slane %v695, %v785
  %v787 = vmul.f32 %v782, %v786
  %v788 = vadd.f32 %v772, %v787
  %s789 = scalar_lea.vmem %s5, 96
  %v790 = vld [vmem:[%s789] sm:$0xff]
  %v791 = vlaneseq
  %v792 = vshrl.u32 %v791, 7
  %v793 = vsub.s32 4, %v792
  %v794 = vrot.slane %v695, %v793
  %v795 = vmul.f32 %v790, %v794
  %v796 = vadd.f32 %v780, %v795
  %s797 = scalar_lea.vmem %s5, 104
  %v798 = vld [vmem:[%s797] sm:$0xff]
  %v799 = vlaneseq
  %v800 = vshrl.u32 %v799, 7
  %v801 = vsub.s32 5, %v800
  %v802 = vrot.slane %v695, %v801
  %v803 = vmul.f32 %v798, %v802
  %v804 = vadd.f32 %v788, %v803
  %s805 = scalar_lea.vmem %s5, 112
  %v806 = vld [vmem:[%s805] sm:$0xff]
  %v807 = vlaneseq
  %v808 = vshrl.u32 %v807, 7
  %v809 = vsub.s32 6, %v808
  %v810 = vrot.slane %v695, %v809
  %v811 = vmul.f32 %v806, %v810
  %v812 = vadd.f32 %v796, %v811
  %s813 = scalar_lea.vmem %s5, 120
  %v814 = vld [vmem:[%s813] sm:$0xff]
  %v815 = vlaneseq
  %v816 = vshrl.u32 %v815, 7
  %v817 = vsub.s32 7, %v816
  %v818 = vrot.slane %v695, %v817
  %v819 = vmul.f32 %v814, %v818
  %v820 = vadd.f32 %v804, %v819
  %v821 = vadd.f32 %v812, %v820
  %v822 = vld [vmem:[%s2 + $0x38] sm:$0xff]
  %v823 = vadd.f32 %v821, %v822
  %v824 = vld [vmem:[%s2 + $0x40] sm:$0xff]
  %v825 = vmul.f32 %v824, %v823
  %v826 = vadd.f32 %v825, %v294
  %v827 = vld [vmem:[%s2 + $0x48] sm:$0xff]
  %v828 = vld [vmem:[%s2 + $0x50] sm:$0xff]
  %v829 = vrot.slane %v826, 4
  %v830 = vadd.f32 %v826, %v829
  %v831 = vrot.slane %v830, 2
  %v832 = vadd.f32 %v830, %v831
  %v833 = vrot.slane %v832, 1
  %v834 = vadd.f32 %v832, %v833
  %v835 = vmul.f32 %v834, %v279
  %v836 = vsub.f32 %v826, %v835
  %v837 = vmul.f32 %v836, %v836
  %v838 = vrot.slane %v837, 4
  %v839 = vadd.f32 %v837, %v838
  %v840 = vrot.slane %v839, 2
  %v841 = vadd.f32 %v839, %v840
  %v842 = vrot.slane %v841, 1
  %v843 = vadd.f32 %v841, %v842
  %v844 = vmul.f32 %v843, %v279
  %v845 = vadd.f32 %v844, 1e-05
  %v846 = vrsqrt.pop %v845
  %v847 = vmul.f32 %v836, %v846
  %v848 = vmul.f32 %v847, %v827
  %v849 = vadd.f32 %v848, %v828
  %v850 = vld [vmem:[%s6] sm:$0xff]
  %v851 = vlaneseq
  %v852 = vshrl.u32 %v851, 7
  %v853 = vsub.s32 0, %v852
  %v854 = vrot.slane %v849, %v853
  %v855 = vmul.f32 %v850, %v854
  %s856 = scalar_lea.vmem %s6, 8
  %v857 = vld [vmem:[%s856] sm:$0xff]
  %v858 = vlaneseq
  %v859 = vshrl.u32 %v858, 7
  %v860 = vsub.s32 1, %v859
  %v861 = vrot.slane %v849, %v860
  %v862 = vmul.f32 %v857, %v861
  %s863 = scalar_lea.vmem %s6, 16
  %v864 = vld [vmem:[%s863] sm:$0xff]
  %v865 = vlaneseq
  %v866 = vshrl.u32 %v865, 7
  %v867 = vsub.s32 2, %v866
  %v868 = vrot.slane %v849, %v867
  %v869 = vmul.f32 %v864, %v868
  %v870 = vadd.f32 %v855, %v869
  %s871 = scalar_lea.vmem %s6, 24
  %v872 = vld [vmem:[%s871] sm:$0xff]
  %v873 = vlaneseq
  %v874 = vshrl.u32 %v873, 7
  %v875 = vsub.s32 3, %v874
  %v876 = vrot.slane %v849, %v875
  %v877 = vmul.f32 %v872, %v876
  %v878 = vadd.f32 %v862, %v877
  %s879 = scalar_lea.vmem %s6, 32
  %v880 = vld [vmem:[%s879] sm:$0xff]
  %v881 = vlaneseq
  %v882 = vshrl.u32 %v881, 7
  %v883 = vsub.s32 4, %v882
  %v884 = vrot.slane %v849, %v883
  %v885 = vmul.f32 %v880, %v884
  %v886 = vadd.f32 %v870, %v885
  %s887 = scalar_lea.vmem %s6, 40
  %v888 = vld [vmem:[%s887] sm:$0xff]
  %v889 = vlaneseq
  %v890 = vshrl.u32 %v889, 7
  %v891 = vsub.s32 5, %v890
  %v892 = vrot.slane %v849, %v891
  %v893 = vmul.f32 %v888, %v892
  %v894 = vadd.f32 %v878, %v893
  %s895 = scalar_lea.vmem %s6, 48
  %v896 = vld [vmem:[%s895] sm:$0xff]
  %v897 = vlaneseq
  %v898 = vshrl.u32 %v897, 7
  %v899 = vsub.s32 6, %v898
  %v900 = vrot.slane %v849, %v899
  %v901 = vmul.f32 %v896, %v900
  %v902 = vadd.f32 %v886, %v901
  %s903 = scalar_lea.vmem %s6, 56
  %v904 = vld [vmem:[%s903] sm:$0xff]
  %v905 = vlaneseq
  %v906 = vshrl.u32 %v905, 7
  %v907 = vsub.s32 7, %v906
  %v908 = vrot.slane %v849, %v907
  %v909 = vmul.f32 %v904, %v908
  %v910 = vadd.f32 %v894, %v909
  %v911 = vadd.f32 %v902, %v910
  %912 = vrot.lane.b32.xlu0 %v911, 27
  %v913 = vpop.permute.xlu0 %912
  %v914 = vld [vmem:[%s7] sm:$0xff]
  %v915 = vmul.f32 %v914, %v913
  %916 = vrot.lane.b32.xlu0 %v911, 26
  %v917 = vpop.permute.xlu0 %916
  %s918 = scalar_lea.vmem %s7, 8
  %v919 = vld [vmem:[%s918] sm:$0xff]
  %v920 = vmul.f32 %v919, %v917
  %921 = vrot.lane.b32.xlu0 %v911, 25
  %v922 = vpop.permute.xlu0 %921
  %s923 = scalar_lea.vmem %s7, 16
  %v924 = vld [vmem:[%s923] sm:$0xff]
  %v925 = vmul.f32 %v924, %v922
  %926 = vrot.lane.b32.xlu0 %v911, 24
  %v927 = vpop.permute.xlu0 %926
  %s928 = scalar_lea.vmem %s7, 24
  %v929 = vld [vmem:[%s928] sm:$0xff]
  %v930 = vmul.f32 %v929, %v927
  %931 = vrot.lane.b32.xlu0 %v911, 23
  %v932 = vpop.permute.xlu0 %931
  %s933 = scalar_lea.vmem %s7, 32
  %v934 = vld [vmem:[%s933] sm:$0xff]
  %v935 = vmul.f32 %v934, %v932
  %v936 = vadd.f32 %v915, %v935
  %937 = vrot.lane.b32.xlu0 %v911, 22
  %v938 = vpop.permute.xlu0 %937
  %s939 = scalar_lea.vmem %s7, 40
  %v940 = vld [vmem:[%s939] sm:$0xff]
  %v941 = vmul.f32 %v940, %v938
  %v942 = vadd.f32 %v920, %v941
  %943 = vrot.lane.b32.xlu0 %v911, 21
  %v944 = vpop.permute.xlu0 %943
  %s945 = scalar_lea.vmem %s7, 48
  %v946 = vld [vmem:[%s945] sm:$0xff]
  %v947 = vmul.f32 %v946, %v944
  %v948 = vadd.f32 %v925, %v947
  %949 = vrot.lane.b32.xlu0 %v911, 19
  %v950 = vpop.permute.xlu0 %949
  %s951 = scalar_lea.vmem %s7, 56
  %v952 = vld [vmem:[%s951] sm:$0xff]
  %v953 = vmul.f32 %v952, %v950
  %v954 = vadd.f32 %v930, %v953
  %955 = vrot.lane.b32.xlu0 %v911, 18
  %v956 = vpop.permute.xlu0 %955
  %s957 = scalar_lea.vmem %s7, 64
  %v958 = vld [vmem:[%s957] sm:$0xff]
  %v959 = vmul.f32 %v958, %v956
  %v960 = vadd.f32 %v936, %v959
  %961 = vrot.lane.b32.xlu0 %v911, 17
  %v962 = vpop.permute.xlu0 %961
  %s963 = scalar_lea.vmem %s7, 72
  %v964 = vld [vmem:[%s963] sm:$0xff]
  %v965 = vmul.f32 %v964, %v962
  %v966 = vadd.f32 %v942, %v965
  %967 = vrot.lane.b32.xlu0 %v911, 16
  %v968 = vpop.permute.xlu0 %967
  %s969 = scalar_lea.vmem %s7, 80
  %v970 = vld [vmem:[%s969] sm:$0xff]
  %v971 = vmul.f32 %v970, %v968
  %v972 = vadd.f32 %v948, %v971
  %973 = vrot.lane.b32.xlu0 %v911, 15
  %v974 = vpop.permute.xlu0 %973
  %s975 = scalar_lea.vmem %s7, 88
  %v976 = vld [vmem:[%s975] sm:$0xff]
  %v977 = vmul.f32 %v976, %v974
  %v978 = vadd.f32 %v954, %v977
  %979 = vrot.lane.b32.xlu0 %v911, 14
  %v980 = vpop.permute.xlu0 %979
  %s981 = scalar_lea.vmem %s7, 96
  %v982 = vld [vmem:[%s981] sm:$0xff]
  %v983 = vmul.f32 %v982, %v980
  %v984 = vadd.f32 %v960, %v983
  %985 = vrot.lane.b32.xlu0 %v911, 13
  %v986 = vpop.permute.xlu0 %985
  %s987 = scalar_lea.vmem %s7, 104
  %v988 = vld [vmem:[%s987] sm:$0xff]
  %v989 = vmul.f32 %v988, %v986
  %v990 = vadd.f32 %v966, %v989
  %991 = vrot.lane.b32.xlu0 %v911, 11
  %v992 = vpop.permute.xlu0 %991
  %s993 = scalar_lea.vmem %s7, 112
  %v994 = vld [vmem:[%s993] sm:$0xff]
  %v995 = vmul.f32 %v994, %v992
  %v996 = vadd.f32 %v972, %v995
  %997 = vrot.lane.b32.xlu0 %v911, 10
  %v998 = vpop.permute.xlu0 %997
  %s999 = scalar_lea.vmem %s7, 120
  %v1000 = vld [vmem:[%s999] sm:$0xff]
  %v1001 = vmul.f32 %v1000, %v998
  %v1002 = vadd.f32 %v978, %v1001
  %1003 = vrot.lane.b32.xlu0 %v911, 9
  %v1004 = vpop.permute.xlu0 %1003
  %s1005 = scalar_lea.vmem %s7, 128
  %v1006 = vld [vmem:[%s1005] sm:$0xff]
  %v1007 = vmul.f32 %v1006, %v1004
  %v1008 = vadd.f32 %v984, %v1007
  %1009 = vrot.lane.b32.xlu0 %v911, 8
  %v1010 = vpop.permute.xlu0 %1009
  %s1011 = scalar_lea.vmem %s7, 136
  %v1012 = vld [vmem:[%s1011] sm:$0xff]
  %v1013 = vmul.f32 %v1012, %v1010
  %v1014 = vadd.f32 %v990, %v1013
  %1015 = vrot.lane.b32.xlu0 %v911, 7
  %v1016 = vpop.permute.xlu0 %1015
  %s1017 = scalar_lea.vmem %s7, 144
  %v1018 = vld [vmem:[%s1017] sm:$0xff]
  %v1019 = vmul.f32 %v1018, %v1016
  %v1020 = vadd.f32 %v996, %v1019
  %1021 = vrot.lane.b32.xlu0 %v911, 6
  %v1022 = vpop.permute.xlu0 %1021
  %s1023 = scalar_lea.vmem %s7, 152
  %v1024 = vld [vmem:[%s1023] sm:$0xff]
  %v1025 = vmul.f32 %v1024, %v1022
  %v1026 = vadd.f32 %v1002, %v1025
  %1027 = vrot.lane.b32.xlu0 %v911, 5
  %v1028 = vpop.permute.xlu0 %1027
  %s1029 = scalar_lea.vmem %s7, 160
  %v1030 = vld [vmem:[%s1029] sm:$0xff]
  %v1031 = vmul.f32 %v1030, %v1028
  %v1032 = vadd.f32 %v1008, %v1031
  %1033 = vrot.lane.b32.xlu0 %v911, 3
  %v1034 = vpop.permute.xlu0 %1033
  %s1035 = scalar_lea.vmem %s7, 168
  %v1036 = vld [vmem:[%s1035] sm:$0xff]
  %v1037 = vmul.f32 %v1036, %v1034
  %v1038 = vadd.f32 %v1014, %v1037
  %1039 = vrot.lane.b32.xlu0 %v911, 2
  %v1040 = vpop.permute.xlu0 %1039
  %s1041 = scalar_lea.vmem %s7, 176
  %v1042 = vld [vmem:[%s1041] sm:$0xff]
  %v1043 = vmul.f32 %v1042, %v1040
  %v1044 = vadd.f32 %v1020, %v1043
  %1045 = vrot.lane.b32.xlu0 %v911, 1
  %v1046 = vpop.permute.xlu0 %1045
  %s1047 = scalar_lea.vmem %s7, 184
  %v1048 = vld [vmem:[%s1047] sm:$0xff]
  %v1049 = vmul.f32 %v1048, %v1046
  %v1050 = vadd.f32 %v1026, %v1049
  %s1051 = scalar_lea.vmem %s7, 192
  %v1052 = vld [vmem:[%s1051] sm:$0xff]
  %v1053 = vmul.f32 %v1052, %v911
  %v1054 = vadd.f32 %v1032, %v1053
  %1055 = vrot.lane.b32.xlu0 %v911, 127
  %v1056 = vpop.permute.xlu0 %1055
  %s1057 = scalar_lea.vmem %s7, 200
  %v1058 = vld [vmem:[%s1057] sm:$0xff]
  %v1059 = vmul.f32 %v1058, %v1056
  %v1060 = vadd.f32 %v1038, %v1059
  %1061 = vrot.lane.b32.xlu0 %v911, 126
  %v1062 = vpop.permute.xlu0 %1061
  %s1063 = scalar_lea.vmem %s7, 208
  %v1064 = vld [vmem:[%s1063] sm:$0xff]
  %v1065 = vmul.f32 %v1064, %v1062
  %v1066 = vadd.f32 %v1044, %v1065
  %1067 = vrot.lane.b32.xlu0 %v911, 125
  %v1068 = vpop.permute.xlu0 %1067
  %s1069 = scalar_lea.vmem %s7, 216
  %v1070 = vld [vmem:[%s1069] sm:$0xff]
  %v1071 = vmul.f32 %v1070, %v1068
  %v1072 = vadd.f32 %v1050, %v1071
  %1073 = vrot.lane.b32.xlu0 %v911, 123
  %v1074 = vpop.permute.xlu0 %1073
  %s1075 = scalar_lea.vmem %s7, 224
  %v1076 = vld [vmem:[%s1075] sm:$0xff]
  %v1077 = vmul.f32 %v1076, %v1074
  %v1078 = vadd.f32 %v1054, %v1077
  %1079 = vrot.lane.b32.xlu0 %v911, 122
  %v1080 = vpop.permute.xlu0 %1079
  %s1081 = scalar_lea.vmem %s7, 232
  %v1082 = vld [vmem:[%s1081] sm:$0xff]
  %v1083 = vmul.f32 %v1082, %v1080
  %v1084 = vadd.f32 %v1060, %v1083
  %1085 = vrot.lane.b32.xlu0 %v911, 121
  %v1086 = vpop.permute.xlu0 %1085
  %s1087 = scalar_lea.vmem %s7, 240
  %v1088 = vld [vmem:[%s1087] sm:$0xff]
  %v1089 = vmul.f32 %v1088, %v1086
  %v1090 = vadd.f32 %v1066, %v1089
  %1091 = vrot.lane.b32.xlu0 %v911, 120
  %v1092 = vpop.permute.xlu0 %1091
  %s1093 = scalar_lea.vmem %s7, 248
  %v1094 = vld [vmem:[%s1093] sm:$0xff]
  %v1095 = vmul.f32 %v1094, %v1092
  %v1096 = vadd.f32 %v1072, %v1095
  %1097 = vrot.lane.b32.xlu0 %v911, 119
  %v1098 = vpop.permute.xlu0 %1097
  %s1099 = scalar_lea.vmem %s7, 256
  %v1100 = vld [vmem:[%s1099] sm:$0xff]
  %v1101 = vmul.f32 %v1100, %v1098
  %v1102 = vadd.f32 %v1078, %v1101
  %1103 = vrot.lane.b32.xlu0 %v911, 118
  %v1104 = vpop.permute.xlu0 %1103
  %s1105 = scalar_lea.vmem %s7, 264
  %v1106 = vld [vmem:[%s1105] sm:$0xff]
  %v1107 = vmul.f32 %v1106, %v1104
  %v1108 = vadd.f32 %v1084, %v1107
  %1109 = vrot.lane.b32.xlu0 %v911, 117
  %v1110 = vpop.permute.xlu0 %1109
  %s1111 = scalar_lea.vmem %s7, 272
  %v1112 = vld [vmem:[%s1111] sm:$0xff]
  %v1113 = vmul.f32 %v1112, %v1110
  %v1114 = vadd.f32 %v1090, %v1113
  %1115 = vrot.lane.b32.xlu0 %v911, 115
  %v1116 = vpop.permute.xlu0 %1115
  %s1117 = scalar_lea.vmem %s7, 280
  %v1118 = vld [vmem:[%s1117] sm:$0xff]
  %v1119 = vmul.f32 %v1118, %v1116
  %v1120 = vadd.f32 %v1096, %v1119
  %1121 = vrot.lane.b32.xlu0 %v911, 114
  %v1122 = vpop.permute.xlu0 %1121
  %s1123 = scalar_lea.vmem %s7, 288
  %v1124 = vld [vmem:[%s1123] sm:$0xff]
  %v1125 = vmul.f32 %v1124, %v1122
  %v1126 = vadd.f32 %v1102, %v1125
  %1127 = vrot.lane.b32.xlu0 %v911, 113
  %v1128 = vpop.permute.xlu0 %1127
  %s1129 = scalar_lea.vmem %s7, 296
  %v1130 = vld [vmem:[%s1129] sm:$0xff]
  %v1131 = vmul.f32 %v1130, %v1128
  %v1132 = vadd.f32 %v1108, %v1131
  %1133 = vrot.lane.b32.xlu0 %v911, 112
  %v1134 = vpop.permute.xlu0 %1133
  %s1135 = scalar_lea.vmem %s7, 304
  %v1136 = vld [vmem:[%s1135] sm:$0xff]
  %v1137 = vmul.f32 %v1136, %v1134
  %v1138 = vadd.f32 %v1114, %v1137
  %1139 = vrot.lane.b32.xlu0 %v911, 111
  %v1140 = vpop.permute.xlu0 %1139
  %s1141 = scalar_lea.vmem %s7, 312
  %v1142 = vld [vmem:[%s1141] sm:$0xff]
  %v1143 = vmul.f32 %v1142, %v1140
  %v1144 = vadd.f32 %v1120, %v1143
  %1145 = vrot.lane.b32.xlu0 %v911, 110
  %v1146 = vpop.permute.xlu0 %1145
  %s1147 = scalar_lea.vmem %s7, 320
  %v1148 = vld [vmem:[%s1147] sm:$0xff]
  %v1149 = vmul.f32 %v1148, %v1146
  %v1150 = vadd.f32 %v1126, %v1149
  %1151 = vrot.lane.b32.xlu0 %v911, 109
  %v1152 = vpop.permute.xlu0 %1151
  %s1153 = scalar_lea.vmem %s7, 328
  %v1154 = vld [vmem:[%s1153] sm:$0xff]
  %v1155 = vmul.f32 %v1154, %v1152
  %v1156 = vadd.f32 %v1132, %v1155
  %1157 = vrot.lane.b32.xlu0 %v911, 107
  %v1158 = vpop.permute.xlu0 %1157
  %s1159 = scalar_lea.vmem %s7, 336
  %v1160 = vld [vmem:[%s1159] sm:$0xff]
  %v1161 = vmul.f32 %v1160, %v1158
  %v1162 = vadd.f32 %v1138, %v1161
  %1163 = vrot.lane.b32.xlu0 %v911, 106
  %v1164 = vpop.permute.xlu0 %1163
  %s1165 = scalar_lea.vmem %s7, 344
  %v1166 = vld [vmem:[%s1165] sm:$0xff]
  %v1167 = vmul.f32 %v1166, %v1164
  %v1168 = vadd.f32 %v1144, %v1167
  %1169 = vrot.lane.b32.xlu0 %v911, 105
  %v1170 = vpop.permute.xlu0 %1169
  %s1171 = scalar_lea.vmem %s7, 352
  %v1172 = vld [vmem:[%s1171] sm:$0xff]
  %v1173 = vmul.f32 %v1172, %v1170
  %v1174 = vadd.f32 %v1150, %v1173
  %1175 = vrot.lane.b32.xlu0 %v911, 104
  %v1176 = vpop.permute.xlu0 %1175
  %s1177 = scalar_lea.vmem %s7, 360
  %v1178 = vld [vmem:[%s1177] sm:$0xff]
  %v1179 = vmul.f32 %v1178, %v1176
  %v1180 = vadd.f32 %v1156, %v1179
  %1181 = vrot.lane.b32.xlu0 %v911, 103
  %v1182 = vpop.permute.xlu0 %1181
  %s1183 = scalar_lea.vmem %s7, 368
  %v1184 = vld [vmem:[%s1183] sm:$0xff]
  %v1185 = vmul.f32 %v1184, %v1182
  %v1186 = vadd.f32 %v1162, %v1185
  %1187 = vrot.lane.b32.xlu0 %v911, 102
  %v1188 = vpop.permute.xlu0 %1187
  %s1189 = scalar_lea.vmem %s7, 376
  %v1190 = vld [vmem:[%s1189] sm:$0xff]
  %v1191 = vmul.f32 %v1190, %v1188
  %v1192 = vadd.f32 %v1168, %v1191
  %1193 = vrot.lane.b32.xlu0 %v911, 101
  %v1194 = vpop.permute.xlu0 %1193
  %s1195 = scalar_lea.vmem %s7, 384
  %v1196 = vld [vmem:[%s1195] sm:$0xff]
  %v1197 = vmul.f32 %v1196, %v1194
  %v1198 = vadd.f32 %v1174, %v1197
  %v1199 = vadd.f32 %v1198, %v1180
  %v1200 = vadd.f32 %v1186, %v1192
  %v1201 = vadd.f32 %v1199, %v1200
  %v1202 = vld [vmem:[%s2 + $0x58] sm:$0xff]
  %v1203 = vmul.f32 %v1201, %v1202
  %v1204 = vld [vmem:[%s2 + $0x60] sm:$0xff]
  %v1205 = vadd.f32 %v1203, %v1204
  %v1206 = vld [vmem:[%s8] sm:$0xff]
  %v1207 = vld [vmem:[%s8 + $0x8] sm:$0xff]
  %v1208 = vlaneseq
  %v1209 = vshrl.u32 %v1208, 7
  %v1210 = vsub.s32 0, %v1209
  %v1211 = vrot.slane %v1205, %v1210
  %v1212 = vmul.f32 %v1206, %v1211
  %v1213 = vmul.f32 %v1207, %v1211
  %s1214 = scalar_lea.vmem %s8, 16
  %v1215 = vld [vmem:[%s1214] sm:$0xff]
  %v1216 = vld [vmem:[%s1214 + $0x8] sm:$0xff]
  %v1217 = vlaneseq
  %v1218 = vshrl.u32 %v1217, 7
  %v1219 = vsub.s32 1, %v1218
  %v1220 = vrot.slane %v1205, %v1219
  %v1221 = vmul.f32 %v1215, %v1220
  %v1222 = vmul.f32 %v1216, %v1220
  %s1223 = scalar_lea.vmem %s8, 32
  %v1224 = vld [vmem:[%s1223] sm:$0xff]
  %v1225 = vld [vmem:[%s1223 + $0x8] sm:$0xff]
  %v1226 = vlaneseq
  %v1227 = vshrl.u32 %v1226, 7
  %v1228 = vsub.s32 2, %v1227
  %v1229 = vrot.slane %v1205, %v1228
  %v1230 = vmul.f32 %v1224, %v1229
  %v1231 = vmul.f32 %v1225, %v1229
  %v1232 = vadd.f32 %v1212, %v1230
  %v1233 = vadd.f32 %v1213, %v1231
  %s1234 = scalar_lea.vmem %s8, 48
  %v1235 = vld [vmem:[%s1234] sm:$0xff]
  %v1236 = vld [vmem:[%s1234 + $0x8] sm:$0xff]
  %v1237 = vlaneseq
  %v1238 = vshrl.u32 %v1237, 7
  %v1239 = vsub.s32 3, %v1238
  %v1240 = vrot.slane %v1205, %v1239
  %v1241 = vmul.f32 %v1235, %v1240
  %v1242 = vmul.f32 %v1236, %v1240
  %v1243 = vadd.f32 %v1221, %v1241
  %v1244 = vadd.f32 %v1222, %v1242
  %s1245 = scalar_lea.vmem %s8, 64
  %v1246 = vld [vmem:[%s1245] sm:$0xff]
  %v1247 = vld [vmem:[%s1245 + $0x8] sm:$0xff]
  %v1248 = vlaneseq
  %v1249 = vshrl.u32 %v1248, 7
  %v1250 = vsub.s32 4, %v1249
  %v1251 = vrot.slane %v1205, %v1250
  %v1252 = vmul.f32 %v1246, %v1251
  %v1253 = vmul.f32 %v1247, %v1251
  %v1254 = vadd.f32 %v1232, %v1252
  %v1255 = vadd.f32 %v1233, %v1253
  %s1256 = scalar_lea.vmem %s8, 80
  %v1257 = vld [vmem:[%s1256] sm:$0xff]
  %v1258 = vld [vmem:[%s1256 + $0x8] sm:$0xff]
  %v1259 = vlaneseq
  %v1260 = vshrl.u32 %v1259, 7
  %v1261 = vsub.s32 5, %v1260
  %v1262 = vrot.slane %v1205, %v1261
  %v1263 = vmul.f32 %v1257, %v1262
  %v1264 = vmul.f32 %v1258, %v1262
  %v1265 = vadd.f32 %v1243, %v1263
  %v1266 = vadd.f32 %v1244, %v1264
  %s1267 = scalar_lea.vmem %s8, 96
  %v1268 = vld [vmem:[%s1267] sm:$0xff]
  %v1269 = vld [vmem:[%s1267 + $0x8] sm:$0xff]
  %v1270 = vlaneseq
  %v1271 = vshrl.u32 %v1270, 7
  %v1272 = vsub.s32 6, %v1271
  %v1273 = vrot.slane %v1205, %v1272
  %v1274 = vmul.f32 %v1268, %v1273
  %v1275 = vmul.f32 %v1269, %v1273
  %v1276 = vadd.f32 %v1254, %v1274
  %v1277 = vadd.f32 %v1255, %v1275
  %s1278 = scalar_lea.vmem %s8, 112
  %v1279 = vld [vmem:[%s1278] sm:$0xff]
  %v1280 = vld [vmem:[%s1278 + $0x8] sm:$0xff]
  %v1281 = vlaneseq
  %v1282 = vshrl.u32 %v1281, 7
  %v1283 = vsub.s32 7, %v1282
  %v1284 = vrot.slane %v1205, %v1283
  %v1285 = vmul.f32 %v1279, %v1284
  %v1286 = vmul.f32 %v1280, %v1284
  %v1287 = vadd.f32 %v1265, %v1285
  %v1288 = vadd.f32 %v1266, %v1286
  %v1289 = vadd.f32 %v1276, %v1287
  %v1290 = vadd.f32 %v1277, %v1288
  %v1291 = vld [vmem:[%s2 + $0x68] sm:$0xff]
  %v1292 = vld [vmem:[%s2 + $0x70] sm:$0xff]
  %v1293 = vadd.f32 %v1289, %v1291
  %v1294 = vadd.f32 %v1290, %v1292
  %v1295 = vmul.f32 %v1293, 0.5
  %v1296 = vmul.f32 %v1294, 0.5
  %v1297 = vmul.f32 %v1293, 0.044715
  %v1298 = vmul.f32 %v1294, 0.044715
  %v1299 = vmul.f32 %v1297, %v1293
  %v1300 = vmul.f32 %v1298, %v1294
  %v1301 = vmul.f32 %v1299, %v1293
  %v1302 = vmul.f32 %v1300, %v1294
  %v1303 = vadd.f32 %v1293, %v1301
  %v1304 = vadd.f32 %v1294, %v1302
  %v1305 = vmul.f32 %v1303, 0.7978846
  %v1306 = vmul.f32 %v1304, 0.7978846
  %v1307 = vtanh.pop %v1305
  %v1308 = vtanh.pop %v1306
  %v1309 = vadd.f32 %v1307, 1.0
  %v1310 = vadd.f32 %v1308, 1.0
  %v1311 = vmul.f32 %v1295, %v1309
  %v1312 = vmul.f32 %v1296, %v1310
  %v1313 = vld [vmem:[%s9] sm:$0xff]
  %v1314 = vlaneseq
  %v1315 = vshrl.u32 %v1314, 7
  %v1316 = vsub.s32 0, %v1315
  %v1317 = vrot.slane %v1311, %v1316
  %v1318 = vmul.f32 %v1313, %v1317
  %s1319 = scalar_lea.vmem %s9, 8
  %v1320 = vld [vmem:[%s1319] sm:$0xff]
  %v1321 = vlaneseq
  %v1322 = vshrl.u32 %v1321, 7
  %v1323 = vsub.s32 1, %v1322
  %v1324 = vrot.slane %v1311, %v1323
  %v1325 = vmul.f32 %v1320, %v1324
  %s1326 = scalar_lea.vmem %s9, 16
  %v1327 = vld [vmem:[%s1326] sm:$0xff]
  %v1328 = vlaneseq
  %v1329 = vshrl.u32 %v1328, 7
  %v1330 = vsub.s32 2, %v1329
  %v1331 = vrot.slane %v1311, %v1330
  %v1332 = vmul.f32 %v1327, %v1331
  %v1333 = vadd.f32 %v1318, %v1332
  %s1334 = scalar_lea.vmem %s9, 24
  %v1335 = vld [vmem:[%s1334] sm:$0xff]
  %v1336 = vlaneseq
  %v1337 = vshrl.u32 %v1336, 7
  %v1338 = vsub.s32 3, %v1337
  %v1339 = vrot.slane %v1311, %v1338
  %v1340 = vmul.f32 %v1335, %v1339
  %v1341 = vadd.f32 %v1325, %v1340
  %s1342 = scalar_lea.vmem %s9, 32
  %v1343 = vld [vmem:[%s1342] sm:$0xff]
  %v1344 = vlaneseq
  %v1345 = vshrl.u32 %v1344, 7
  %v1346 = vsub.s32 4, %v1345
  %v1347 = vrot.slane %v1311, %v1346
  %v1348 = vmul.f32 %v1343, %v1347
  %v1349 = vadd.f32 %v1333, %v1348
  %s1350 = scalar_lea.vmem %s9, 40
  %v1351 = vld [vmem:[%s1350] sm:$0xff]
  %v1352 = vlaneseq
  %v1353 = vshrl.u32 %v1352, 7
  %v1354 = vsub.s32 5, %v1353
  %v1355 = vrot.slane %v1311, %v1354
  %v1356 = vmul.f32 %v1351, %v1355
  %v1357 = vadd.f32 %v1341, %v1356
  %s1358 = scalar_lea.vmem %s9, 48
  %v1359 = vld [vmem:[%s1358] sm:$0xff]
  %v1360 = vlaneseq
  %v1361 = vshrl.u32 %v1360, 7
  %v1362 = vsub.s32 6, %v1361
  %v1363 = vrot.slane %v1311, %v1362
  %v1364 = vmul.f32 %v1359, %v1363
  %v1365 = vadd.f32 %v1349, %v1364
  %s1366 = scalar_lea.vmem %s9, 56
  %v1367 = vld [vmem:[%s1366] sm:$0xff]
  %v1368 = vlaneseq
  %v1369 = vshrl.u32 %v1368, 7
  %v1370 = vsub.s32 7, %v1369
  %v1371 = vrot.slane %v1311, %v1370
  %v1372 = vmul.f32 %v1367, %v1371
  %v1373 = vadd.f32 %v1357, %v1372
  %s1374 = scalar_lea.vmem %s9, 64
  %v1375 = vld [vmem:[%s1374] sm:$0xff]
  %v1376 = vlaneseq
  %v1377 = vshrl.u32 %v1376, 7
  %v1378 = vsub.s32 0, %v1377
  %v1379 = vrot.slane %v1312, %v1378
  %v1380 = vmul.f32 %v1375, %v1379
  %v1381 = vadd.f32 %v1365, %v1380
  %s1382 = scalar_lea.vmem %s9, 72
  %v1383 = vld [vmem:[%s1382] sm:$0xff]
  %v1384 = vlaneseq
  %v1385 = vshrl.u32 %v1384, 7
  %v1386 = vsub.s32 1, %v1385
  %v1387 = vrot.slane %v1312, %v1386
  %v1388 = vmul.f32 %v1383, %v1387
  %v1389 = vadd.f32 %v1373, %v1388
  %s1390 = scalar_lea.vmem %s9, 80
  %v1391 = vld [vmem:[%s1390] sm:$0xff]
  %v1392 = vlaneseq
  %v1393 = vshrl.u32 %v1392, 7
  %v1394 = vsub.s32 2, %v1393
  %v1395 = vrot.slane %v1312, %v1394
  %v1396 = vmul.f32 %v1391, %v1395
  %v1397 = vadd.f32 %v1381, %v1396
  %s1398 = scalar_lea.vmem %s9, 88
  %v1399 = vld [vmem:[%s1398] sm:$0xff]
  %v1400 = vlaneseq
  %v1401 = vshrl.u32 %v1400, 7
  %v1402 = vsub.s32 3, %v1401
  %v1403 = vrot.slane %v1312, %v1402
  %v1404 = vmul.f32 %v1399, %v1403
  %v1405 = vadd.f32 %v1389, %v1404
  %s1406 = scalar_lea.vmem %s9, 96
  %v1407 = vld [vmem:[%s1406] sm:$0xff]
  %v1408 = vlaneseq
  %v1409 = vshrl.u32 %v1408, 7
  %v1410 = vsub.s32 4, %v1409
  %v1411 = vrot.slane %v1312, %v1410
  %v1412 = vmul.f32 %v1407, %v1411
  %v1413 = vadd.f32 %v1397, %v1412
  %s1414 = scalar_lea.vmem %s9, 104
  %v1415 = vld [vmem:[%s1414] sm:$0xff]
  %v1416 = vlaneseq
  %v1417 = vshrl.u32 %v1416, 7
  %v1418 = vsub.s32 5, %v1417
  %v1419 = vrot.slane %v1312, %v1418
  %v1420 = vmul.f32 %v1415, %v1419
  %v1421 = vadd.f32 %v1405, %v1420
  %s1422 = scalar_lea.vmem %s9, 112
  %v1423 = vld [vmem:[%s1422] sm:$0xff]
  %v1424 = vlaneseq
  %v1425 = vshrl.u32 %v1424, 7
  %v1426 = vsub.s32 6, %v1425
  %v1427 = vrot.slane %v1312, %v1426
  %v1428 = vmul.f32 %v1423, %v1427
  %v1429 = vadd.f32 %v1413, %v1428
  %s1430 = scalar_lea.vmem %s9, 120
  %v1431 = vld [vmem:[%s1430] sm:$0xff]
  %v1432 = vlaneseq
  %v1433 = vshrl.u32 %v1432, 7
  %v1434 = vsub.s32 7, %v1433
  %v1435 = vrot.slane %v1312, %v1434
  %v1436 = vmul.f32 %v1431, %v1435
  %v1437 = vadd.f32 %v1421, %v1436
  %v1438 = vadd.f32 %v1429, %v1437
  %v1439 = vld [vmem:[%s2 + $0x78] sm:$0xff]
  %v1440 = vadd.f32 %v1438, %v1439
  %v1441 = vld [vmem:[%s2 + $0x80] sm:$0xff]
  %v1442 = vmul.f32 %v1441, %v1440
  %v1443 = vadd.f32 %v1442, %v911
  %v1444 = vld [vmem:[%s2 + $0x88] sm:$0xff]
  %v1445 = vld [vmem:[%s2 + $0x90] sm:$0xff]
  %v1446 = vrot.slane %v1443, 4
  %v1447 = vadd.f32 %v1443, %v1446
  %v1448 = vrot.slane %v1447, 2
  %v1449 = vadd.f32 %v1447, %v1448
  %v1450 = vrot.slane %v1449, 1
  %v1451 = vadd.f32 %v1449, %v1450
  %v1452 = vmul.f32 %v1451, %v279
  %v1453 = vsub.f32 %v1443, %v1452
  %v1454 = vmul.f32 %v1453, %v1453
  %v1455 = vrot.slane %v1454, 4
  %v1456 = vadd.f32 %v1454, %v1455
  %v1457 = vrot.slane %v1456, 2
  %v1458 = vadd.f32 %v1456, %v1457
  %v1459 = vrot.slane %v1458, 1
  %v1460 = vadd.f32 %v1458, %v1459
  %v1461 = vmul.f32 %v1460, %v279
  %v1462 = vadd.f32 %v1461, 1e-05
  %v1463 = vrsqrt.pop %v1462
  %v1464 = vmul.f32 %v1453, %v1463
  %v1465 = vmul.f32 %v1464, %v1444
  %v1466 = vadd.f32 %v1465, %v1445
  %v1467 = vld [vmem:[%s10] sm:$0x7]
  %v1468 = vlaneseq
  %v1469 = vshrl.u32 %v1468, 7
  %v1470 = vsub.s32 0, %v1469
  %v1471 = vrot.slane %v1466, %v1470
  %v1472 = vmul.f32 %v1467, %v1471
  %s1473 = scalar_lea.vmem %s10, 4
  %v1474 = vld [vmem:[%s1473] sm:$0x7]
  %v1475 = vlaneseq
  %v1476 = vshrl.u32 %v1475, 7
  %v1477 = vsub.s32 1, %v1476
  %v1478 = vrot.slane %v1466, %v1477
  %v1479 = vmul.f32 %v1474, %v1478
  %s1480 = scalar_lea.vmem %s10, 8
  %v1481 = vld [vmem:[%s1480] sm:$0x7]
  %v1482 = vlaneseq
  %v1483 = vshrl.u32 %v1482, 7
  %v1484 = vsub.s32 2, %v1483
  %v1485 = vrot.slane %v1466, %v1484
  %v1486 = vmul.f32 %v1481, %v1485
  %v1487 = vadd.f32 %v1472, %v1486
  %s1488 = scalar_lea.vmem %s10, 12
  %v1489 = vld [vmem:[%s1488] sm:$0x7]
  %v1490 = vlaneseq
  %v1491 = vshrl.u32 %v1490, 7
  %v1492 = vsub.s32 3, %v1491
  %v1493 = vrot.slane %v1466, %v1492
  %v1494 = vmul.f32 %v1489, %v1493
  %v1495 = vadd.f32 %v1479, %v1494
  %s1496 = scalar_lea.vmem %s10, 16
  %v1497 = vld [vmem:[%s1496] sm:$0x7]
  %v1498 = vlaneseq
  %v1499 = vshrl.u32 %v1498, 7
  %v1500 = vsub.s32 4, %v1499
  %v1501 = vrot.slane %v1466, %v1500
  %v1502 = vmul.f32 %v1497, %v1501
  %v1503 = vadd.f32 %v1487, %v1502
  %s1504 = scalar_lea.vmem %s10, 20
  %v1505 = vld [vmem:[%s1504] sm:$0x7]
  %v1506 = vlaneseq
  %v1507 = vshrl.u32 %v1506, 7
  %v1508 = vsub.s32 5, %v1507
  %v1509 = vrot.slane %v1466, %v1508
  %v1510 = vmul.f32 %v1505, %v1509
  %v1511 = vadd.f32 %v1495, %v1510
  %s1512 = scalar_lea.vmem %s10, 24
  %v1513 = vld [vmem:[%s1512] sm:$0x7]
  %v1514 = vlaneseq
  %v1515 = vshrl.u32 %v1514, 7
  %v1516 = vsub.s32 6, %v1515
  %v1517 = vrot.slane %v1466, %v1516
  %v1518 = vmul.f32 %v1513, %v1517
  %v1519 = vadd.f32 %v1503, %v1518
  %s1520 = scalar_lea.vmem %s10, 28
  %v1521 = vld [vmem:[%s1520] sm:$0x7]
  %v1522 = vlaneseq
  %v1523 = vshrl.u32 %v1522, 7
  %v1524 = vsub.s32 7, %v1523
  %v1525 = vrot.slane %v1466, %v1524
  %v1526 = vmul.f32 %v1521, %v1525
  %v1527 = vadd.f32 %v1511, %v1526
  %v1528 = vadd.f32 %v1519, %v1527
  %v1529 = vadd.f32 %v38, %v1528
  %1530 = vst [vmem:[%s11] sm:$0x7] %v1529
  // Predicated region
  $region46: #{chromanet_forward.1} parent=0 // pred_check
    _
  $region47: #{chromanet_forward.1} parent=0 // pred_check_branch
    %1532 = sbr.rel (0) target = $region49
  $region48: #{chromanet_forward.1} parent=0 // pred_region
    _
  $region49: #{chromanet_forward.1} parent=0 // pred_fallthru
    _
  // Predicated region
  $region50: #{chromanet_forward.1} parent=0 // pred_check
    _
  $region51: #{chromanet_forward.1} parent=0 // pred_check_branch
    %1534 = sbr.rel (0) target = $region53
  $region52: #{chromanet_forward.1} parent=0 // pred_region
    _
  $region53: #{chromanet_forward.1} parent=0 // pred_fallthru
    _

</llo_original>
